<compile_context>
chip_gen: v5e
topology: v5e:2x2
jax: 0.10.0
libtpu: 0.0.40
codegen_flags: <defaults>
</compile_context>

<pallas_src>
import math
import numpy as np

import jax
import jax.numpy as jnp
from jax.experimental import pallas as pl
from jax.experimental.pallas import tpu as pltpu


# ------------------------------------------------------------------------------
# Host-side deterministic constants (replaces scipy/sympy from __init__):
# zeros of spherical Bessel functions j_l and their normalizers.
# ------------------------------------------------------------------------------
def _jl_np(l, x):
    """Spherical Bessel j_l(x) via upward recurrence (numpy float64)."""
    x = np.asarray(x, dtype=np.float64)
    j0 = np.sin(x) / x
    if l == 0:
        return j0
    j1 = np.sin(x) / x ** 2 - np.cos(x) / x
    if l == 1:
        return j1
    jm1, jc = j0, j1
    for ll in range(2, l + 1):
        jm1, jc = jc, (2 * ll - 1) / x * jc - jm1
    return jc


def _bisect(f, a, b, iters=200):
    fa, fb = f(a), f(b)
    assert fa * fb <= 0.0
    for _ in range(iters):
        m = 0.5 * (a + b)
        fm = f(m)
        if fa * fm <= 0.0:
            b, fb = m, fm
        else:
            a, fa = m, fm
    return 0.5 * (a + b)


def _jn_zeros(n, k):
    """First k positive zeros of j_l for l = 0..n-1 (same scheme as reference)."""
    zerosj = np.zeros((n, k), dtype=np.float64)
    zerosj[0] = np.arange(1, k + 1) * np.pi
    points = np.arange(1, k + n) * np.pi
    racines = np.zeros(k + n - 1, dtype=np.float64)
    for i in range(1, n):
        for j in range(k + n - 1 - i):
            racines[j] = _bisect(lambda r: _jl_np(i, r), points[j], points[j + 1])
        points = racines.copy()
        zerosj[i][:k] = racines[:k]
    return zerosj


def _bessel_constants(num_spherical, num_radial):
    zeros = _jn_zeros(num_spherical, num_radial)            # (n, k) float64
    norm = np.zeros_like(zeros)
    for l in range(num_spherical):
        for j in range(num_radial):
            norm[l, j] = 1.0 / math.sqrt(0.5 * _jl_np(l + 1, zeros[l, j]) ** 2)
    return zeros, norm


def _sph_harm_prefactor(l, m):
    return math.sqrt((2 * l + 1) / (4 * math.pi)
                     * math.factorial(l - abs(m)) / math.factorial(l + abs(m)))


# ------------------------------------------------------------------------------
# Shared per-sample math (pure elementwise; only Python float constants, so it
# traces inside the Pallas kernel without capturing arrays).  Returns the list of
# F = n*n*k feature planes in the PyTorch module's column order.
# ------------------------------------------------------------------------------
def _build_feature_fn(num_radial, num_spherical, cutoff):
    n, k = num_spherical, num_radial
    zeros, norm = _bessel_constants(n, k)
    inv_cut = 1.0 / float(cutoff)
    sqrt2 = math.sqrt(2.0)

    def features(dist, theta, phi):
        x = dist * inv_cut
        inv_x = 1.0 / x                       # single divide per sample

        # --- angular pieces ---------------------------------------------------
        c = jnp.cos(theta)
        # sympy has (1 - cos^2 theta)**0.5 ( == |sin theta| for theta in [0, pi] )
        s = jnp.sqrt(jnp.maximum(1.0 - c * c, 0.0))
        cp = jnp.cos(phi)
        sp = jnp.sin(phi)
        # Chebyshev angle recurrence: cos(m*phi), sin(m*phi), m = 0..n-1
        cos_m = [jnp.ones_like(cp), cp]
        sin_m = [jnp.zeros_like(sp), sp]
        for m in range(2, n):
            cos_m.append(2.0 * cp * cos_m[m - 1] - cos_m[m - 2])
            sin_m.append(2.0 * cp * sin_m[m - 1] - sin_m[m - 2])

        # Associated Legendre P_l^m(cos theta), m >= 0 (same recursion as module).
        P = {(0, 0): jnp.ones_like(c)}
        for l in range(1, n):
            P[(l, l)] = (1.0 - 2.0 * l) * s * P[(l - 1, l - 1)]
        for m in range(0, n - 1):
            P[(m + 1, m)] = (2.0 * m + 1.0) * c * P[(m, m)]
        for l in range(2, n):
            for m in range(l - 1):
                P[(l, m)] = ((2.0 * l - 1.0) * c * P[(l - 1, m)]
                             - (l + m - 1.0) * P[(l - 2, m)]) * (1.0 / (l - m))

        cols = []
        for l in range(n):
            # Radial basis: rbf_{l,j} = norm_{l,j} * j_l(z_{l,j} * x)
            rbf_l = []
            for j in range(k):
                z = float(zeros[l, j])
                inv_zx = inv_x * (1.0 / z)      # no per-element divide
                zx = x * z
                s_zx = jnp.sin(zx)
                j0 = s_zx * inv_zx
                if l == 0:
                    jl = j0
                else:
                    c_zx = jnp.cos(zx)          # sin/cos computed once, reused
                    jl = (j0 - c_zx) * inv_zx   # j_1
                    j_prev = j0
                    for ll in range(2, l + 1):
                        j_prev, jl = jl, (2.0 * ll - 1.0) * inv_zx * jl - j_prev
                rbf_l.append(float(norm[l, j]) * jl)

            # Real spherical harmonics for l, ordering: m = 0, 1..l, -l..-1
            ys = [_sph_harm_prefactor(l, 0) * P[(l, 0)]]
            for m in range(1, l + 1):
                ys.append((sqrt2 * ((-1.0) ** m) * _sph_harm_prefactor(l, m))
                          * P[(l, m)] * cos_m[m])
            for m in range(l, 0, -1):
                ys.append((sqrt2 * ((-1.0) ** m) * _sph_harm_prefactor(l, m))
                          * P[(l, m)] * sin_m[m])

            for y in ys:
                for r in rbf_l:
                    cols.append(y * r)
        return cols                              # list of F arrays

    return features


# ------------------------------------------------------------------------------
# Pallas wrapper
# ------------------------------------------------------------------------------
def make_torsion_emb(num_radial, num_spherical, cutoff=5.0, rows_per_tile=8):
    assert num_radial <= 64
    n, k = num_spherical, num_radial
    F = n * n * k
    features = _build_feature_fn(num_radial, num_spherical, cutoff)

    def kernel(inp_ref, out_ref):
        # inp_ref: (3, tr, 128)  [dist, theta, phi] -- samples on sublanes x lanes
        dist = inp_ref[0]
        theta = inp_ref[1]
        phi = inp_ref[2]
        cols = features(dist, theta, phi)
        for f, col in enumerate(cols):           # F unmasked (tr, 128) stores
            out_ref[f] = col

    def forward(dist, theta, phi):
        N = dist.shape[0]
        tile = rows_per_tile * 128               # samples per grid step
        Np = ((N + tile - 1) // tile) * tile     # pad ragged N; slice back at the end
        pad = Np - N
        d = dist.astype(jnp.float32)
        t = theta.astype(jnp.float32)
        p = phi.astype(jnp.float32)
        if pad:
            d = jnp.concatenate([d, jnp.ones((pad,), jnp.float32)])   # avoid 0/0
            t = jnp.concatenate([t, jnp.zeros((pad,), jnp.float32)])
            p = jnp.concatenate([p, jnp.zeros((pad,), jnp.float32)])
        R = Np // 128
        inp = jnp.stack([d, t, p], axis=0).reshape(3, R, 128)  # one DMA per step

        cost = pl.CostEstimate(
            flops=int(Np) * F * 8,
            transcendentals=int(Np) * (4 + (2 * n - 1) * k),
            bytes_accessed=int(Np) * 4 * (3 + F),
        )

        out3 = pl.pallas_call(
            kernel,
            out_shape=jax.ShapeDtypeStruct((F, R, 128), jnp.float32),
            grid_spec=pltpu.PrefetchScalarGridSpec(
                num_scalar_prefetch=0,
                grid=(R // rows_per_tile,),
                in_specs=[pl.BlockSpec((3, rows_per_tile, 128),
                                       lambda i: (0, i, 0))],
                out_specs=pl.BlockSpec((F, rows_per_tile, 128),
                                       lambda i: (0, i, 0)),
            ),
            compiler_params=pltpu.CompilerParams(
                dimension_semantics=("parallel",)),
            cost_estimate=cost,
        )(inp)

        # (F, R, 128) -> (Np, F) -> (N, F)   (layout plumbing left to XLA)
        out = out3.transpose(1, 2, 0).reshape(Np, F)
        return out[:N] if pad else out

    return forward, features


if __name__ == "__main__":
    num_radial, num_spherical, cutoff = 4, 3, 5.0
    N = 2048   # 2 grid steps of 1024 samples -> keeps both v7x TensorCores busy

    key = jax.random.PRNGKey(0)
    kd, kt, kp = jax.random.split(key, 3)
    # dist > 0 (the module itself divides by dist; dist = 0 is NaN in PyTorch too).
    dist = jax.random.uniform(kd, (N,), minval=0.1, maxval=cutoff, dtype=jnp.float32)
    theta = jax.random.uniform(kt, (N,), minval=0.0, maxval=math.pi, dtype=jnp.float32)
    phi = jax.random.uniform(kp, (N,), minval=-math.pi, maxval=math.pi, dtype=jnp.float32)

    fwd, features = make_torsion_emb(num_radial, num_spherical, cutoff)
    out = jax.block_until_ready(fwd(dist, theta, phi))
    F = num_spherical ** 2 * num_radial
    assert out.shape == (N, F)
    assert bool(jnp.all(jnp.isfinite(out)))

    # Plain-JAX reference of the same math validates the pallas tiling / ordering.
    ref = jax.block_until_ready(jnp.stack(features(dist, theta, phi), axis=1))
    assert bool(jnp.allclose(out, ref, rtol=1e-4, atol=1e-4)), \
        float(jnp.max(jnp.abs(out - ref)))

    # TODO(synk): for large num_spherical with dist << cutoff the fp32 upward Bessel
    # recurrence loses precision vs the sympy closed forms; fine for n=3, k=4.
    print("KERNEL_OK")
</pallas_src>

<mosaic_0001>
module attributes {stable_mosaic.version = 11 : i64} {
  func.func @kernel(%arg0: i32, %arg1: memref<3x8x128xf32, #tpu.memory_space<vmem>>, %arg2: memref<36x8x128xf32, #tpu.memory_space<vmem>>) attributes {dimension_semantics = [#tpu.dimension_semantics<parallel>], iteration_bounds = array<i64: 2>, scalar_prefetch = 0 : i64, scratch_operands = 0 : i64, tpu.core_type = #tpu.core_type<tc>, window_params = [{transform_indices = @transform_0, window_bounds = array<i64: 3, 8, 128>}, {transform_indices = @transform_1, window_bounds = array<i64: 36, 8, 128>}]} {
    %c0 = arith.constant 0 : index
    %c0_0 = arith.constant 0 : index
    %c0_1 = arith.constant 0 : index
    %0 = vector.load %arg1[%c0, %c0_0, %c0_1] : memref<3x8x128xf32, #tpu.memory_space<vmem>>, vector<1x8x128xf32>
    %1 = vector.shape_cast %0 : vector<1x8x128xf32> to vector<8x128xf32>
    %c1 = arith.constant 1 : index
    %c0_2 = arith.constant 0 : index
    %c0_3 = arith.constant 0 : index
    %2 = vector.load %arg1[%c1, %c0_2, %c0_3] : memref<3x8x128xf32, #tpu.memory_space<vmem>>, vector<1x8x128xf32>
    %3 = vector.shape_cast %2 : vector<1x8x128xf32> to vector<8x128xf32>
    %c2 = arith.constant 2 : index
    %c0_4 = arith.constant 0 : index
    %c0_5 = arith.constant 0 : index
    %4 = vector.load %arg1[%c2, %c0_4, %c0_5] : memref<3x8x128xf32, #tpu.memory_space<vmem>>, vector<1x8x128xf32>
    %5 = vector.shape_cast %4 : vector<1x8x128xf32> to vector<8x128xf32>
    %cst = arith.constant 2.000000e-01 : f32
    %6 = vector.broadcast %cst : f32 to vector<8x128xf32>
    %7 = arith.mulf %1, %6 : vector<8x128xf32>
    %cst_6 = arith.constant 1.000000e+00 : f32
    %8 = vector.broadcast %cst_6 : f32 to vector<8x128xf32>
    %9 = arith.divf %8, %7 : vector<8x128xf32>
    %10 = math.cos %3 : vector<8x128xf32>
    %11 = arith.mulf %10, %10 : vector<8x128xf32>
    %cst_7 = arith.constant 1.000000e+00 : f32
    %12 = vector.broadcast %cst_7 : f32 to vector<8x128xf32>
    %13 = arith.subf %12, %11 : vector<8x128xf32>
    %cst_8 = arith.constant 0.000000e+00 : f32
    %14 = vector.broadcast %cst_8 : f32 to vector<8x128xf32>
    %15 = arith.maximumf %13, %14 : vector<8x128xf32>
    %16 = math.sqrt %15 : vector<8x128xf32>
    %17 = math.cos %5 : vector<8x128xf32>
    %18 = math.sin %5 : vector<8x128xf32>
    %cst_9 = arith.constant 1.000000e+00 : f32
    %19 = vector.broadcast %cst_9 : f32 to vector<8x128xf32>
    %cst_10 = arith.constant 0.000000e+00 : f32
    %20 = vector.broadcast %cst_10 : f32 to vector<8x128xf32>
    %cst_11 = arith.constant 2.000000e+00 : f32
    %21 = vector.broadcast %cst_11 : f32 to vector<8x128xf32>
    %22 = arith.mulf %21, %17 : vector<8x128xf32>
    %23 = arith.mulf %22, %17 : vector<8x128xf32>
    %24 = arith.subf %23, %19 : vector<8x128xf32>
    %cst_12 = arith.constant 2.000000e+00 : f32
    %25 = vector.broadcast %cst_12 : f32 to vector<8x128xf32>
    %26 = arith.mulf %25, %17 : vector<8x128xf32>
    %27 = arith.mulf %26, %18 : vector<8x128xf32>
    %28 = arith.subf %27, %20 : vector<8x128xf32>
    %cst_13 = arith.constant 1.000000e+00 : f32
    %29 = vector.broadcast %cst_13 : f32 to vector<8x128xf32>
    %cst_14 = arith.constant -1.000000e+00 : f32
    %30 = vector.broadcast %cst_14 : f32 to vector<8x128xf32>
    %31 = arith.mulf %30, %16 : vector<8x128xf32>
    %32 = arith.mulf %31, %29 : vector<8x128xf32>
    %cst_15 = arith.constant -3.000000e+00 : f32
    %33 = vector.broadcast %cst_15 : f32 to vector<8x128xf32>
    %34 = arith.mulf %33, %16 : vector<8x128xf32>
    %35 = arith.mulf %34, %32 : vector<8x128xf32>
    %cst_16 = arith.constant 1.000000e+00 : f32
    %36 = vector.broadcast %cst_16 : f32 to vector<8x128xf32>
    %37 = arith.mulf %36, %10 : vector<8x128xf32>
    %38 = arith.mulf %37, %29 : vector<8x128xf32>
    %cst_17 = arith.constant 3.000000e+00 : f32
    %39 = vector.broadcast %cst_17 : f32 to vector<8x128xf32>
    %40 = arith.mulf %39, %10 : vector<8x128xf32>
    %41 = arith.mulf %40, %32 : vector<8x128xf32>
    %cst_18 = arith.constant 3.000000e+00 : f32
    %42 = vector.broadcast %cst_18 : f32 to vector<8x128xf32>
    %43 = arith.mulf %42, %10 : vector<8x128xf32>
    %44 = arith.mulf %43, %38 : vector<8x128xf32>
    %cst_19 = arith.constant 1.000000e+00 : f32
    %45 = vector.broadcast %cst_19 : f32 to vector<8x128xf32>
    %46 = arith.mulf %45, %29 : vector<8x128xf32>
    %47 = arith.subf %44, %46 : vector<8x128xf32>
    %cst_20 = arith.constant 5.000000e-01 : f32
    %48 = vector.broadcast %cst_20 : f32 to vector<8x128xf32>
    %49 = arith.mulf %47, %48 : vector<8x128xf32>
    %cst_21 = arith.constant 0.318309873 : f32
    %50 = vector.broadcast %cst_21 : f32 to vector<8x128xf32>
    %51 = arith.mulf %9, %50 : vector<8x128xf32>
    %cst_22 = arith.constant 3.14159274 : f32
    %52 = vector.broadcast %cst_22 : f32 to vector<8x128xf32>
    %53 = arith.mulf %7, %52 : vector<8x128xf32>
    %54 = math.sin %53 : vector<8x128xf32>
    %55 = arith.mulf %54, %51 : vector<8x128xf32>
    %cst_23 = arith.constant 4.44288301 : f32
    %56 = vector.broadcast %cst_23 : f32 to vector<8x128xf32>
    %57 = arith.mulf %56, %55 : vector<8x128xf32>
    %cst_24 = arith.constant 0.159154937 : f32
    %58 = vector.broadcast %cst_24 : f32 to vector<8x128xf32>
    %59 = arith.mulf %9, %58 : vector<8x128xf32>
    %cst_25 = arith.constant 6.28318548 : f32
    %60 = vector.broadcast %cst_25 : f32 to vector<8x128xf32>
    %61 = arith.mulf %7, %60 : vector<8x128xf32>
    %62 = math.sin %61 : vector<8x128xf32>
    %63 = arith.mulf %62, %59 : vector<8x128xf32>
    %cst_26 = arith.constant 8.88576602 : f32
    %64 = vector.broadcast %cst_26 : f32 to vector<8x128xf32>
    %65 = arith.mulf %64, %63 : vector<8x128xf32>
    %cst_27 = arith.constant 0.106103294 : f32
    %66 = vector.broadcast %cst_27 : f32 to vector<8x128xf32>
    %67 = arith.mulf %9, %66 : vector<8x128xf32>
    %cst_28 = arith.constant 9.42477798 : f32
    %68 = vector.broadcast %cst_28 : f32 to vector<8x128xf32>
    %69 = arith.mulf %7, %68 : vector<8x128xf32>
    %70 = math.sin %69 : vector<8x128xf32>
    %71 = arith.mulf %70, %67 : vector<8x128xf32>
    %cst_29 = arith.constant 13.3286486 : f32
    %72 = vector.broadcast %cst_29 : f32 to vector<8x128xf32>
    %73 = arith.mulf %72, %71 : vector<8x128xf32>
    %cst_30 = arith.constant 0.0795774683 : f32
    %74 = vector.broadcast %cst_30 : f32 to vector<8x128xf32>
    %75 = arith.mulf %9, %74 : vector<8x128xf32>
    %cst_31 = arith.constant 12.566371 : f32
    %76 = vector.broadcast %cst_31 : f32 to vector<8x128xf32>
    %77 = arith.mulf %7, %76 : vector<8x128xf32>
    %78 = math.sin %77 : vector<8x128xf32>
    %79 = arith.mulf %78, %75 : vector<8x128xf32>
    %cst_32 = arith.constant 17.7715321 : f32
    %80 = vector.broadcast %cst_32 : f32 to vector<8x128xf32>
    %81 = arith.mulf %80, %79 : vector<8x128xf32>
    %cst_33 = arith.constant 0.282094806 : f32
    %82 = vector.broadcast %cst_33 : f32 to vector<8x128xf32>
    %83 = arith.mulf %82, %29 : vector<8x128xf32>
    %84 = arith.mulf %83, %57 : vector<8x128xf32>
    %85 = arith.mulf %83, %65 : vector<8x128xf32>
    %86 = arith.mulf %83, %73 : vector<8x128xf32>
    %87 = arith.mulf %83, %81 : vector<8x128xf32>
    %cst_34 = arith.constant 0.222548157 : f32
    %88 = vector.broadcast %cst_34 : f32 to vector<8x128xf32>
    %89 = arith.mulf %9, %88 : vector<8x128xf32>
    %cst_35 = arith.constant 4.49340963 : f32
    %90 = vector.broadcast %cst_35 : f32 to vector<8x128xf32>
    %91 = arith.mulf %7, %90 : vector<8x128xf32>
    %92 = math.sin %91 : vector<8x128xf32>
    %93 = arith.mulf %92, %89 : vector<8x128xf32>
    %94 = math.cos %91 : vector<8x128xf32>
    %95 = arith.subf %93, %94 : vector<8x128xf32>
    %96 = arith.mulf %95, %89 : vector<8x128xf32>
    %cst_36 = arith.constant 6.51010417 : f32
    %97 = vector.broadcast %cst_36 : f32 to vector<8x128xf32>
    %98 = arith.mulf %97, %96 : vector<8x128xf32>
    %cst_37 = arith.constant 0.129445612 : f32
    %99 = vector.broadcast %cst_37 : f32 to vector<8x128xf32>
    %100 = arith.mulf %9, %99 : vector<8x128xf32>
    %cst_38 = arith.constant 7.72525167 : f32
    %101 = vector.broadcast %cst_38 : f32 to vector<8x128xf32>
    %102 = arith.mulf %7, %101 : vector<8x128xf32>
    %103 = math.sin %102 : vector<8x128xf32>
    %104 = arith.mulf %103, %100 : vector<8x128xf32>
    %105 = math.cos %102 : vector<8x128xf32>
    %106 = arith.subf %104, %105 : vector<8x128xf32>
    %107 = arith.mulf %106, %100 : vector<8x128xf32>
    %cst_39 = arith.constant 11.0163078 : f32
    %108 = vector.broadcast %cst_39 : f32 to vector<8x128xf32>
    %109 = arith.mulf %108, %107 : vector<8x128xf32>
    %cst_40 = arith.constant 0.091708444 : f32
    %110 = vector.broadcast %cst_40 : f32 to vector<8x128xf32>
    %111 = arith.mulf %9, %110 : vector<8x128xf32>
    %cst_41 = arith.constant 10.9041214 : f32
    %112 = vector.broadcast %cst_41 : f32 to vector<8x128xf32>
    %113 = arith.mulf %7, %112 : vector<8x128xf32>
    %114 = math.sin %113 : vector<8x128xf32>
    %115 = arith.mulf %114, %111 : vector<8x128xf32>
    %116 = math.cos %113 : vector<8x128xf32>
    %117 = arith.subf %115, %116 : vector<8x128xf32>
    %118 = arith.mulf %117, %111 : vector<8x128xf32>
    %cst_42 = arith.constant 15.4854689 : f32
    %119 = vector.broadcast %cst_42 : f32 to vector<8x128xf32>
    %120 = arith.mulf %119, %118 : vector<8x128xf32>
    %cst_43 = arith.constant 0.0710924342 : f32
    %121 = vector.broadcast %cst_43 : f32 to vector<8x128xf32>
    %122 = arith.mulf %9, %121 : vector<8x128xf32>
    %cst_44 = arith.constant 14.0661936 : f32
    %123 = vector.broadcast %cst_44 : f32 to vector<8x128xf32>
    %124 = arith.mulf %7, %123 : vector<8x128xf32>
    %125 = math.sin %124 : vector<8x128xf32>
    %126 = arith.mulf %125, %122 : vector<8x128xf32>
    %127 = math.cos %124 : vector<8x128xf32>
    %128 = arith.subf %126, %127 : vector<8x128xf32>
    %129 = arith.mulf %128, %122 : vector<8x128xf32>
    %cst_45 = arith.constant 19.9428082 : f32
    %130 = vector.broadcast %cst_45 : f32 to vector<8x128xf32>
    %131 = arith.mulf %130, %129 : vector<8x128xf32>
    %cst_46 = arith.constant 0.488602519 : f32
    %132 = vector.broadcast %cst_46 : f32 to vector<8x128xf32>
    %133 = arith.mulf %132, %38 : vector<8x128xf32>
    %cst_47 = arith.constant -0.488602519 : f32
    %134 = vector.broadcast %cst_47 : f32 to vector<8x128xf32>
    %135 = arith.mulf %134, %32 : vector<8x128xf32>
    %136 = arith.mulf %135, %17 : vector<8x128xf32>
    %cst_48 = arith.constant -0.488602519 : f32
    %137 = vector.broadcast %cst_48 : f32 to vector<8x128xf32>
    %138 = arith.mulf %137, %32 : vector<8x128xf32>
    %139 = arith.mulf %138, %18 : vector<8x128xf32>
    %140 = arith.mulf %133, %98 : vector<8x128xf32>
    %141 = arith.mulf %133, %109 : vector<8x128xf32>
    %142 = arith.mulf %133, %120 : vector<8x128xf32>
    %143 = arith.mulf %133, %131 : vector<8x128xf32>
    %144 = arith.mulf %136, %98 : vector<8x128xf32>
    %145 = arith.mulf %136, %109 : vector<8x128xf32>
    %146 = arith.mulf %136, %120 : vector<8x128xf32>
    %147 = arith.mulf %136, %131 : vector<8x128xf32>
    %148 = arith.mulf %139, %98 : vector<8x128xf32>
    %149 = arith.mulf %139, %109 : vector<8x128xf32>
    %150 = arith.mulf %139, %120 : vector<8x128xf32>
    %151 = arith.mulf %139, %131 : vector<8x128xf32>
    %cst_49 = arith.constant 0.173506916 : f32
    %152 = vector.broadcast %cst_49 : f32 to vector<8x128xf32>
    %153 = arith.mulf %9, %152 : vector<8x128xf32>
    %cst_50 = arith.constant 5.76345921 : f32
    %154 = vector.broadcast %cst_50 : f32 to vector<8x128xf32>
    %155 = arith.mulf %7, %154 : vector<8x128xf32>
    %156 = math.sin %155 : vector<8x128xf32>
    %157 = arith.mulf %156, %153 : vector<8x128xf32>
    %158 = math.cos %155 : vector<8x128xf32>
    %159 = arith.subf %157, %158 : vector<8x128xf32>
    %160 = arith.mulf %159, %153 : vector<8x128xf32>
    %cst_51 = arith.constant 3.000000e+00 : f32
    %161 = vector.broadcast %cst_51 : f32 to vector<8x128xf32>
    %162 = arith.mulf %161, %153 : vector<8x128xf32>
    %163 = arith.mulf %162, %160 : vector<8x128xf32>
    %164 = arith.subf %163, %157 : vector<8x128xf32>
    %cst_52 = arith.constant 8.5426464 : f32
    %165 = vector.broadcast %cst_52 : f32 to vector<8x128xf32>
    %166 = arith.mulf %165, %164 : vector<8x128xf32>
    %cst_53 = arith.constant 0.109950386 : f32
    %167 = vector.broadcast %cst_53 : f32 to vector<8x128xf32>
    %168 = arith.mulf %9, %167 : vector<8x128xf32>
    %cst_54 = arith.constant 9.09501171 : f32
    %169 = vector.broadcast %cst_54 : f32 to vector<8x128xf32>
    %170 = arith.mulf %7, %169 : vector<8x128xf32>
    %171 = math.sin %170 : vector<8x128xf32>
    %172 = arith.mulf %171, %168 : vector<8x128xf32>
    %173 = math.cos %170 : vector<8x128xf32>
    %174 = arith.subf %172, %173 : vector<8x128xf32>
    %175 = arith.mulf %174, %168 : vector<8x128xf32>
    %cst_55 = arith.constant 3.000000e+00 : f32
    %176 = vector.broadcast %cst_55 : f32 to vector<8x128xf32>
    %177 = arith.mulf %176, %168 : vector<8x128xf32>
    %178 = arith.mulf %177, %175 : vector<8x128xf32>
    %179 = arith.subf %178, %172 : vector<8x128xf32>
    %cst_56 = arith.constant 13.101758 : f32
    %180 = vector.broadcast %cst_56 : f32 to vector<8x128xf32>
    %181 = arith.mulf %180, %179 : vector<8x128xf32>
    %cst_57 = arith.constant 0.0811494589 : f32
    %182 = vector.broadcast %cst_57 : f32 to vector<8x128xf32>
    %183 = arith.mulf %9, %182 : vector<8x128xf32>
    %cst_58 = arith.constant 12.3229408 : f32
    %184 = vector.broadcast %cst_58 : f32 to vector<8x128xf32>
    %185 = arith.mulf %7, %184 : vector<8x128xf32>
    %186 = math.sin %185 : vector<8x128xf32>
    %187 = arith.mulf %186, %183 : vector<8x128xf32>
    %188 = math.cos %185 : vector<8x128xf32>
    %189 = arith.subf %187, %188 : vector<8x128xf32>
    %190 = arith.mulf %189, %183 : vector<8x128xf32>
    %cst_59 = arith.constant 3.000000e+00 : f32
    %191 = vector.broadcast %cst_59 : f32 to vector<8x128xf32>
    %192 = arith.mulf %191, %183 : vector<8x128xf32>
    %193 = arith.mulf %192, %190 : vector<8x128xf32>
    %194 = arith.subf %193, %187 : vector<8x128xf32>
    %cst_60 = arith.constant 17.6019402 : f32
    %195 = vector.broadcast %cst_60 : f32 to vector<8x128xf32>
    %196 = arith.mulf %195, %194 : vector<8x128xf32>
    %cst_61 = arith.constant 0.0644554049 : f32
    %197 = vector.broadcast %cst_61 : f32 to vector<8x128xf32>
    %198 = arith.mulf %9, %197 : vector<8x128xf32>
    %cst_62 = arith.constant 15.5146027 : f32
    %199 = vector.broadcast %cst_62 : f32 to vector<8x128xf32>
    %200 = arith.mulf %7, %199 : vector<8x128xf32>
    %201 = math.sin %200 : vector<8x128xf32>
    %202 = arith.mulf %201, %198 : vector<8x128xf32>
    %203 = math.cos %200 : vector<8x128xf32>
    %204 = arith.subf %202, %203 : vector<8x128xf32>
    %205 = arith.mulf %204, %198 : vector<8x128xf32>
    %cst_63 = arith.constant 3.000000e+00 : f32
    %206 = vector.broadcast %cst_63 : f32 to vector<8x128xf32>
    %207 = arith.mulf %206, %198 : vector<8x128xf32>
    %208 = arith.mulf %207, %205 : vector<8x128xf32>
    %209 = arith.subf %208, %202 : vector<8x128xf32>
    %cst_64 = arith.constant 22.0789623 : f32
    %210 = vector.broadcast %cst_64 : f32 to vector<8x128xf32>
    %211 = arith.mulf %210, %209 : vector<8x128xf32>
    %cst_65 = arith.constant 0.63078314 : f32
    %212 = vector.broadcast %cst_65 : f32 to vector<8x128xf32>
    %213 = arith.mulf %212, %49 : vector<8x128xf32>
    %cst_66 = arith.constant -0.3641828 : f32
    %214 = vector.broadcast %cst_66 : f32 to vector<8x128xf32>
    %215 = arith.mulf %214, %41 : vector<8x128xf32>
    %216 = arith.mulf %215, %17 : vector<8x128xf32>
    %cst_67 = arith.constant 0.1820914 : f32
    %217 = vector.broadcast %cst_67 : f32 to vector<8x128xf32>
    %218 = arith.mulf %217, %35 : vector<8x128xf32>
    %219 = arith.mulf %218, %24 : vector<8x128xf32>
    %cst_68 = arith.constant 0.1820914 : f32
    %220 = vector.broadcast %cst_68 : f32 to vector<8x128xf32>
    %221 = arith.mulf %220, %35 : vector<8x128xf32>
    %222 = arith.mulf %221, %28 : vector<8x128xf32>
    %cst_69 = arith.constant -0.3641828 : f32
    %223 = vector.broadcast %cst_69 : f32 to vector<8x128xf32>
    %224 = arith.mulf %223, %41 : vector<8x128xf32>
    %225 = arith.mulf %224, %18 : vector<8x128xf32>
    %226 = arith.mulf %213, %166 : vector<8x128xf32>
    %227 = arith.mulf %213, %181 : vector<8x128xf32>
    %228 = arith.mulf %213, %196 : vector<8x128xf32>
    %229 = arith.mulf %213, %211 : vector<8x128xf32>
    %230 = arith.mulf %216, %166 : vector<8x128xf32>
    %231 = arith.mulf %216, %181 : vector<8x128xf32>
    %232 = arith.mulf %216, %196 : vector<8x128xf32>
    %233 = arith.mulf %216, %211 : vector<8x128xf32>
    %234 = arith.mulf %219, %166 : vector<8x128xf32>
    %235 = arith.mulf %219, %181 : vector<8x128xf32>
    %236 = arith.mulf %219, %196 : vector<8x128xf32>
    %237 = arith.mulf %219, %211 : vector<8x128xf32>
    %238 = arith.mulf %222, %166 : vector<8x128xf32>
    %239 = arith.mulf %222, %181 : vector<8x128xf32>
    %240 = arith.mulf %222, %196 : vector<8x128xf32>
    %241 = arith.mulf %222, %211 : vector<8x128xf32>
    %242 = arith.mulf %225, %166 : vector<8x128xf32>
    %243 = arith.mulf %225, %181 : vector<8x128xf32>
    %244 = arith.mulf %225, %196 : vector<8x128xf32>
    %245 = arith.mulf %225, %211 : vector<8x128xf32>
    %c0_70 = arith.constant 0 : index
    %c0_71 = arith.constant 0 : index
    %c0_72 = arith.constant 0 : index
    %246 = vector.load %arg2[%c0_70, %c0_71, %c0_72] : memref<36x8x128xf32, #tpu.memory_space<vmem>>, vector<1x8x128xf32>
    %247 = vector.shape_cast %246 : vector<1x8x128xf32> to vector<8x128xf32>
    %248 = vector.shape_cast %84 : vector<8x128xf32> to vector<1x8x128xf32>
    tpu.vector_store %arg2[%c0_70, %c0_71, %c0_72], %248 {strides = array<i32>} : memref<36x8x128xf32, #tpu.memory_space<vmem>>, vector<1x8x128xf32>,
    %c1_73 = arith.constant 1 : index
    %c0_74 = arith.constant 0 : index
    %c0_75 = arith.constant 0 : index
    %249 = vector.load %arg2[%c1_73, %c0_74, %c0_75] : memref<36x8x128xf32, #tpu.memory_space<vmem>>, vector<1x8x128xf32>
    %250 = vector.shape_cast %249 : vector<1x8x128xf32> to vector<8x128xf32>
    %251 = vector.shape_cast %85 : vector<8x128xf32> to vector<1x8x128xf32>
    tpu.vector_store %arg2[%c1_73, %c0_74, %c0_75], %251 {strides = array<i32>} : memref<36x8x128xf32, #tpu.memory_space<vmem>>, vector<1x8x128xf32>,
    %c2_76 = arith.constant 2 : index
    %c0_77 = arith.constant 0 : index
    %c0_78 = arith.constant 0 : index
    %252 = vector.load %arg2[%c2_76, %c0_77, %c0_78] : memref<36x8x128xf32, #tpu.memory_space<vmem>>, vector<1x8x128xf32>
    %253 = vector.shape_cast %252 : vector<1x8x128xf32> to vector<8x128xf32>
    %254 = vector.shape_cast %86 : vector<8x128xf32> to vector<1x8x128xf32>
    tpu.vector_store %arg2[%c2_76, %c0_77, %c0_78], %254 {strides = array<i32>} : memref<36x8x128xf32, #tpu.memory_space<vmem>>, vector<1x8x128xf32>,
    %c3 = arith.constant 3 : index
    %c0_79 = arith.constant 0 : index
    %c0_80 = arith.constant 0 : index
    %255 = vector.load %arg2[%c3, %c0_79, %c0_80] : memref<36x8x128xf32, #tpu.memory_space<vmem>>, vector<1x8x128xf32>
    %256 = vector.shape_cast %255 : vector<1x8x128xf32> to vector<8x128xf32>
    %257 = vector.shape_cast %87 : vector<8x128xf32> to vector<1x8x128xf32>
    tpu.vector_store %arg2[%c3, %c0_79, %c0_80], %257 {strides = array<i32>} : memref<36x8x128xf32, #tpu.memory_space<vmem>>, vector<1x8x128xf32>,
    %c4 = arith.constant 4 : index
    %c0_81 = arith.constant 0 : index
    %c0_82 = arith.constant 0 : index
    %258 = vector.load %arg2[%c4, %c0_81, %c0_82] : memref<36x8x128xf32, #tpu.memory_space<vmem>>, vector<1x8x128xf32>
    %259 = vector.shape_cast %258 : vector<1x8x128xf32> to vector<8x128xf32>
    %260 = vector.shape_cast %140 : vector<8x128xf32> to vector<1x8x128xf32>
    tpu.vector_store %arg2[%c4, %c0_81, %c0_82], %260 {strides = array<i32>} : memref<36x8x128xf32, #tpu.memory_space<vmem>>, vector<1x8x128xf32>,
    %c5 = arith.constant 5 : index
    %c0_83 = arith.constant 0 : index
    %c0_84 = arith.constant 0 : index
    %261 = vector.load %arg2[%c5, %c0_83, %c0_84] : memref<36x8x128xf32, #tpu.memory_space<vmem>>, vector<1x8x128xf32>
    %262 = vector.shape_cast %261 : vector<1x8x128xf32> to vector<8x128xf32>
    %263 = vector.shape_cast %141 : vector<8x128xf32> to vector<1x8x128xf32>
    tpu.vector_store %arg2[%c5, %c0_83, %c0_84], %263 {strides = array<i32>} : memref<36x8x128xf32, #tpu.memory_space<vmem>>, vector<1x8x128xf32>,
    %c6 = arith.constant 6 : index
    %c0_85 = arith.constant 0 : index
    %c0_86 = arith.constant 0 : index
    %264 = vector.load %arg2[%c6, %c0_85, %c0_86] : memref<36x8x128xf32, #tpu.memory_space<vmem>>, vector<1x8x128xf32>
    %265 = vector.shape_cast %264 : vector<1x8x128xf32> to vector<8x128xf32>
    %266 = vector.shape_cast %142 : vector<8x128xf32> to vector<1x8x128xf32>
    tpu.vector_store %arg2[%c6, %c0_85, %c0_86], %266 {strides = array<i32>} : memref<36x8x128xf32, #tpu.memory_space<vmem>>, vector<1x8x128xf32>,
    %c7 = arith.constant 7 : index
    %c0_87 = arith.constant 0 : index
    %c0_88 = arith.constant 0 : index
    %267 = vector.load %arg2[%c7, %c0_87, %c0_88] : memref<36x8x128xf32, #tpu.memory_space<vmem>>, vector<1x8x128xf32>
    %268 = vector.shape_cast %267 : vector<1x8x128xf32> to vector<8x128xf32>
    %269 = vector.shape_cast %143 : vector<8x128xf32> to vector<1x8x128xf32>
    tpu.vector_store %arg2[%c7, %c0_87, %c0_88], %269 {strides = array<i32>} : memref<36x8x128xf32, #tpu.memory_space<vmem>>, vector<1x8x128xf32>,
    %c8 = arith.constant 8 : index
    %c0_89 = arith.constant 0 : index
    %c0_90 = arith.constant 0 : index
    %270 = vector.load %arg2[%c8, %c0_89, %c0_90] : memref<36x8x128xf32, #tpu.memory_space<vmem>>, vector<1x8x128xf32>
    %271 = vector.shape_cast %270 : vector<1x8x128xf32> to vector<8x128xf32>
    %272 = vector.shape_cast %144 : vector<8x128xf32> to vector<1x8x128xf32>
    tpu.vector_store %arg2[%c8, %c0_89, %c0_90], %272 {strides = array<i32>} : memref<36x8x128xf32, #tpu.memory_space<vmem>>, vector<1x8x128xf32>,
    %c9 = arith.constant 9 : index
    %c0_91 = arith.constant 0 : index
    %c0_92 = arith.constant 0 : index
    %273 = vector.load %arg2[%c9, %c0_91, %c0_92] : memref<36x8x128xf32, #tpu.memory_space<vmem>>, vector<1x8x128xf32>
    %274 = vector.shape_cast %273 : vector<1x8x128xf32> to vector<8x128xf32>
    %275 = vector.shape_cast %145 : vector<8x128xf32> to vector<1x8x128xf32>
    tpu.vector_store %arg2[%c9, %c0_91, %c0_92], %275 {strides = array<i32>} : memref<36x8x128xf32, #tpu.memory_space<vmem>>, vector<1x8x128xf32>,
    %c10 = arith.constant 10 : index
    %c0_93 = arith.constant 0 : index
    %c0_94 = arith.constant 0 : index
    %276 = vector.load %arg2[%c10, %c0_93, %c0_94] : memref<36x8x128xf32, #tpu.memory_space<vmem>>, vector<1x8x128xf32>
    %277 = vector.shape_cast %276 : vector<1x8x128xf32> to vector<8x128xf32>
    %278 = vector.shape_cast %146 : vector<8x128xf32> to vector<1x8x128xf32>
    tpu.vector_store %arg2[%c10, %c0_93, %c0_94], %278 {strides = array<i32>} : memref<36x8x128xf32, #tpu.memory_space<vmem>>, vector<1x8x128xf32>,
    %c11 = arith.constant 11 : index
    %c0_95 = arith.constant 0 : index
    %c0_96 = arith.constant 0 : index
    %279 = vector.load %arg2[%c11, %c0_95, %c0_96] : memref<36x8x128xf32, #tpu.memory_space<vmem>>, vector<1x8x128xf32>
    %280 = vector.shape_cast %279 : vector<1x8x128xf32> to vector<8x128xf32>
    %281 = vector.shape_cast %147 : vector<8x128xf32> to vector<1x8x128xf32>
    tpu.vector_store %arg2[%c11, %c0_95, %c0_96], %281 {strides = array<i32>} : memref<36x8x128xf32, #tpu.memory_space<vmem>>, vector<1x8x128xf32>,
    %c12 = arith.constant 12 : index
    %c0_97 = arith.constant 0 : index
    %c0_98 = arith.constant 0 : index
    %282 = vector.load %arg2[%c12, %c0_97, %c0_98] : memref<36x8x128xf32, #tpu.memory_space<vmem>>, vector<1x8x128xf32>
    %283 = vector.shape_cast %282 : vector<1x8x128xf32> to vector<8x128xf32>
    %284 = vector.shape_cast %148 : vector<8x128xf32> to vector<1x8x128xf32>
    tpu.vector_store %arg2[%c12, %c0_97, %c0_98], %284 {strides = array<i32>} : memref<36x8x128xf32, #tpu.memory_space<vmem>>, vector<1x8x128xf32>,
    %c13 = arith.constant 13 : index
    %c0_99 = arith.constant 0 : index
    %c0_100 = arith.constant 0 : index
    %285 = vector.load %arg2[%c13, %c0_99, %c0_100] : memref<36x8x128xf32, #tpu.memory_space<vmem>>, vector<1x8x128xf32>
    %286 = vector.shape_cast %285 : vector<1x8x128xf32> to vector<8x128xf32>
    %287 = vector.shape_cast %149 : vector<8x128xf32> to vector<1x8x128xf32>
    tpu.vector_store %arg2[%c13, %c0_99, %c0_100], %287 {strides = array<i32>} : memref<36x8x128xf32, #tpu.memory_space<vmem>>, vector<1x8x128xf32>,
    %c14 = arith.constant 14 : index
    %c0_101 = arith.constant 0 : index
    %c0_102 = arith.constant 0 : index
    %288 = vector.load %arg2[%c14, %c0_101, %c0_102] : memref<36x8x128xf32, #tpu.memory_space<vmem>>, vector<1x8x128xf32>
    %289 = vector.shape_cast %288 : vector<1x8x128xf32> to vector<8x128xf32>
    %290 = vector.shape_cast %150 : vector<8x128xf32> to vector<1x8x128xf32>
    tpu.vector_store %arg2[%c14, %c0_101, %c0_102], %290 {strides = array<i32>} : memref<36x8x128xf32, #tpu.memory_space<vmem>>, vector<1x8x128xf32>,
    %c15 = arith.constant 15 : index
    %c0_103 = arith.constant 0 : index
    %c0_104 = arith.constant 0 : index
    %291 = vector.load %arg2[%c15, %c0_103, %c0_104] : memref<36x8x128xf32, #tpu.memory_space<vmem>>, vector<1x8x128xf32>
    %292 = vector.shape_cast %291 : vector<1x8x128xf32> to vector<8x128xf32>
    %293 = vector.shape_cast %151 : vector<8x128xf32> to vector<1x8x128xf32>
    tpu.vector_store %arg2[%c15, %c0_103, %c0_104], %293 {strides = array<i32>} : memref<36x8x128xf32, #tpu.memory_space<vmem>>, vector<1x8x128xf32>,
    %c16 = arith.constant 16 : index
    %c0_105 = arith.constant 0 : index
    %c0_106 = arith.constant 0 : index
    %294 = vector.load %arg2[%c16, %c0_105, %c0_106] : memref<36x8x128xf32, #tpu.memory_space<vmem>>, vector<1x8x128xf32>
    %295 = vector.shape_cast %294 : vector<1x8x128xf32> to vector<8x128xf32>
    %296 = vector.shape_cast %226 : vector<8x128xf32> to vector<1x8x128xf32>
    tpu.vector_store %arg2[%c16, %c0_105, %c0_106], %296 {strides = array<i32>} : memref<36x8x128xf32, #tpu.memory_space<vmem>>, vector<1x8x128xf32>,
    %c17 = arith.constant 17 : index
    %c0_107 = arith.constant 0 : index
    %c0_108 = arith.constant 0 : index
    %297 = vector.load %arg2[%c17, %c0_107, %c0_108] : memref<36x8x128xf32, #tpu.memory_space<vmem>>, vector<1x8x128xf32>
    %298 = vector.shape_cast %297 : vector<1x8x128xf32> to vector<8x128xf32>
    %299 = vector.shape_cast %227 : vector<8x128xf32> to vector<1x8x128xf32>
    tpu.vector_store %arg2[%c17, %c0_107, %c0_108], %299 {strides = array<i32>} : memref<36x8x128xf32, #tpu.memory_space<vmem>>, vector<1x8x128xf32>,
    %c18 = arith.constant 18 : index
    %c0_109 = arith.constant 0 : index
    %c0_110 = arith.constant 0 : index
    %300 = vector.load %arg2[%c18, %c0_109, %c0_110] : memref<36x8x128xf32, #tpu.memory_space<vmem>>, vector<1x8x128xf32>
    %301 = vector.shape_cast %300 : vector<1x8x128xf32> to vector<8x128xf32>
    %302 = vector.shape_cast %228 : vector<8x128xf32> to vector<1x8x128xf32>
    tpu.vector_store %arg2[%c18, %c0_109, %c0_110], %302 {strides = array<i32>} : memref<36x8x128xf32, #tpu.memory_space<vmem>>, vector<1x8x128xf32>,
    %c19 = arith.constant 19 : index
    %c0_111 = arith.constant 0 : index
    %c0_112 = arith.constant 0 : index
    %303 = vector.load %arg2[%c19, %c0_111, %c0_112] : memref<36x8x128xf32, #tpu.memory_space<vmem>>, vector<1x8x128xf32>
    %304 = vector.shape_cast %303 : vector<1x8x128xf32> to vector<8x128xf32>
    %305 = vector.shape_cast %229 : vector<8x128xf32> to vector<1x8x128xf32>
    tpu.vector_store %arg2[%c19, %c0_111, %c0_112], %305 {strides = array<i32>} : memref<36x8x128xf32, #tpu.memory_space<vmem>>, vector<1x8x128xf32>,
    %c20 = arith.constant 20 : index
    %c0_113 = arith.constant 0 : index
    %c0_114 = arith.constant 0 : index
    %306 = vector.load %arg2[%c20, %c0_113, %c0_114] : memref<36x8x128xf32, #tpu.memory_space<vmem>>, vector<1x8x128xf32>
    %307 = vector.shape_cast %306 : vector<1x8x128xf32> to vector<8x128xf32>
    %308 = vector.shape_cast %230 : vector<8x128xf32> to vector<1x8x128xf32>
    tpu.vector_store %arg2[%c20, %c0_113, %c0_114], %308 {strides = array<i32>} : memref<36x8x128xf32, #tpu.memory_space<vmem>>, vector<1x8x128xf32>,
    %c21 = arith.constant 21 : index
    %c0_115 = arith.constant 0 : index
    %c0_116 = arith.constant 0 : index
    %309 = vector.load %arg2[%c21, %c0_115, %c0_116] : memref<36x8x128xf32, #tpu.memory_space<vmem>>, vector<1x8x128xf32>
    %310 = vector.shape_cast %309 : vector<1x8x128xf32> to vector<8x128xf32>
    %311 = vector.shape_cast %231 : vector<8x128xf32> to vector<1x8x128xf32>
    tpu.vector_store %arg2[%c21, %c0_115, %c0_116], %311 {strides = array<i32>} : memref<36x8x128xf32, #tpu.memory_space<vmem>>, vector<1x8x128xf32>,
    %c22 = arith.constant 22 : index
    %c0_117 = arith.constant 0 : index
    %c0_118 = arith.constant 0 : index
    %312 = vector.load %arg2[%c22, %c0_117, %c0_118] : memref<36x8x128xf32, #tpu.memory_space<vmem>>, vector<1x8x128xf32>
    %313 = vector.shape_cast %312 : vector<1x8x128xf32> to vector<8x128xf32>
    %314 = vector.shape_cast %232 : vector<8x128xf32> to vector<1x8x128xf32>
    tpu.vector_store %arg2[%c22, %c0_117, %c0_118], %314 {strides = array<i32>} : memref<36x8x128xf32, #tpu.memory_space<vmem>>, vector<1x8x128xf32>,
    %c23 = arith.constant 23 : index
    %c0_119 = arith.constant 0 : index
    %c0_120 = arith.constant 0 : index
    %315 = vector.load %arg2[%c23, %c0_119, %c0_120] : memref<36x8x128xf32, #tpu.memory_space<vmem>>, vector<1x8x128xf32>
    %316 = vector.shape_cast %315 : vector<1x8x128xf32> to vector<8x128xf32>
    %317 = vector.shape_cast %233 : vector<8x128xf32> to vector<1x8x128xf32>
    tpu.vector_store %arg2[%c23, %c0_119, %c0_120], %317 {strides = array<i32>} : memref<36x8x128xf32, #tpu.memory_space<vmem>>, vector<1x8x128xf32>,
    %c24 = arith.constant 24 : index
    %c0_121 = arith.constant 0 : index
    %c0_122 = arith.constant 0 : index
    %318 = vector.load %arg2[%c24, %c0_121, %c0_122] : memref<36x8x128xf32, #tpu.memory_space<vmem>>, vector<1x8x128xf32>
    %319 = vector.shape_cast %318 : vector<1x8x128xf32> to vector<8x128xf32>
    %320 = vector.shape_cast %234 : vector<8x128xf32> to vector<1x8x128xf32>
    tpu.vector_store %arg2[%c24, %c0_121, %c0_122], %320 {strides = array<i32>} : memref<36x8x128xf32, #tpu.memory_space<vmem>>, vector<1x8x128xf32>,
    %c25 = arith.constant 25 : index
    %c0_123 = arith.constant 0 : index
    %c0_124 = arith.constant 0 : index
    %321 = vector.load %arg2[%c25, %c0_123, %c0_124] : memref<36x8x128xf32, #tpu.memory_space<vmem>>, vector<1x8x128xf32>
    %322 = vector.shape_cast %321 : vector<1x8x128xf32> to vector<8x128xf32>
    %323 = vector.shape_cast %235 : vector<8x128xf32> to vector<1x8x128xf32>
    tpu.vector_store %arg2[%c25, %c0_123, %c0_124], %323 {strides = array<i32>} : memref<36x8x128xf32, #tpu.memory_space<vmem>>, vector<1x8x128xf32>,
    %c26 = arith.constant 26 : index
    %c0_125 = arith.constant 0 : index
    %c0_126 = arith.constant 0 : index
    %324 = vector.load %arg2[%c26, %c0_125, %c0_126] : memref<36x8x128xf32, #tpu.memory_space<vmem>>, vector<1x8x128xf32>
    %325 = vector.shape_cast %324 : vector<1x8x128xf32> to vector<8x128xf32>
    %326 = vector.shape_cast %236 : vector<8x128xf32> to vector<1x8x128xf32>
    tpu.vector_store %arg2[%c26, %c0_125, %c0_126], %326 {strides = array<i32>} : memref<36x8x128xf32, #tpu.memory_space<vmem>>, vector<1x8x128xf32>,
    %c27 = arith.constant 27 : index
    %c0_127 = arith.constant 0 : index
    %c0_128 = arith.constant 0 : index
    %327 = vector.load %arg2[%c27, %c0_127, %c0_128] : memref<36x8x128xf32, #tpu.memory_space<vmem>>, vector<1x8x128xf32>
    %328 = vector.shape_cast %327 : vector<1x8x128xf32> to vector<8x128xf32>
    %329 = vector.shape_cast %237 : vector<8x128xf32> to vector<1x8x128xf32>
    tpu.vector_store %arg2[%c27, %c0_127, %c0_128], %329 {strides = array<i32>} : memref<36x8x128xf32, #tpu.memory_space<vmem>>, vector<1x8x128xf32>,
    %c28 = arith.constant 28 : index
    %c0_129 = arith.constant 0 : index
    %c0_130 = arith.constant 0 : index
    %330 = vector.load %arg2[%c28, %c0_129, %c0_130] : memref<36x8x128xf32, #tpu.memory_space<vmem>>, vector<1x8x128xf32>
    %331 = vector.shape_cast %330 : vector<1x8x128xf32> to vector<8x128xf32>
    %332 = vector.shape_cast %238 : vector<8x128xf32> to vector<1x8x128xf32>
    tpu.vector_store %arg2[%c28, %c0_129, %c0_130], %332 {strides = array<i32>} : memref<36x8x128xf32, #tpu.memory_space<vmem>>, vector<1x8x128xf32>,
    %c29 = arith.constant 29 : index
    %c0_131 = arith.constant 0 : index
    %c0_132 = arith.constant 0 : index
    %333 = vector.load %arg2[%c29, %c0_131, %c0_132] : memref<36x8x128xf32, #tpu.memory_space<vmem>>, vector<1x8x128xf32>
    %334 = vector.shape_cast %333 : vector<1x8x128xf32> to vector<8x128xf32>
    %335 = vector.shape_cast %239 : vector<8x128xf32> to vector<1x8x128xf32>
    tpu.vector_store %arg2[%c29, %c0_131, %c0_132], %335 {strides = array<i32>} : memref<36x8x128xf32, #tpu.memory_space<vmem>>, vector<1x8x128xf32>,
    %c30 = arith.constant 30 : index
    %c0_133 = arith.constant 0 : index
    %c0_134 = arith.constant 0 : index
    %336 = vector.load %arg2[%c30, %c0_133, %c0_134] : memref<36x8x128xf32, #tpu.memory_space<vmem>>, vector<1x8x128xf32>
    %337 = vector.shape_cast %336 : vector<1x8x128xf32> to vector<8x128xf32>
    %338 = vector.shape_cast %240 : vector<8x128xf32> to vector<1x8x128xf32>
    tpu.vector_store %arg2[%c30, %c0_133, %c0_134], %338 {strides = array<i32>} : memref<36x8x128xf32, #tpu.memory_space<vmem>>, vector<1x8x128xf32>,
    %c31 = arith.constant 31 : index
    %c0_135 = arith.constant 0 : index
    %c0_136 = arith.constant 0 : index
    %339 = vector.load %arg2[%c31, %c0_135, %c0_136] : memref<36x8x128xf32, #tpu.memory_space<vmem>>, vector<1x8x128xf32>
    %340 = vector.shape_cast %339 : vector<1x8x128xf32> to vector<8x128xf32>
    %341 = vector.shape_cast %241 : vector<8x128xf32> to vector<1x8x128xf32>
    tpu.vector_store %arg2[%c31, %c0_135, %c0_136], %341 {strides = array<i32>} : memref<36x8x128xf32, #tpu.memory_space<vmem>>, vector<1x8x128xf32>,
    %c32 = arith.constant 32 : index
    %c0_137 = arith.constant 0 : index
    %c0_138 = arith.constant 0 : index
    %342 = vector.load %arg2[%c32, %c0_137, %c0_138] : memref<36x8x128xf32, #tpu.memory_space<vmem>>, vector<1x8x128xf32>
    %343 = vector.shape_cast %342 : vector<1x8x128xf32> to vector<8x128xf32>
    %344 = vector.shape_cast %242 : vector<8x128xf32> to vector<1x8x128xf32>
    tpu.vector_store %arg2[%c32, %c0_137, %c0_138], %344 {strides = array<i32>} : memref<36x8x128xf32, #tpu.memory_space<vmem>>, vector<1x8x128xf32>,
    %c33 = arith.constant 33 : index
    %c0_139 = arith.constant 0 : index
    %c0_140 = arith.constant 0 : index
    %345 = vector.load %arg2[%c33, %c0_139, %c0_140] : memref<36x8x128xf32, #tpu.memory_space<vmem>>, vector<1x8x128xf32>
    %346 = vector.shape_cast %345 : vector<1x8x128xf32> to vector<8x128xf32>
    %347 = vector.shape_cast %243 : vector<8x128xf32> to vector<1x8x128xf32>
    tpu.vector_store %arg2[%c33, %c0_139, %c0_140], %347 {strides = array<i32>} : memref<36x8x128xf32, #tpu.memory_space<vmem>>, vector<1x8x128xf32>,
    %c34 = arith.constant 34 : index
    %c0_141 = arith.constant 0 : index
    %c0_142 = arith.constant 0 : index
    %348 = vector.load %arg2[%c34, %c0_141, %c0_142] : memref<36x8x128xf32, #tpu.memory_space<vmem>>, vector<1x8x128xf32>
    %349 = vector.shape_cast %348 : vector<1x8x128xf32> to vector<8x128xf32>
    %350 = vector.shape_cast %244 : vector<8x128xf32> to vector<1x8x128xf32>
    tpu.vector_store %arg2[%c34, %c0_141, %c0_142], %350 {strides = array<i32>} : memref<36x8x128xf32, #tpu.memory_space<vmem>>, vector<1x8x128xf32>,
    %c35 = arith.constant 35 : index
    %c0_143 = arith.constant 0 : index
    %c0_144 = arith.constant 0 : index
    %351 = vector.load %arg2[%c35, %c0_143, %c0_144] : memref<36x8x128xf32, #tpu.memory_space<vmem>>, vector<1x8x128xf32>
    %352 = vector.shape_cast %351 : vector<1x8x128xf32> to vector<8x128xf32>
    %353 = vector.shape_cast %245 : vector<8x128xf32> to vector<1x8x128xf32>
    tpu.vector_store %arg2[%c35, %c0_143, %c0_144], %353 {strides = array<i32>} : memref<36x8x128xf32, #tpu.memory_space<vmem>>, vector<1x8x128xf32>,
    return
  }
  func.func @transform_0(%arg0: i32) -> (i32, i32, i32) {
    %c0_i32 = arith.constant 0 : i32
    %c0_i32_0 = arith.constant 0 : i32
    %c0_i32_1 = arith.constant 0 : i32
    return %c0_i32, %arg0, %c0_i32_0 : i32, i32, i32
  }
  func.func @transform_1(%arg0: i32) -> (i32, i32, i32) {
    %c0_i32 = arith.constant 0 : i32
    %c0_i32_0 = arith.constant 0 : i32
    %c0_i32_1 = arith.constant 0 : i32
    return %c0_i32, %arg0, %c0_i32_0 : i32, i32, i32
  }
}

</mosaic_0001>

<llo_original>
// kernel: tpu_custom_call.1
$region0: #{tpu_custom_call.1}
  #allocation0 [shape = 'u32[]', space=smem, size = 0x4, offset = 0x4, fixed_abs, tag = 'smem constant byte address 0x4 - core index']
  #allocation1 [shape = 'u32[72,128]{1,0:T(1,128)}', space=vmem, size = 0x9000, scoped, tag = 'internal scratch']
  %s0 = inlined_call_operand.hbm [shape: f32[3,16,128], index: 0, kind: input, shape index: {}]
  %s1 = inlined_call_operand.hbm [shape: f32[36,16,128], index: 1, kind: output, shape index: {}]
  %s2 = sld [smem:[#allocation0]]
  $region41: #{tpu_custom_call.1} parent=0
    _
  %s4 = ssub.s32 1, %s2
  %s5 = scalar_select 0, %s4, %s2
  $region1: #{tpu_custom_call.1} parent=0
    #allocation2 [shape = 'u8[24576]{0}', space=vmem, size = 0x6000, scoped, tag = 'input window, operand 0']
    #allocation3 [shape = 's32[2]{0}', space=sflag, size = 0x8, scoped, tag = 'scoped memory for tpu_custom_call.1']
    #allocation4 [shape = 's32[2]{0}', space=sflag, size = 0x8, scoped, tag = 'scoped memory for tpu_custom_call.1']
    #allocation5 [shape = 'u8[294912]{0}', space=vmem, size = 0x48000, scoped, tag = 'output window, operand 0']
    %6 = vsyncpa [#allocation3], 0
    %s7 = scalar_lea.sflag [#allocation3], 1
    %8 = vsyncpa %s7, 0
    %9 = vsyncpa [#allocation4], 0
    %s10 = scalar_lea.sflag [#allocation4], 1
    %11 = vsyncpa %s10, 0
    loop: start=0, step=1, limit=4
    $region2: #{tpu_custom_call.1} parent=1 // loop_pre_header
      _
    $region3: #{tpu_custom_call.1} parent=1 // loop_header
      %s13 = sphi 0, %s17
      %p14 = scmp.ge.s32.totalorder %s13, 4
      %s23 = sphi 0, %s25
      %s26 = sphi 0, %s23
      %s27 = sphi 0, %s26
      %s43 = sphi 0, %s27
      %s49 = sphi 0, %s51
      %s52 = sphi 0, %s49
      %s53 = sphi 0, %s52
      %s69 = sphi 0, %s53
    $region4: #{tpu_custom_call.1} parent=1 // loop_header_branch
      %16 = sbr.rel (%p14) target = $region8
    $region5: #{tpu_custom_call.1} parent=1 // loop_body
      %s18 = ssub.s32 %s13, 1
      %s19 = ssub.s32 %s13, 2
      %s20 = sadd.s32 %s13, 1
      %s21 = ssub.s32 %s13, %s20
      %p22 = scmp.eq.s32.totalorder %s21, 0
      %s24 = sadd.s32 %s23, 1
      %s25 = scalar_select %p22, %s23, %s24
      %p28 = pneg %p22
      %p29 = scmp.eq.s32.totalorder %s13, 1
      %p30 = por %p28, %p29
      %p31 = scmp.ne.s32.totalorder %s23, %s26
      %p32 = scmp.eq.s32.totalorder %s13, 0
      %p33 = por %p31, %p32
      %p34 = scmp.ne.s32.totalorder %s23, %s26
      %p35 = scmp.eq.s32.totalorder %s18, 1
      %p36 = por %p34, %p35
      %p37 = scmp.ne.s32.totalorder %s26, %s27
      %p38 = scmp.eq.s32.totalorder %s18, 0
      %p39 = por %p37, %p38
      %p40 = scmp.ne.s32.totalorder %s26, %s27
      %p41 = scmp.eq.s32.totalorder %s19, 1
      %p42 = por %p40, %p41
      %p44 = scmp.ne.s32.totalorder %s27, %s43
      %p45 = scmp.eq.s32.totalorder %s19, 0
      %p46 = por %p44, %p45
      %s47 = ssub.s32 %s13, %s20
      %p48 = scmp.eq.s32.totalorder %s47, 0
      %s50 = sadd.s32 %s49, 1
      %s51 = scalar_select %p48, %s49, %s50
      %p54 = pneg %p48
      %p55 = scmp.eq.s32.totalorder %s13, 1
      %p56 = por %p54, %p55
      %p57 = scmp.ne.s32.totalorder %s49, %s52
      %p58 = scmp.eq.s32.totalorder %s13, 0
      %p59 = por %p57, %p58
      %p60 = scmp.ne.s32.totalorder %s49, %s52
      %p61 = scmp.eq.s32.totalorder %s18, 1
      %p62 = por %p60, %p61
      %p63 = scmp.ne.s32.totalorder %s52, %s53
      %p64 = scmp.eq.s32.totalorder %s18, 0
      %p65 = por %p63, %p64
      %p66 = scmp.ne.s32.totalorder %s52, %s53
      %p67 = scmp.eq.s32.totalorder %s19, 1
      %p68 = por %p66, %p67
      %p70 = scmp.ne.s32.totalorder %s53, %s69
      %p71 = scmp.eq.s32.totalorder %s19, 0
      %p72 = por %p70, %p71
      %p73 = scmp.le.s32.totalorder 1, %s13
      %p74 = scmp.lt.s32.totalorder %s13, 3
      %p75 = pnand %p73, %p74
      %p76 = pneg %p75
      // Predicated region
      $region9: #{tpu_custom_call.1} parent=5 // pred_check
        _
      $region10: #{tpu_custom_call.1} parent=5 // pred_check_branch
        %78 = sbr.rel (%p75) target = $region12
      $region11: #{tpu_custom_call.1} parent=5 // pred_region
        %s79 = ssub.s32 %s13, 1
      $region12: #{tpu_custom_call.1} parent=5 // pred_fallthru
        _
      %p80 = scmp.lt.s32.totalorder %s13, 2
      // Predicated region
      $region13: #{tpu_custom_call.1} parent=5 // pred_check
        %p81 = pneg %p80
      $region14: #{tpu_custom_call.1} parent=5 // pred_check_branch
        %83 = sbr.rel (%p81) target = $region16
      $region15: #{tpu_custom_call.1} parent=5 // pred_region
        // Predicated region
        $region17: #{tpu_custom_call.1} parent=15 // pred_check
          %p84 = pneg %p33
        $region18: #{tpu_custom_call.1} parent=15 // pred_check_branch
          %86 = sbr.rel (%p84) target = $region20
        $region19: #{tpu_custom_call.1} parent=15 // pred_region
          %s87 = sand.u32 %s23, 1
          %s88 = scalar_lea.sflag [#allocation3], %s87
          %s89 = sand.u32 %s23, 1
          %s90 = smul.addr %s89, 24
          %s91 = scalar_lea.vmem [#allocation2], %s90
          %93 = vsyncadd %s88, 0
          %s94 = smul.addr %s13, 8
          %s95 = scalar_lea.hbm %s0, %s94
          %s96 = sshll.u32 %s95, 4
          %s97 = int_to_ptr.hbm [resolvable:$true] %s96
          %s98 = sshll.u32 %s91, 4
          %s99 = int_to_ptr.vmem [resolvable:$true] %s98
          %104 = dma.hbm_to_vmem [thread:$0]  %s97, 384, %s99, %s88, 256, 128, 8
        $region20: #{tpu_custom_call.1} parent=15 // pred_fallthru
          _
      $region16: #{tpu_custom_call.1} parent=5 // pred_fallthru
        _
      %p105 = scmp.le.s32.totalorder 1, %s13
      %p106 = scmp.lt.s32.totalorder %s13, 3
      %p107 = pnand %p105, %p106
      %p108 = pneg %p107
      // Predicated region
      $region21: #{tpu_custom_call.1} parent=5 // pred_check
        _
      $region22: #{tpu_custom_call.1} parent=5 // pred_check_branch
        %110 = sbr.rel (%p107) target = $region24
      $region23: #{tpu_custom_call.1} parent=5 // pred_region
        %s111 = ssub.s32 %s13, 1
        %s112 = sand.u32 %s26, 1
        %s113 = scalar_lea.sflag [#allocation3], %s112
        %s114 = sand.u32 %s26, 1
        %s115 = smul.addr %s114, 24
        %s116 = scalar_lea.vmem [#allocation2], %s115
        // Predicated region
        $region25: #{tpu_custom_call.1} parent=23 // pred_check
          %p117 = pneg %p39
        $region26: #{tpu_custom_call.1} parent=23 // pred_check_branch
          %119 = sbr.rel (%p117) target = $region28
        $region27: #{tpu_custom_call.1} parent=23 // pred_region
          %121 = dma.done %s113, 384
        $region28: #{tpu_custom_call.1} parent=23 // pred_fallthru
          _
        %s122 = sand.u32 %s26, 1
        %s123 = scalar_lea.sflag [#allocation3], %s122
        %s124 = sand.u32 %s26, 1
        %s125 = smul.addr %s124, 24
        %s126 = scalar_lea.vmem [#allocation2], %s125
        %p127 = pneg %p39
        %p128 = pneg %p36
        %p129 = pneg %p65
        %p130 = pneg %p62
        %s131 = sand.u32 %s52, 1
        %s132 = scalar_lea.sflag [#allocation4], %s131
        %s133 = sand.u32 %s52, 1
        %s134 = smul.addr %s133, 288
        %s135 = scalar_lea.vmem [#allocation5], %s134
        %v136 = vld [vmem:[%s116] sm:$0xff]
        %s137 = scalar_lea.vmem %s116, 8 [#allocation2]
        %v138 = vld [vmem:[%s137] sm:$0xff]
        %s139 = scalar_lea.vmem %s116, 16 [#allocation2]
        %v140 = vld [vmem:[%s139] sm:$0xff]
        %v141 = vmul.f32 %v136, 0.2
        %v142 = vrcp.pop %v141
        %v143 = vmul.f32 %v141, %v142
        %v144 = vsub.f32 1.0, %v143
        %v145 = vmul.f32 %v142, %v144
        %v146 = vadd.f32 %v142, %v145
        %vm147 = vweird.f32 %v141
        %vm148 = vweird.f32 %v142
        %vm149 = vmor %vm147, %vm148
        %v150 = vsel %vm149, %v142, %v146
        %v151 = vand.u32 2147483647, %v141
        %vm152 = vcmp.eq.f32.partialorder %v151, 8.507059e+37
        %v153 = vand.u32 %v141, 2147483648
        %v154 = vor.u32 1.1754944e-38, %v153
        %v155 = vsel %vm152, %v154, %v150
        %v156 = vmul.f32 1.0, %v155
        %v157 = vand.u32 2147483647, %v138
        %vm158 = vcmp.le.f32.partialorder %v157, 0.7853982
        %vm159 = vcmp.lt.s32.totalorder %v138, 0
        %v160 = vand.u32 %v138, 2139095040
        %v161 = vshrl.u32 %v160, 23
        %v162 = vsub.s32 %v161, 127
        %v163 = vand.u32 2147483647, %v138
        %v164 = vand.u32 %v163, 8388607
        %v165 = vor.u32 %v164, 8388608
        %v166 = vsub.s32 0, %v165
        %v167 = vadd.s32 %v162, 1
        %vm168 = vcmp.gt.s32.totalorder %v167, 0
        %v169 = vsel %vm168, %v167, 0
        %v170 = vshrl.u32 %v169, 5
        %v171 = vand.u32 %v169, 31
        %v172 = vsub.s32 32, %v171
        %v173 = vshrl.u32 683565275, %v172
        %v174 = vshll.u32 683565275, %v171
        %v175 = vshrl.u32 2475754826, %v172
        %v176 = vor.u32 %v174, %v175
        %v177 = vshll.u32 2475754826, %v171
        %v178 = vshrl.u32 2131351028, %v172
        %v179 = vor.u32 %v177, %v178
        %v180 = vshll.u32 2131351028, %v171
        %v181 = vshrl.u32 2102212464, %v172
        %v182 = vor.u32 %v180, %v181
        %v183 = vshll.u32 2102212464, %v171
        %v184 = vshrl.u32 920167782, %v172
        %v185 = vor.u32 %v183, %v184
        %v186 = vshll.u32 920167782, %v171
        %v187 = vshrl.u32 1326507024, %v172
        %v188 = vor.u32 %v186, %v187
        %vm189 = vcmp.lt.s32.totalorder %v170, 1
        %vm190 = vcmp.lt.s32.totalorder %v170, 2
        %vm191 = vcmp.lt.s32.totalorder %v170, 3
        %vm192 = vcmp.lt.s32.totalorder %v170, 4
        %v193 = vsel %vm189, %v173, %v176
        %v194 = vsel %vm192, %v182, 2102212464
        %v195 = vsel %vm191, %v179, %v194
        %v196 = vsel %vm190, %v193, %v195
        %v197 = vsel %vm189, %v176, %v179
        %v198 = vsel %vm192, %v185, 920167782
        %v199 = vsel %vm191, %v182, %v198
        %v200 = vsel %vm190, %v197, %v199
        %v201 = vsel %vm189, %v179, %v182
        %v202 = vsel %vm192, %v188, 1326507024
        %v203 = vsel %vm191, %v185, %v202
        %v204 = vsel %vm190, %v201, %v203
        %v205 = vshll.u32 %v165, 8
        %v206 = vand.u32 %v205, 65535
        %v207 = vshrl.u32 %v205, 16
        %v208 = vand.u32 %v204, 65535
        %v209 = vshrl.u32 %v204, 16
        %v210 = vmul.u32 %v206, %v208
        %v211 = vmul.u32 %v206, %v209
        %v212 = vmul.u32 %v207, %v208
        %v213 = vmul.u32 %v207, %v209
        %v214 = vshll.u32 %v211, 16
        %v215 = vshrl.u32 %v211, 16
        %v216 = vshll.u32 %v212, 16
        %v217 = vshrl.u32 %v212, 16
        %vm218 = vc.u32 %v210, %v214
        %v219 = vsel %vm218, 1, 0
        %v220 = vadd.s32 %v210, %v214
        %v221 = vadd.s32 %v213, %v219
        %vm222 = vc.u32 %v220, %v216
        %v223 = vsel %vm222, 1, 0
        %v224 = vadd.s32 %v220, %v216
        %v225 = vadd.s32 %v221, %v223
        %v226 = vadd.s32 %v225, %v215
        %v227 = vadd.s32 %v226, %v217
        %v228 = vand.u32 %v205, 65535
        %v229 = vshrl.u32 %v205, 16
        %v230 = vand.u32 %v200, 65535
        %v231 = vshrl.u32 %v200, 16
        %v232 = vmul.u32 %v228, %v230
        %v233 = vmul.u32 %v228, %v231
        %v234 = vmul.u32 %v229, %v230
        %v235 = vmul.u32 %v229, %v231
        %v236 = vshll.u32 %v233, 16
        %v237 = vshrl.u32 %v233, 16
        %v238 = vshll.u32 %v234, 16
        %v239 = vshrl.u32 %v234, 16
        %vm240 = vc.u32 %v232, %v236
        %v241 = vsel %vm240, 1, 0
        %v242 = vadd.s32 %v232, %v236
        %v243 = vadd.s32 %v235, %v241
        %vm244 = vc.u32 %v242, %v238
        %v245 = vsel %vm244, 1, 0
        %v246 = vadd.s32 %v242, %v238
        %v247 = vadd.s32 %v243, %v245
        %v248 = vadd.s32 %v247, %v237
        %v249 = vadd.s32 %v248, %v239
        %v250 = vmul.u32 %v205, %v196
        %v251 = vadd.s32 %v227, %v246
        %vm252 = vc.u32 %v227, %v246
        %v253 = vadd.s32 %v249, 1
        %v254 = vsel %vm252, %v253, %v249
        %v255 = vadd.s32 %v250, %v254
        %v256 = vadd.s32 %v255, 536870912
        %v257 = vshrl.u32 %v256, 30
        %v258 = vshll.u32 %v257, 30
        %v259 = vsub.s32 %v255, %v258
        %vm260 = vcmp.lt.s32.totalorder %v259, 0
        %v261 = vsub.s32 0, %v259
        %v262 = vsel %vm260, %v261, %v259
        %v263 = vclz %v262
        %v264 = vsub.s32 %v263, 2
        %vm265 = vcmp.gt.s32.totalorder 0, %v264
        %v266 = vsel %vm265, 0, %v264
        %v267 = vsub.s32 32, %v266
        %v268 = vshll.u32 %v259, %v266
        %v269 = vshrl.u32 %v251, %v267
        %v270 = vor.u32 %v268, %v269
        %v271 = vsub.s32 4294967266, %v266
        %v272 = vadd.s32 %v271, 127
        %v273 = vshll.u32 %v272, 23
        %v274 = vor.u32 4788187, %v273
        %v275 = vand.u32 2147483647, %v274
        %v277 = vcvt.s32.f32 %v270
        %v278 = vmul.f32 %v277, %v275
        %v279 = vxor.u32 %v278, 2147483648
        %v280 = vsel %vm159, %v279, %v278
        %v281 = vsub.s32 4, %v257
        %v282 = vsel %vm159, %v281, %v257
        %v283 = vsel %vm158, %v138, %v280
        %v284 = vsel %vm158, 0, %v282
        %v285 = vmul.f32 %v283, %v283
        %v286 = vmul.f32 %v285, -0.001358992
        %v287 = vadd.f32 %v286, 0.041655596
        %v288 = vmul.f32 %v285, %v287
        %v289 = vadd.f32 %v288, -0.4999988
        %v290 = vmul.f32 %v285, %v289
        %v291 = vadd.f32 1.0, %v290
        %v292 = vmul.f32 %v283, %v283
        %v293 = vmul.f32 %v292, -0.00019511016
        %v294 = vadd.f32 %v293, 0.008332121
        %v295 = vmul.f32 %v292, %v294
        %v296 = vadd.f32 %v295, -0.16666654
        %v297 = vmul.f32 %v292, %v296
        %v298 = vadd.f32 %v297, 1.0
        %v299 = vmul.f32 %v298, %v283
        %vm300 = vweird.f32 %v138
        %v301 = vand.u32 %v284, 3
        %vm302 = vcmp.lt.s32.totalorder %v301, 2
        %vm303 = vcmp.eq.s32.totalorder %v301, 0
        %v304 = vxor.u32 %v299, 2147483648
        %v305 = vsel %vm303, %v291, %v304
        %vm306 = vcmp.eq.s32.totalorder %v301, 2
        %v307 = vxor.u32 %v291, 2147483648
        %v308 = vsel %vm306, %v307, %v299
        %v309 = vsel %vm302, %v305, %v308
        %v310 = vsel %vm300, nan, %v309
        %v311 = vmul.f32 %v310, %v310
        %v312 = vsub.f32 1.0, %v311
        %v313 = vmax.f32 %v312, 0.0
        %v314 = vrsqrt.pop %v313
        %v315 = vmul.f32 %v314, %v313
        %v316 = vmul.f32 %v315, %v314
        %v317 = vmul.f32 0.5, %v316
        %v318 = vsub.f32 1.5, %v317
        %v319 = vmul.f32 %v314, %v318
        %v320 = vmul.f32 %v313, %v319
        %vm321 = vcmp.eq.f32.partialorder %v313, inf
        %v322 = vsel %vm321, %v313, %v320
        %vm323 = vcmp.eq.f32.partialorder %v313, 0.0
        %v324 = vand.u32 %v313, 2147483648
        %v325 = vsel %vm323, %v324, %v322
        %v326 = vand.u32 2147483647, %v140
        %vm327 = vcmp.le.f32.partialorder %v326, 0.7853982
        %vm328 = vcmp.lt.s32.totalorder %v140, 0
        %v329 = vand.u32 %v140, 2139095040
        %v330 = vshrl.u32 %v329, 23
        %v331 = vsub.s32 %v330, 127
        %v332 = vand.u32 2147483647, %v140
        %v333 = vand.u32 %v332, 8388607
        %v334 = vor.u32 %v333, 8388608
        %v335 = vsub.s32 0, %v334
        %v336 = vadd.s32 %v331, 1
        %vm337 = vcmp.gt.s32.totalorder %v336, 0
        %v338 = vsel %vm337, %v336, 0
        %v339 = vshrl.u32 %v338, 5
        %v340 = vand.u32 %v338, 31
        %v341 = vsub.s32 32, %v340
        %v342 = vshrl.u32 683565275, %v341
        %v343 = vshll.u32 683565275, %v340
        %v344 = vshrl.u32 2475754826, %v341
        %v345 = vor.u32 %v343, %v344
        %v346 = vshll.u32 2475754826, %v340
        %v347 = vshrl.u32 2131351028, %v341
        %v348 = vor.u32 %v346, %v347
        %v349 = vshll.u32 2131351028, %v340
        %v350 = vshrl.u32 2102212464, %v341
        %v351 = vor.u32 %v349, %v350
        %v352 = vshll.u32 2102212464, %v340
        %v353 = vshrl.u32 920167782, %v341
        %v354 = vor.u32 %v352, %v353
        %v355 = vshll.u32 920167782, %v340
        %v356 = vshrl.u32 1326507024, %v341
        %v357 = vor.u32 %v355, %v356
        %vm358 = vcmp.lt.s32.totalorder %v339, 1
        %vm359 = vcmp.lt.s32.totalorder %v339, 2
        %vm360 = vcmp.lt.s32.totalorder %v339, 3
        %vm361 = vcmp.lt.s32.totalorder %v339, 4
        %v362 = vsel %vm358, %v342, %v345
        %v363 = vsel %vm361, %v351, 2102212464
        %v364 = vsel %vm360, %v348, %v363
        %v365 = vsel %vm359, %v362, %v364
        %v366 = vsel %vm358, %v345, %v348
        %v367 = vsel %vm361, %v354, 920167782
        %v368 = vsel %vm360, %v351, %v367
        %v369 = vsel %vm359, %v366, %v368
        %v370 = vsel %vm358, %v348, %v351
        %v371 = vsel %vm361, %v357, 1326507024
        %v372 = vsel %vm360, %v354, %v371
        %v373 = vsel %vm359, %v370, %v372
        %v374 = vshll.u32 %v334, 8
        %v375 = vand.u32 %v374, 65535
        %v376 = vshrl.u32 %v374, 16
        %v377 = vand.u32 %v373, 65535
        %v378 = vshrl.u32 %v373, 16
        %v379 = vmul.u32 %v375, %v377
        %v380 = vmul.u32 %v375, %v378
        %v381 = vmul.u32 %v376, %v377
        %v382 = vmul.u32 %v376, %v378
        %v383 = vshll.u32 %v380, 16
        %v384 = vshrl.u32 %v380, 16
        %v385 = vshll.u32 %v381, 16
        %v386 = vshrl.u32 %v381, 16
        %vm387 = vc.u32 %v379, %v383
        %v388 = vsel %vm387, 1, 0
        %v389 = vadd.s32 %v379, %v383
        %v390 = vadd.s32 %v382, %v388
        %vm391 = vc.u32 %v389, %v385
        %v392 = vsel %vm391, 1, 0
        %v393 = vadd.s32 %v389, %v385
        %v394 = vadd.s32 %v390, %v392
        %v395 = vadd.s32 %v394, %v384
        %v396 = vadd.s32 %v395, %v386
        %v397 = vand.u32 %v374, 65535
        %v398 = vshrl.u32 %v374, 16
        %v399 = vand.u32 %v369, 65535
        %v400 = vshrl.u32 %v369, 16
        %v401 = vmul.u32 %v397, %v399
        %v402 = vmul.u32 %v397, %v400
        %v403 = vmul.u32 %v398, %v399
        %v404 = vmul.u32 %v398, %v400
        %v405 = vshll.u32 %v402, 16
        %v406 = vshrl.u32 %v402, 16
        %v407 = vshll.u32 %v403, 16
        %v408 = vshrl.u32 %v403, 16
        %vm409 = vc.u32 %v401, %v405
        %v410 = vsel %vm409, 1, 0
        %v411 = vadd.s32 %v401, %v405
        %v412 = vadd.s32 %v404, %v410
        %vm413 = vc.u32 %v411, %v407
        %v414 = vsel %vm413, 1, 0
        %v415 = vadd.s32 %v411, %v407
        %v416 = vadd.s32 %v412, %v414
        %v417 = vadd.s32 %v416, %v406
        %v418 = vadd.s32 %v417, %v408
        %v419 = vmul.u32 %v374, %v365
        %v420 = vadd.s32 %v396, %v415
        %vm421 = vc.u32 %v396, %v415
        %v422 = vadd.s32 %v418, 1
        %v423 = vsel %vm421, %v422, %v418
        %v424 = vadd.s32 %v419, %v423
        %v425 = vadd.s32 %v424, 536870912
        %v426 = vshrl.u32 %v425, 30
        %v427 = vshll.u32 %v426, 30
        %v428 = vsub.s32 %v424, %v427
        %vm429 = vcmp.lt.s32.totalorder %v428, 0
        %v430 = vsub.s32 0, %v428
        %v431 = vsel %vm429, %v430, %v428
        %v432 = vclz %v431
        %v433 = vsub.s32 %v432, 2
        %vm434 = vcmp.gt.s32.totalorder 0, %v433
        %v435 = vsel %vm434, 0, %v433
        %v436 = vsub.s32 32, %v435
        %v437 = vshll.u32 %v428, %v435
        %v438 = vshrl.u32 %v420, %v436
        %v439 = vor.u32 %v437, %v438
        %v440 = vsub.s32 4294967266, %v435
        %v441 = vadd.s32 %v440, 127
        %v442 = vshll.u32 %v441, 23
        %v443 = vor.u32 4788187, %v442
        %v444 = vand.u32 2147483647, %v443
        %v446 = vcvt.s32.f32 %v439
        %v447 = vmul.f32 %v446, %v444
        %v448 = vxor.u32 %v447, 2147483648
        %v449 = vsel %vm328, %v448, %v447
        %v450 = vsub.s32 4, %v426
        %v451 = vsel %vm328, %v450, %v426
        %v452 = vsel %vm327, %v140, %v449
        %v453 = vsel %vm327, 0, %v451
        %v454 = vmul.f32 %v452, %v452
        %v455 = vmul.f32 %v454, -0.001358992
        %v456 = vadd.f32 %v455, 0.041655596
        %v457 = vmul.f32 %v454, %v456
        %v458 = vadd.f32 %v457, -0.4999988
        %v459 = vmul.f32 %v454, %v458
        %v460 = vadd.f32 1.0, %v459
        %v461 = vmul.f32 %v452, %v452
        %v462 = vmul.f32 %v461, -0.00019511016
        %v463 = vadd.f32 %v462, 0.008332121
        %v464 = vmul.f32 %v461, %v463
        %v465 = vadd.f32 %v464, -0.16666654
        %v466 = vmul.f32 %v461, %v465
        %v467 = vadd.f32 %v466, 1.0
        %v468 = vmul.f32 %v467, %v452
        %vm469 = vweird.f32 %v140
        %v470 = vand.u32 %v453, 3
        %vm471 = vcmp.lt.s32.totalorder %v470, 2
        %vm472 = vcmp.eq.s32.totalorder %v470, 0
        %v473 = vxor.u32 %v468, 2147483648
        %v474 = vsel %vm472, %v460, %v473
        %vm475 = vcmp.eq.s32.totalorder %v470, 2
        %v476 = vxor.u32 %v460, 2147483648
        %v477 = vsel %vm475, %v476, %v468
        %v478 = vsel %vm471, %v474, %v477
        %v479 = vsel %vm469, nan, %v478
        %v480 = vand.u32 2147483647, %v140
        %vm481 = vcmp.le.f32.partialorder %v480, 0.7853982
        %vm482 = vcmp.lt.s32.totalorder %v140, 0
        %v483 = vand.u32 %v140, 2139095040
        %v484 = vshrl.u32 %v483, 23
        %v485 = vsub.s32 %v484, 127
        %v486 = vand.u32 2147483647, %v140
        %v487 = vand.u32 %v486, 8388607
        %v488 = vor.u32 %v487, 8388608
        %v489 = vsub.s32 0, %v488
        %v490 = vadd.s32 %v485, 1
        %vm491 = vcmp.gt.s32.totalorder %v490, 0
        %v492 = vsel %vm491, %v490, 0
        %v493 = vshrl.u32 %v492, 5
        %v494 = vand.u32 %v492, 31
        %v495 = vsub.s32 32, %v494
        %v496 = vshrl.u32 683565275, %v495
        %v497 = vshll.u32 683565275, %v494
        %v498 = vshrl.u32 2475754826, %v495
        %v499 = vor.u32 %v497, %v498
        %v500 = vshll.u32 2475754826, %v494
        %v501 = vshrl.u32 2131351028, %v495
        %v502 = vor.u32 %v500, %v501
        %v503 = vshll.u32 2131351028, %v494
        %v504 = vshrl.u32 2102212464, %v495
        %v505 = vor.u32 %v503, %v504
        %v506 = vshll.u32 2102212464, %v494
        %v507 = vshrl.u32 920167782, %v495
        %v508 = vor.u32 %v506, %v507
        %v509 = vshll.u32 920167782, %v494
        %v510 = vshrl.u32 1326507024, %v495
        %v511 = vor.u32 %v509, %v510
        %vm512 = vcmp.lt.s32.totalorder %v493, 1
        %vm513 = vcmp.lt.s32.totalorder %v493, 2
        %vm514 = vcmp.lt.s32.totalorder %v493, 3
        %vm515 = vcmp.lt.s32.totalorder %v493, 4
        %v516 = vsel %vm512, %v496, %v499
        %v517 = vsel %vm515, %v505, 2102212464
        %v518 = vsel %vm514, %v502, %v517
        %v519 = vsel %vm513, %v516, %v518
        %v520 = vsel %vm512, %v499, %v502
        %v521 = vsel %vm515, %v508, 920167782
        %v522 = vsel %vm514, %v505, %v521
        %v523 = vsel %vm513, %v520, %v522
        %v524 = vsel %vm512, %v502, %v505
        %v525 = vsel %vm515, %v511, 1326507024
        %v526 = vsel %vm514, %v508, %v525
        %v527 = vsel %vm513, %v524, %v526
        %v528 = vshll.u32 %v488, 8
        %v529 = vand.u32 %v528, 65535
        %v530 = vshrl.u32 %v528, 16
        %v531 = vand.u32 %v527, 65535
        %v532 = vshrl.u32 %v527, 16
        %v533 = vmul.u32 %v529, %v531
        %v534 = vmul.u32 %v529, %v532
        %v535 = vmul.u32 %v530, %v531
        %v536 = vmul.u32 %v530, %v532
        %v537 = vshll.u32 %v534, 16
        %v538 = vshrl.u32 %v534, 16
        %v539 = vshll.u32 %v535, 16
        %v540 = vshrl.u32 %v535, 16
        %vm541 = vc.u32 %v533, %v537
        %v542 = vsel %vm541, 1, 0
        %v543 = vadd.s32 %v533, %v537
        %v544 = vadd.s32 %v536, %v542
        %vm545 = vc.u32 %v543, %v539
        %v546 = vsel %vm545, 1, 0
        %v547 = vadd.s32 %v543, %v539
        %v548 = vadd.s32 %v544, %v546
        %v549 = vadd.s32 %v548, %v538
        %v550 = vadd.s32 %v549, %v540
        %v551 = vand.u32 %v528, 65535
        %v552 = vshrl.u32 %v528, 16
        %v553 = vand.u32 %v523, 65535
        %v554 = vshrl.u32 %v523, 16
        %v555 = vmul.u32 %v551, %v553
        %v556 = vmul.u32 %v551, %v554
        %v557 = vmul.u32 %v552, %v553
        %v558 = vmul.u32 %v552, %v554
        %v559 = vshll.u32 %v556, 16
        %v560 = vshrl.u32 %v556, 16
        %v561 = vshll.u32 %v557, 16
        %v562 = vshrl.u32 %v557, 16
        %vm563 = vc.u32 %v555, %v559
        %v564 = vsel %vm563, 1, 0
        %v565 = vadd.s32 %v555, %v559
        %v566 = vadd.s32 %v558, %v564
        %vm567 = vc.u32 %v565, %v561
        %v568 = vsel %vm567, 1, 0
        %v569 = vadd.s32 %v565, %v561
        %v570 = vadd.s32 %v566, %v568
        %v571 = vadd.s32 %v570, %v560
        %v572 = vadd.s32 %v571, %v562
        %v573 = vmul.u32 %v528, %v519
        %v574 = vadd.s32 %v550, %v569
        %vm575 = vc.u32 %v550, %v569
        %v576 = vadd.s32 %v572, 1
        %v577 = vsel %vm575, %v576, %v572
        %v578 = vadd.s32 %v573, %v577
        %v579 = vadd.s32 %v578, 536870912
        %v580 = vshrl.u32 %v579, 30
        %v581 = vshll.u32 %v580, 30
        %v582 = vsub.s32 %v578, %v581
        %vm583 = vcmp.lt.s32.totalorder %v582, 0
        %v584 = vsub.s32 0, %v582
        %v585 = vsel %vm583, %v584, %v582
        %v586 = vclz %v585
        %v587 = vsub.s32 %v586, 2
        %vm588 = vcmp.gt.s32.totalorder 0, %v587
        %v589 = vsel %vm588, 0, %v587
        %v590 = vsub.s32 32, %v589
        %v591 = vshll.u32 %v582, %v589
        %v592 = vshrl.u32 %v574, %v590
        %v593 = vor.u32 %v591, %v592
        %v594 = vsub.s32 4294967266, %v589
        %v595 = vadd.s32 %v594, 127
        %v596 = vshll.u32 %v595, 23
        %v597 = vor.u32 4788187, %v596
        %v598 = vand.u32 2147483647, %v597
        %v600 = vcvt.s32.f32 %v593
        %v601 = vmul.f32 %v600, %v598
        %v602 = vxor.u32 %v601, 2147483648
        %v603 = vsel %vm482, %v602, %v601
        %v604 = vsub.s32 4, %v580
        %v605 = vsel %vm482, %v604, %v580
        %v606 = vsel %vm481, %v140, %v603
        %v607 = vsel %vm481, 0, %v605
        %v608 = vmul.f32 %v606, %v606
        %v609 = vmul.f32 %v608, -0.001358992
        %v610 = vadd.f32 %v609, 0.041655596
        %v611 = vmul.f32 %v608, %v610
        %v612 = vadd.f32 %v611, -0.4999988
        %v613 = vmul.f32 %v608, %v612
        %v614 = vadd.f32 1.0, %v613
        %v615 = vmul.f32 %v606, %v606
        %v616 = vmul.f32 %v615, -0.00019511016
        %v617 = vadd.f32 %v616, 0.008332121
        %v618 = vmul.f32 %v615, %v617
        %v619 = vadd.f32 %v618, -0.16666654
        %v620 = vmul.f32 %v615, %v619
        %v621 = vadd.f32 %v620, 1.0
        %v622 = vmul.f32 %v621, %v606
        %vm623 = vweird.f32 %v140
        %v624 = vadd.s32 %v607, 3
        %v625 = vand.u32 %v624, 3
        %vm626 = vcmp.lt.s32.totalorder %v625, 2
        %vm627 = vcmp.eq.s32.totalorder %v625, 0
        %v628 = vxor.u32 %v622, 2147483648
        %v629 = vsel %vm627, %v614, %v628
        %vm630 = vcmp.eq.s32.totalorder %v625, 2
        %v631 = vxor.u32 %v614, 2147483648
        %v632 = vsel %vm630, %v631, %v622
        %v633 = vsel %vm626, %v629, %v632
        %v634 = vsel %vm623, nan, %v633
        %v635 = vmul.f32 %v479, 2.0
        %v636 = vmul.f32 %v635, %v479
        %v637 = vsub.f32 %v636, 1.0
        %v638 = vmul.f32 %v635, %v634
        %v639 = vmul.f32 %v325, -1.0
        %v640 = vmul.f32 %v325, -3.0
        %v641 = vmul.f32 %v640, %v639
        %v642 = vmul.f32 %v310, 3.0
        %v643 = vmul.f32 %v642, %v639
        %v644 = vmul.f32 %v642, %v310
        %v645 = vsub.f32 %v644, 1.0
        %v646 = vmul.f32 %v645, 0.5
        %v647 = vmul.f32 %v156, 0.31830987
        %v648 = vmul.f32 %v141, 3.1415927
        %v649 = vand.u32 2147483647, %v648
        %vm650 = vcmp.le.f32.partialorder %v649, 0.7853982
        %vm651 = vcmp.lt.s32.totalorder %v648, 0
        %v652 = vand.u32 %v648, 2139095040
        %v653 = vshrl.u32 %v652, 23
        %v654 = vsub.s32 %v653, 127
        %v655 = vand.u32 2147483647, %v648
        %v656 = vand.u32 %v655, 8388607
        %v657 = vor.u32 %v656, 8388608
        %v658 = vsub.s32 0, %v657
        %v659 = vadd.s32 %v654, 1
        %vm660 = vcmp.gt.s32.totalorder %v659, 0
        %v661 = vsel %vm660, %v659, 0
        %v662 = vshrl.u32 %v661, 5
        %v663 = vand.u32 %v661, 31
        %v664 = vsub.s32 32, %v663
        %v665 = vshrl.u32 683565275, %v664
        %v666 = vshll.u32 683565275, %v663
        %v667 = vshrl.u32 2475754826, %v664
        %v668 = vor.u32 %v666, %v667
        %v669 = vshll.u32 2475754826, %v663
        %v670 = vshrl.u32 2131351028, %v664
        %v671 = vor.u32 %v669, %v670
        %v672 = vshll.u32 2131351028, %v663
        %v673 = vshrl.u32 2102212464, %v664
        %v674 = vor.u32 %v672, %v673
        %v675 = vshll.u32 2102212464, %v663
        %v676 = vshrl.u32 920167782, %v664
        %v677 = vor.u32 %v675, %v676
        %v678 = vshll.u32 920167782, %v663
        %v679 = vshrl.u32 1326507024, %v664
        %v680 = vor.u32 %v678, %v679
        %vm681 = vcmp.lt.s32.totalorder %v662, 1
        %vm682 = vcmp.lt.s32.totalorder %v662, 2
        %vm683 = vcmp.lt.s32.totalorder %v662, 3
        %vm684 = vcmp.lt.s32.totalorder %v662, 4
        %v685 = vsel %vm681, %v665, %v668
        %v686 = vsel %vm684, %v674, 2102212464
        %v687 = vsel %vm683, %v671, %v686
        %v688 = vsel %vm682, %v685, %v687
        %v689 = vsel %vm681, %v668, %v671
        %v690 = vsel %vm684, %v677, 920167782
        %v691 = vsel %vm683, %v674, %v690
        %v692 = vsel %vm682, %v689, %v691
        %v693 = vsel %vm681, %v671, %v674
        %v694 = vsel %vm684, %v680, 1326507024
        %v695 = vsel %vm683, %v677, %v694
        %v696 = vsel %vm682, %v693, %v695
        %v697 = vshll.u32 %v657, 8
        %v698 = vand.u32 %v697, 65535
        %v699 = vshrl.u32 %v697, 16
        %v700 = vand.u32 %v696, 65535
        %v701 = vshrl.u32 %v696, 16
        %v702 = vmul.u32 %v698, %v700
        %v703 = vmul.u32 %v698, %v701
        %v704 = vmul.u32 %v699, %v700
        %v705 = vmul.u32 %v699, %v701
        %v706 = vshll.u32 %v703, 16
        %v707 = vshrl.u32 %v703, 16
        %v708 = vshll.u32 %v704, 16
        %v709 = vshrl.u32 %v704, 16
        %vm710 = vc.u32 %v702, %v706
        %v711 = vsel %vm710, 1, 0
        %v712 = vadd.s32 %v702, %v706
        %v713 = vadd.s32 %v705, %v711
        %vm714 = vc.u32 %v712, %v708
        %v715 = vsel %vm714, 1, 0
        %v716 = vadd.s32 %v712, %v708
        %v717 = vadd.s32 %v713, %v715
        %v718 = vadd.s32 %v717, %v707
        %v719 = vadd.s32 %v718, %v709
        %v720 = vand.u32 %v697, 65535
        %v721 = vshrl.u32 %v697, 16
        %v722 = vand.u32 %v692, 65535
        %v723 = vshrl.u32 %v692, 16
        %v724 = vmul.u32 %v720, %v722
        %v725 = vmul.u32 %v720, %v723
        %v726 = vmul.u32 %v721, %v722
        %v727 = vmul.u32 %v721, %v723
        %v728 = vshll.u32 %v725, 16
        %v729 = vshrl.u32 %v725, 16
        %v730 = vshll.u32 %v726, 16
        %v731 = vshrl.u32 %v726, 16
        %vm732 = vc.u32 %v724, %v728
        %v733 = vsel %vm732, 1, 0
        %v734 = vadd.s32 %v724, %v728
        %v735 = vadd.s32 %v727, %v733
        %vm736 = vc.u32 %v734, %v730
        %v737 = vsel %vm736, 1, 0
        %v738 = vadd.s32 %v734, %v730
        %v739 = vadd.s32 %v735, %v737
        %v740 = vadd.s32 %v739, %v729
        %v741 = vadd.s32 %v740, %v731
        %v742 = vmul.u32 %v697, %v688
        %v743 = vadd.s32 %v719, %v738
        %vm744 = vc.u32 %v719, %v738
        %v745 = vadd.s32 %v741, 1
        %v746 = vsel %vm744, %v745, %v741
        %v747 = vadd.s32 %v742, %v746
        %v748 = vadd.s32 %v747, 536870912
        %v749 = vshrl.u32 %v748, 30
        %v750 = vshll.u32 %v749, 30
        %v751 = vsub.s32 %v747, %v750
        %vm752 = vcmp.lt.s32.totalorder %v751, 0
        %v753 = vsub.s32 0, %v751
        %v754 = vsel %vm752, %v753, %v751
        %v755 = vclz %v754
        %v756 = vsub.s32 %v755, 2
        %vm757 = vcmp.gt.s32.totalorder 0, %v756
        %v758 = vsel %vm757, 0, %v756
        %v759 = vsub.s32 32, %v758
        %v760 = vshll.u32 %v751, %v758
        %v761 = vshrl.u32 %v743, %v759
        %v762 = vor.u32 %v760, %v761
        %v763 = vsub.s32 4294967266, %v758
        %v764 = vadd.s32 %v763, 127
        %v765 = vshll.u32 %v764, 23
        %v766 = vor.u32 4788187, %v765
        %v767 = vand.u32 2147483647, %v766
        %v769 = vcvt.s32.f32 %v762
        %v770 = vmul.f32 %v769, %v767
        %v771 = vxor.u32 %v770, 2147483648
        %v772 = vsel %vm651, %v771, %v770
        %v773 = vsub.s32 4, %v749
        %v774 = vsel %vm651, %v773, %v749
        %v775 = vsel %vm650, %v648, %v772
        %v776 = vsel %vm650, 0, %v774
        %v777 = vmul.f32 %v775, %v775
        %v778 = vmul.f32 %v777, -0.001358992
        %v779 = vadd.f32 %v778, 0.041655596
        %v780 = vmul.f32 %v777, %v779
        %v781 = vadd.f32 %v780, -0.4999988
        %v782 = vmul.f32 %v777, %v781
        %v783 = vadd.f32 1.0, %v782
        %v784 = vmul.f32 %v775, %v775
        %v785 = vmul.f32 %v784, -0.00019511016
        %v786 = vadd.f32 %v785, 0.008332121
        %v787 = vmul.f32 %v784, %v786
        %v788 = vadd.f32 %v787, -0.16666654
        %v789 = vmul.f32 %v784, %v788
        %v790 = vadd.f32 %v789, 1.0
        %v791 = vmul.f32 %v790, %v775
        %vm792 = vweird.f32 %v648
        %v793 = vadd.s32 %v776, 3
        %v794 = vand.u32 %v793, 3
        %vm795 = vcmp.lt.s32.totalorder %v794, 2
        %vm796 = vcmp.eq.s32.totalorder %v794, 0
        %v797 = vxor.u32 %v791, 2147483648
        %v798 = vsel %vm796, %v783, %v797
        %vm799 = vcmp.eq.s32.totalorder %v794, 2
        %v800 = vxor.u32 %v783, 2147483648
        %v801 = vsel %vm799, %v800, %v791
        %v802 = vsel %vm795, %v798, %v801
        %v803 = vsel %vm792, nan, %v802
        %v804 = vmul.f32 %v803, %v647
        %v805 = vmul.f32 %v804, 4.442883
        %v806 = vmul.f32 %v156, 0.15915494
        %v807 = vmul.f32 %v141, 6.2831855
        %v808 = vand.u32 2147483647, %v807
        %vm809 = vcmp.le.f32.partialorder %v808, 0.7853982
        %vm810 = vcmp.lt.s32.totalorder %v807, 0
        %v811 = vand.u32 %v807, 2139095040
        %v812 = vshrl.u32 %v811, 23
        %v813 = vsub.s32 %v812, 127
        %v814 = vand.u32 2147483647, %v807
        %v815 = vand.u32 %v814, 8388607
        %v816 = vor.u32 %v815, 8388608
        %v817 = vsub.s32 0, %v816
        %v818 = vadd.s32 %v813, 1
        %vm819 = vcmp.gt.s32.totalorder %v818, 0
        %v820 = vsel %vm819, %v818, 0
        %v821 = vshrl.u32 %v820, 5
        %v822 = vand.u32 %v820, 31
        %v823 = vsub.s32 32, %v822
        %v824 = vshrl.u32 683565275, %v823
        %v825 = vshll.u32 683565275, %v822
        %v826 = vshrl.u32 2475754826, %v823
        %v827 = vor.u32 %v825, %v826
        %v828 = vshll.u32 2475754826, %v822
        %v829 = vshrl.u32 2131351028, %v823
        %v830 = vor.u32 %v828, %v829
        %v831 = vshll.u32 2131351028, %v822
        %v832 = vshrl.u32 2102212464, %v823
        %v833 = vor.u32 %v831, %v832
        %v834 = vshll.u32 2102212464, %v822
        %v835 = vshrl.u32 920167782, %v823
        %v836 = vor.u32 %v834, %v835
        %v837 = vshll.u32 920167782, %v822
        %v838 = vshrl.u32 1326507024, %v823
        %v839 = vor.u32 %v837, %v838
        %vm840 = vcmp.lt.s32.totalorder %v821, 1
        %vm841 = vcmp.lt.s32.totalorder %v821, 2
        %vm842 = vcmp.lt.s32.totalorder %v821, 3
        %vm843 = vcmp.lt.s32.totalorder %v821, 4
        %v844 = vsel %vm840, %v824, %v827
        %v845 = vsel %vm843, %v833, 2102212464
        %v846 = vsel %vm842, %v830, %v845
        %v847 = vsel %vm841, %v844, %v846
        %v848 = vsel %vm840, %v827, %v830
        %v849 = vsel %vm843, %v836, 920167782
        %v850 = vsel %vm842, %v833, %v849
        %v851 = vsel %vm841, %v848, %v850
        %v852 = vsel %vm840, %v830, %v833
        %v853 = vsel %vm843, %v839, 1326507024
        %v854 = vsel %vm842, %v836, %v853
        %v855 = vsel %vm841, %v852, %v854
        %v856 = vshll.u32 %v816, 8
        %v857 = vand.u32 %v856, 65535
        %v858 = vshrl.u32 %v856, 16
        %v859 = vand.u32 %v855, 65535
        %v860 = vshrl.u32 %v855, 16
        %v861 = vmul.u32 %v857, %v859
        %v862 = vmul.u32 %v857, %v860
        %v863 = vmul.u32 %v858, %v859
        %v864 = vmul.u32 %v858, %v860
        %v865 = vshll.u32 %v862, 16
        %v866 = vshrl.u32 %v862, 16
        %v867 = vshll.u32 %v863, 16
        %v868 = vshrl.u32 %v863, 16
        %vm869 = vc.u32 %v861, %v865
        %v870 = vsel %vm869, 1, 0
        %v871 = vadd.s32 %v861, %v865
        %v872 = vadd.s32 %v864, %v870
        %vm873 = vc.u32 %v871, %v867
        %v874 = vsel %vm873, 1, 0
        %v875 = vadd.s32 %v871, %v867
        %v876 = vadd.s32 %v872, %v874
        %v877 = vadd.s32 %v876, %v866
        %v878 = vadd.s32 %v877, %v868
        %v879 = vand.u32 %v856, 65535
        %v880 = vshrl.u32 %v856, 16
        %v881 = vand.u32 %v851, 65535
        %v882 = vshrl.u32 %v851, 16
        %v883 = vmul.u32 %v879, %v881
        %v884 = vmul.u32 %v879, %v882
        %v885 = vmul.u32 %v880, %v881
        %v886 = vmul.u32 %v880, %v882
        %v887 = vshll.u32 %v884, 16
        %v888 = vshrl.u32 %v884, 16
        %v889 = vshll.u32 %v885, 16
        %v890 = vshrl.u32 %v885, 16
        %vm891 = vc.u32 %v883, %v887
        %v892 = vsel %vm891, 1, 0
        %v893 = vadd.s32 %v883, %v887
        %v894 = vadd.s32 %v886, %v892
        %vm895 = vc.u32 %v893, %v889
        %v896 = vsel %vm895, 1, 0
        %v897 = vadd.s32 %v893, %v889
        %v898 = vadd.s32 %v894, %v896
        %v899 = vadd.s32 %v898, %v888
        %v900 = vadd.s32 %v899, %v890
        %v901 = vmul.u32 %v856, %v847
        %v902 = vadd.s32 %v878, %v897
        %vm903 = vc.u32 %v878, %v897
        %v904 = vadd.s32 %v900, 1
        %v905 = vsel %vm903, %v904, %v900
        %v906 = vadd.s32 %v901, %v905
        %v907 = vadd.s32 %v906, 536870912
        %v908 = vshrl.u32 %v907, 30
        %v909 = vshll.u32 %v908, 30
        %v910 = vsub.s32 %v906, %v909
        %vm911 = vcmp.lt.s32.totalorder %v910, 0
        %v912 = vsub.s32 0, %v910
        %v913 = vsel %vm911, %v912, %v910
        %v914 = vclz %v913
        %v915 = vsub.s32 %v914, 2
        %vm916 = vcmp.gt.s32.totalorder 0, %v915
        %v917 = vsel %vm916, 0, %v915
        %v918 = vsub.s32 32, %v917
        %v919 = vshll.u32 %v910, %v917
        %v920 = vshrl.u32 %v902, %v918
        %v921 = vor.u32 %v919, %v920
        %v922 = vsub.s32 4294967266, %v917
        %v923 = vadd.s32 %v922, 127
        %v924 = vshll.u32 %v923, 23
        %v925 = vor.u32 4788187, %v924
        %v926 = vand.u32 2147483647, %v925
        %v928 = vcvt.s32.f32 %v921
        %v929 = vmul.f32 %v928, %v926
        %v930 = vxor.u32 %v929, 2147483648
        %v931 = vsel %vm810, %v930, %v929
        %v932 = vsub.s32 4, %v908
        %v933 = vsel %vm810, %v932, %v908
        %v934 = vsel %vm809, %v807, %v931
        %v935 = vsel %vm809, 0, %v933
        %v936 = vmul.f32 %v934, %v934
        %v937 = vmul.f32 %v936, -0.001358992
        %v938 = vadd.f32 %v937, 0.041655596
        %v939 = vmul.f32 %v936, %v938
        %v940 = vadd.f32 %v939, -0.4999988
        %v941 = vmul.f32 %v936, %v940
        %v942 = vadd.f32 1.0, %v941
        %v943 = vmul.f32 %v934, %v934
        %v944 = vmul.f32 %v943, -0.00019511016
        %v945 = vadd.f32 %v944, 0.008332121
        %v946 = vmul.f32 %v943, %v945
        %v947 = vadd.f32 %v946, -0.16666654
        %v948 = vmul.f32 %v943, %v947
        %v949 = vadd.f32 %v948, 1.0
        %v950 = vmul.f32 %v949, %v934
        %vm951 = vweird.f32 %v807
        %v952 = vadd.s32 %v935, 3
        %v953 = vand.u32 %v952, 3
        %vm954 = vcmp.lt.s32.totalorder %v953, 2
        %vm955 = vcmp.eq.s32.totalorder %v953, 0
        %v956 = vxor.u32 %v950, 2147483648
        %v957 = vsel %vm955, %v942, %v956
        %vm958 = vcmp.eq.s32.totalorder %v953, 2
        %v959 = vxor.u32 %v942, 2147483648
        %v960 = vsel %vm958, %v959, %v950
        %v961 = vsel %vm954, %v957, %v960
        %v962 = vsel %vm951, nan, %v961
        %v963 = vmul.f32 %v962, %v806
        %v964 = vmul.f32 %v963, 8.885766
        %v965 = vmul.f32 %v156, 0.10610329
        %v966 = vmul.f32 %v141, 9.424778
        %v967 = vand.u32 2147483647, %v966
        %vm968 = vcmp.le.f32.partialorder %v967, 0.7853982
        %vm969 = vcmp.lt.s32.totalorder %v966, 0
        %v970 = vand.u32 %v966, 2139095040
        %v971 = vshrl.u32 %v970, 23
        %v972 = vsub.s32 %v971, 127
        %v973 = vand.u32 2147483647, %v966
        %v974 = vand.u32 %v973, 8388607
        %v975 = vor.u32 %v974, 8388608
        %v976 = vsub.s32 0, %v975
        %v977 = vadd.s32 %v972, 1
        %vm978 = vcmp.gt.s32.totalorder %v977, 0
        %v979 = vsel %vm978, %v977, 0
        %v980 = vshrl.u32 %v979, 5
        %v981 = vand.u32 %v979, 31
        %v982 = vsub.s32 32, %v981
        %v983 = vshrl.u32 683565275, %v982
        %v984 = vshll.u32 683565275, %v981
        %v985 = vshrl.u32 2475754826, %v982
        %v986 = vor.u32 %v984, %v985
        %v987 = vshll.u32 2475754826, %v981
        %v988 = vshrl.u32 2131351028, %v982
        %v989 = vor.u32 %v987, %v988
        %v990 = vshll.u32 2131351028, %v981
        %v991 = vshrl.u32 2102212464, %v982
        %v992 = vor.u32 %v990, %v991
        %v993 = vshll.u32 2102212464, %v981
        %v994 = vshrl.u32 920167782, %v982
        %v995 = vor.u32 %v993, %v994
        %v996 = vshll.u32 920167782, %v981
        %v997 = vshrl.u32 1326507024, %v982
        %v998 = vor.u32 %v996, %v997
        %vm999 = vcmp.lt.s32.totalorder %v980, 1
        %vm1000 = vcmp.lt.s32.totalorder %v980, 2
        %vm1001 = vcmp.lt.s32.totalorder %v980, 3
        %vm1002 = vcmp.lt.s32.totalorder %v980, 4
        %v1003 = vsel %vm999, %v983, %v986
        %v1004 = vsel %vm1002, %v992, 2102212464
        %v1005 = vsel %vm1001, %v989, %v1004
        %v1006 = vsel %vm1000, %v1003, %v1005
        %v1007 = vsel %vm999, %v986, %v989
        %v1008 = vsel %vm1002, %v995, 920167782
        %v1009 = vsel %vm1001, %v992, %v1008
        %v1010 = vsel %vm1000, %v1007, %v1009
        %v1011 = vsel %vm999, %v989, %v992
        %v1012 = vsel %vm1002, %v998, 1326507024
        %v1013 = vsel %vm1001, %v995, %v1012
        %v1014 = vsel %vm1000, %v1011, %v1013
        %v1015 = vshll.u32 %v975, 8
        %v1016 = vand.u32 %v1015, 65535
        %v1017 = vshrl.u32 %v1015, 16
        %v1018 = vand.u32 %v1014, 65535
        %v1019 = vshrl.u32 %v1014, 16
        %v1020 = vmul.u32 %v1016, %v1018
        %v1021 = vmul.u32 %v1016, %v1019
        %v1022 = vmul.u32 %v1017, %v1018
        %v1023 = vmul.u32 %v1017, %v1019
        %v1024 = vshll.u32 %v1021, 16
        %v1025 = vshrl.u32 %v1021, 16
        %v1026 = vshll.u32 %v1022, 16
        %v1027 = vshrl.u32 %v1022, 16
        %vm1028 = vc.u32 %v1020, %v1024
        %v1029 = vsel %vm1028, 1, 0
        %v1030 = vadd.s32 %v1020, %v1024
        %v1031 = vadd.s32 %v1023, %v1029
        %vm1032 = vc.u32 %v1030, %v1026
        %v1033 = vsel %vm1032, 1, 0
        %v1034 = vadd.s32 %v1030, %v1026
        %v1035 = vadd.s32 %v1031, %v1033
        %v1036 = vadd.s32 %v1035, %v1025
        %v1037 = vadd.s32 %v1036, %v1027
        %v1038 = vand.u32 %v1015, 65535
        %v1039 = vshrl.u32 %v1015, 16
        %v1040 = vand.u32 %v1010, 65535
        %v1041 = vshrl.u32 %v1010, 16
        %v1042 = vmul.u32 %v1038, %v1040
        %v1043 = vmul.u32 %v1038, %v1041
        %v1044 = vmul.u32 %v1039, %v1040
        %v1045 = vmul.u32 %v1039, %v1041
        %v1046 = vshll.u32 %v1043, 16
        %v1047 = vshrl.u32 %v1043, 16
        %v1048 = vshll.u32 %v1044, 16
        %v1049 = vshrl.u32 %v1044, 16
        %vm1050 = vc.u32 %v1042, %v1046
        %v1051 = vsel %vm1050, 1, 0
        %v1052 = vadd.s32 %v1042, %v1046
        %v1053 = vadd.s32 %v1045, %v1051
        %vm1054 = vc.u32 %v1052, %v1048
        %v1055 = vsel %vm1054, 1, 0
        %v1056 = vadd.s32 %v1052, %v1048
        %v1057 = vadd.s32 %v1053, %v1055
        %v1058 = vadd.s32 %v1057, %v1047
        %v1059 = vadd.s32 %v1058, %v1049
        %v1060 = vmul.u32 %v1015, %v1006
        %v1061 = vadd.s32 %v1037, %v1056
        %vm1062 = vc.u32 %v1037, %v1056
        %v1063 = vadd.s32 %v1059, 1
        %v1064 = vsel %vm1062, %v1063, %v1059
        %v1065 = vadd.s32 %v1060, %v1064
        %v1066 = vadd.s32 %v1065, 536870912
        %v1067 = vshrl.u32 %v1066, 30
        %v1068 = vshll.u32 %v1067, 30
        %v1069 = vsub.s32 %v1065, %v1068
        %vm1070 = vcmp.lt.s32.totalorder %v1069, 0
        %v1071 = vsub.s32 0, %v1069
        %v1072 = vsel %vm1070, %v1071, %v1069
        %v1073 = vclz %v1072
        %v1074 = vsub.s32 %v1073, 2
        %vm1075 = vcmp.gt.s32.totalorder 0, %v1074
        %v1076 = vsel %vm1075, 0, %v1074
        %v1077 = vsub.s32 32, %v1076
        %v1078 = vshll.u32 %v1069, %v1076
        %v1079 = vshrl.u32 %v1061, %v1077
        %v1080 = vor.u32 %v1078, %v1079
        %v1081 = vsub.s32 4294967266, %v1076
        %v1082 = vadd.s32 %v1081, 127
        %v1083 = vshll.u32 %v1082, 23
        %v1084 = vor.u32 4788187, %v1083
        %v1085 = vand.u32 2147483647, %v1084
        %v1087 = vcvt.s32.f32 %v1080
        %v1088 = vmul.f32 %v1087, %v1085
        %v1089 = vxor.u32 %v1088, 2147483648
        %v1090 = vsel %vm969, %v1089, %v1088
        %v1091 = vsub.s32 4, %v1067
        %v1092 = vsel %vm969, %v1091, %v1067
        %v1093 = vsel %vm968, %v966, %v1090
        %v1094 = vsel %vm968, 0, %v1092
        %v1095 = vmul.f32 %v1093, %v1093
        %v1096 = vmul.f32 %v1095, -0.001358992
        %v1097 = vadd.f32 %v1096, 0.041655596
        %v1098 = vmul.f32 %v1095, %v1097
        %v1099 = vadd.f32 %v1098, -0.4999988
        %v1100 = vmul.f32 %v1095, %v1099
        %v1101 = vadd.f32 1.0, %v1100
        %v1102 = vmul.f32 %v1093, %v1093
        %v1103 = vmul.f32 %v1102, -0.00019511016
        %v1104 = vadd.f32 %v1103, 0.008332121
        %v1105 = vmul.f32 %v1102, %v1104
        %v1106 = vadd.f32 %v1105, -0.16666654
        %v1107 = vmul.f32 %v1102, %v1106
        %v1108 = vadd.f32 %v1107, 1.0
        %v1109 = vmul.f32 %v1108, %v1093
        %vm1110 = vweird.f32 %v966
        %v1111 = vadd.s32 %v1094, 3
        %v1112 = vand.u32 %v1111, 3
        %vm1113 = vcmp.lt.s32.totalorder %v1112, 2
        %vm1114 = vcmp.eq.s32.totalorder %v1112, 0
        %v1115 = vxor.u32 %v1109, 2147483648
        %v1116 = vsel %vm1114, %v1101, %v1115
        %vm1117 = vcmp.eq.s32.totalorder %v1112, 2
        %v1118 = vxor.u32 %v1101, 2147483648
        %v1119 = vsel %vm1117, %v1118, %v1109
        %v1120 = vsel %vm1113, %v1116, %v1119
        %v1121 = vsel %vm1110, nan, %v1120
        %v1122 = vmul.f32 %v1121, %v965
        %v1123 = vmul.f32 %v1122, 13.328649
        %v1124 = vmul.f32 %v156, 0.07957747
        %v1125 = vmul.f32 %v141, 12.566371
        %v1126 = vand.u32 2147483647, %v1125
        %vm1127 = vcmp.le.f32.partialorder %v1126, 0.7853982
        %vm1128 = vcmp.lt.s32.totalorder %v1125, 0
        %v1129 = vand.u32 %v1125, 2139095040
        %v1130 = vshrl.u32 %v1129, 23
        %v1131 = vsub.s32 %v1130, 127
        %v1132 = vand.u32 2147483647, %v1125
        %v1133 = vand.u32 %v1132, 8388607
        %v1134 = vor.u32 %v1133, 8388608
        %v1135 = vsub.s32 0, %v1134
        %v1136 = vadd.s32 %v1131, 1
        %vm1137 = vcmp.gt.s32.totalorder %v1136, 0
        %v1138 = vsel %vm1137, %v1136, 0
        %v1139 = vshrl.u32 %v1138, 5
        %v1140 = vand.u32 %v1138, 31
        %v1141 = vsub.s32 32, %v1140
        %v1142 = vshrl.u32 683565275, %v1141
        %v1143 = vshll.u32 683565275, %v1140
        %v1144 = vshrl.u32 2475754826, %v1141
        %v1145 = vor.u32 %v1143, %v1144
        %v1146 = vshll.u32 2475754826, %v1140
        %v1147 = vshrl.u32 2131351028, %v1141
        %v1148 = vor.u32 %v1146, %v1147
        %v1149 = vshll.u32 2131351028, %v1140
        %v1150 = vshrl.u32 2102212464, %v1141
        %v1151 = vor.u32 %v1149, %v1150
        %v1152 = vshll.u32 2102212464, %v1140
        %v1153 = vshrl.u32 920167782, %v1141
        %v1154 = vor.u32 %v1152, %v1153
        %v1155 = vshll.u32 920167782, %v1140
        %v1156 = vshrl.u32 1326507024, %v1141
        %v1157 = vor.u32 %v1155, %v1156
        %vm1158 = vcmp.lt.s32.totalorder %v1139, 1
        %vm1159 = vcmp.lt.s32.totalorder %v1139, 2
        %vm1160 = vcmp.lt.s32.totalorder %v1139, 3
        %vm1161 = vcmp.lt.s32.totalorder %v1139, 4
        %v1162 = vsel %vm1158, %v1142, %v1145
        %v1163 = vsel %vm1161, %v1151, 2102212464
        %v1164 = vsel %vm1160, %v1148, %v1163
        %v1165 = vsel %vm1159, %v1162, %v1164
        %v1166 = vsel %vm1158, %v1145, %v1148
        %v1167 = vsel %vm1161, %v1154, 920167782
        %v1168 = vsel %vm1160, %v1151, %v1167
        %v1169 = vsel %vm1159, %v1166, %v1168
        %v1170 = vsel %vm1158, %v1148, %v1151
        %v1171 = vsel %vm1161, %v1157, 1326507024
        %v1172 = vsel %vm1160, %v1154, %v1171
        %v1173 = vsel %vm1159, %v1170, %v1172
        %v1174 = vshll.u32 %v1134, 8
        %v1175 = vand.u32 %v1174, 65535
        %v1176 = vshrl.u32 %v1174, 16
        %v1177 = vand.u32 %v1173, 65535
        %v1178 = vshrl.u32 %v1173, 16
        %v1179 = vmul.u32 %v1175, %v1177
        %v1180 = vmul.u32 %v1175, %v1178
        %v1181 = vmul.u32 %v1176, %v1177
        %v1182 = vmul.u32 %v1176, %v1178
        %v1183 = vshll.u32 %v1180, 16
        %v1184 = vshrl.u32 %v1180, 16
        %v1185 = vshll.u32 %v1181, 16
        %v1186 = vshrl.u32 %v1181, 16
        %vm1187 = vc.u32 %v1179, %v1183
        %v1188 = vsel %vm1187, 1, 0
        %v1189 = vadd.s32 %v1179, %v1183
        %v1190 = vadd.s32 %v1182, %v1188
        %vm1191 = vc.u32 %v1189, %v1185
        %v1192 = vsel %vm1191, 1, 0
        %v1193 = vadd.s32 %v1189, %v1185
        %v1194 = vadd.s32 %v1190, %v1192
        %v1195 = vadd.s32 %v1194, %v1184
        %v1196 = vadd.s32 %v1195, %v1186
        %v1197 = vand.u32 %v1174, 65535
        %v1198 = vshrl.u32 %v1174, 16
        %v1199 = vand.u32 %v1169, 65535
        %v1200 = vshrl.u32 %v1169, 16
        %v1201 = vmul.u32 %v1197, %v1199
        %v1202 = vmul.u32 %v1197, %v1200
        %v1203 = vmul.u32 %v1198, %v1199
        %v1204 = vmul.u32 %v1198, %v1200
        %v1205 = vshll.u32 %v1202, 16
        %v1206 = vshrl.u32 %v1202, 16
        %v1207 = vshll.u32 %v1203, 16
        %v1208 = vshrl.u32 %v1203, 16
        %vm1209 = vc.u32 %v1201, %v1205
        %v1210 = vsel %vm1209, 1, 0
        %v1211 = vadd.s32 %v1201, %v1205
        %v1212 = vadd.s32 %v1204, %v1210
        %vm1213 = vc.u32 %v1211, %v1207
        %v1214 = vsel %vm1213, 1, 0
        %v1215 = vadd.s32 %v1211, %v1207
        %v1216 = vadd.s32 %v1212, %v1214
        %v1217 = vadd.s32 %v1216, %v1206
        %v1218 = vadd.s32 %v1217, %v1208
        %v1219 = vmul.u32 %v1174, %v1165
        %v1220 = vadd.s32 %v1196, %v1215
        %vm1221 = vc.u32 %v1196, %v1215
        %v1222 = vadd.s32 %v1218, 1
        %v1223 = vsel %vm1221, %v1222, %v1218
        %v1224 = vadd.s32 %v1219, %v1223
        %v1225 = vadd.s32 %v1224, 536870912
        %v1226 = vshrl.u32 %v1225, 30
        %v1227 = vshll.u32 %v1226, 30
        %v1228 = vsub.s32 %v1224, %v1227
        %vm1229 = vcmp.lt.s32.totalorder %v1228, 0
        %v1230 = vsub.s32 0, %v1228
        %v1231 = vsel %vm1229, %v1230, %v1228
        %v1232 = vclz %v1231
        %v1233 = vsub.s32 %v1232, 2
        %vm1234 = vcmp.gt.s32.totalorder 0, %v1233
        %v1235 = vsel %vm1234, 0, %v1233
        %v1236 = vsub.s32 32, %v1235
        %v1237 = vshll.u32 %v1228, %v1235
        %v1238 = vshrl.u32 %v1220, %v1236
        %v1239 = vor.u32 %v1237, %v1238
        %v1240 = vsub.s32 4294967266, %v1235
        %v1241 = vadd.s32 %v1240, 127
        %v1242 = vshll.u32 %v1241, 23
        %v1243 = vor.u32 4788187, %v1242
        %v1244 = vand.u32 2147483647, %v1243
        %v1246 = vcvt.s32.f32 %v1239
        %v1247 = vmul.f32 %v1246, %v1244
        %v1248 = vxor.u32 %v1247, 2147483648
        %v1249 = vsel %vm1128, %v1248, %v1247
        %v1250 = vsub.s32 4, %v1226
        %v1251 = vsel %vm1128, %v1250, %v1226
        %v1252 = vsel %vm1127, %v1125, %v1249
        %v1253 = vsel %vm1127, 0, %v1251
        %v1254 = vmul.f32 %v1252, %v1252
        %v1255 = vmul.f32 %v1254, -0.001358992
        %v1256 = vadd.f32 %v1255, 0.041655596
        %v1257 = vmul.f32 %v1254, %v1256
        %v1258 = vadd.f32 %v1257, -0.4999988
        %v1259 = vmul.f32 %v1254, %v1258
        %v1260 = vadd.f32 1.0, %v1259
        %v1261 = vmul.f32 %v1252, %v1252
        %v1262 = vmul.f32 %v1261, -0.00019511016
        %v1263 = vadd.f32 %v1262, 0.008332121
        %v1264 = vmul.f32 %v1261, %v1263
        %v1265 = vadd.f32 %v1264, -0.16666654
        %v1266 = vmul.f32 %v1261, %v1265
        %v1267 = vadd.f32 %v1266, 1.0
        %v1268 = vmul.f32 %v1267, %v1252
        %vm1269 = vweird.f32 %v1125
        %v1270 = vadd.s32 %v1253, 3
        %v1271 = vand.u32 %v1270, 3
        %vm1272 = vcmp.lt.s32.totalorder %v1271, 2
        %vm1273 = vcmp.eq.s32.totalorder %v1271, 0
        %v1274 = vxor.u32 %v1268, 2147483648
        %v1275 = vsel %vm1273, %v1260, %v1274
        %vm1276 = vcmp.eq.s32.totalorder %v1271, 2
        %v1277 = vxor.u32 %v1260, 2147483648
        %v1278 = vsel %vm1276, %v1277, %v1268
        %v1279 = vsel %vm1272, %v1275, %v1278
        %v1280 = vsel %vm1269, nan, %v1279
        %v1281 = vmul.f32 %v1280, %v1124
        %v1282 = vmul.f32 %v1281, 17.771532
        %v1283 = vmul.f32 %v805, 0.2820948
        %v1284 = vmul.f32 %v964, 0.2820948
        %v1285 = vmul.f32 %v1123, 0.2820948
        %v1286 = vmul.f32 %v1282, 0.2820948
        %v1287 = vmul.f32 %v156, 0.22254816
        %v1288 = vmul.f32 %v141, 4.4934096
        %v1289 = vand.u32 2147483647, %v1288
        %vm1290 = vcmp.le.f32.partialorder %v1289, 0.7853982
        %vm1291 = vcmp.lt.s32.totalorder %v1288, 0
        %v1292 = vand.u32 %v1288, 2139095040
        %v1293 = vshrl.u32 %v1292, 23
        %v1294 = vsub.s32 %v1293, 127
        %v1295 = vand.u32 2147483647, %v1288
        %v1296 = vand.u32 %v1295, 8388607
        %v1297 = vor.u32 %v1296, 8388608
        %v1298 = vsub.s32 0, %v1297
        %v1299 = vadd.s32 %v1294, 1
        %vm1300 = vcmp.gt.s32.totalorder %v1299, 0
        %v1301 = vsel %vm1300, %v1299, 0
        %v1302 = vshrl.u32 %v1301, 5
        %v1303 = vand.u32 %v1301, 31
        %v1304 = vsub.s32 32, %v1303
        %v1305 = vshrl.u32 683565275, %v1304
        %v1306 = vshll.u32 683565275, %v1303
        %v1307 = vshrl.u32 2475754826, %v1304
        %v1308 = vor.u32 %v1306, %v1307
        %v1309 = vshll.u32 2475754826, %v1303
        %v1310 = vshrl.u32 2131351028, %v1304
        %v1311 = vor.u32 %v1309, %v1310
        %v1312 = vshll.u32 2131351028, %v1303
        %v1313 = vshrl.u32 2102212464, %v1304
        %v1314 = vor.u32 %v1312, %v1313
        %v1315 = vshll.u32 2102212464, %v1303
        %v1316 = vshrl.u32 920167782, %v1304
        %v1317 = vor.u32 %v1315, %v1316
        %v1318 = vshll.u32 920167782, %v1303
        %v1319 = vshrl.u32 1326507024, %v1304
        %v1320 = vor.u32 %v1318, %v1319
        %vm1321 = vcmp.lt.s32.totalorder %v1302, 1
        %vm1322 = vcmp.lt.s32.totalorder %v1302, 2
        %vm1323 = vcmp.lt.s32.totalorder %v1302, 3
        %vm1324 = vcmp.lt.s32.totalorder %v1302, 4
        %v1325 = vsel %vm1321, %v1305, %v1308
        %v1326 = vsel %vm1324, %v1314, 2102212464
        %v1327 = vsel %vm1323, %v1311, %v1326
        %v1328 = vsel %vm1322, %v1325, %v1327
        %v1329 = vsel %vm1321, %v1308, %v1311
        %v1330 = vsel %vm1324, %v1317, 920167782
        %v1331 = vsel %vm1323, %v1314, %v1330
        %v1332 = vsel %vm1322, %v1329, %v1331
        %v1333 = vsel %vm1321, %v1311, %v1314
        %v1334 = vsel %vm1324, %v1320, 1326507024
        %v1335 = vsel %vm1323, %v1317, %v1334
        %v1336 = vsel %vm1322, %v1333, %v1335
        %v1337 = vshll.u32 %v1297, 8
        %v1338 = vand.u32 %v1337, 65535
        %v1339 = vshrl.u32 %v1337, 16
        %v1340 = vand.u32 %v1336, 65535
        %v1341 = vshrl.u32 %v1336, 16
        %v1342 = vmul.u32 %v1338, %v1340
        %v1343 = vmul.u32 %v1338, %v1341
        %v1344 = vmul.u32 %v1339, %v1340
        %v1345 = vmul.u32 %v1339, %v1341
        %v1346 = vshll.u32 %v1343, 16
        %v1347 = vshrl.u32 %v1343, 16
        %v1348 = vshll.u32 %v1344, 16
        %v1349 = vshrl.u32 %v1344, 16
        %vm1350 = vc.u32 %v1342, %v1346
        %v1351 = vsel %vm1350, 1, 0
        %v1352 = vadd.s32 %v1342, %v1346
        %v1353 = vadd.s32 %v1345, %v1351
        %vm1354 = vc.u32 %v1352, %v1348
        %v1355 = vsel %vm1354, 1, 0
        %v1356 = vadd.s32 %v1352, %v1348
        %v1357 = vadd.s32 %v1353, %v1355
        %v1358 = vadd.s32 %v1357, %v1347
        %v1359 = vadd.s32 %v1358, %v1349
        %v1360 = vand.u32 %v1337, 65535
        %v1361 = vshrl.u32 %v1337, 16
        %v1362 = vand.u32 %v1332, 65535
        %v1363 = vshrl.u32 %v1332, 16
        %v1364 = vmul.u32 %v1360, %v1362
        %v1365 = vmul.u32 %v1360, %v1363
        %v1366 = vmul.u32 %v1361, %v1362
        %v1367 = vmul.u32 %v1361, %v1363
        %v1368 = vshll.u32 %v1365, 16
        %v1369 = vshrl.u32 %v1365, 16
        %v1370 = vshll.u32 %v1366, 16
        %v1371 = vshrl.u32 %v1366, 16
        %vm1372 = vc.u32 %v1364, %v1368
        %v1373 = vsel %vm1372, 1, 0
        %v1374 = vadd.s32 %v1364, %v1368
        %v1375 = vadd.s32 %v1367, %v1373
        %vm1376 = vc.u32 %v1374, %v1370
        %v1377 = vsel %vm1376, 1, 0
        %v1378 = vadd.s32 %v1374, %v1370
        %v1379 = vadd.s32 %v1375, %v1377
        %v1380 = vadd.s32 %v1379, %v1369
        %v1381 = vadd.s32 %v1380, %v1371
        %v1382 = vmul.u32 %v1337, %v1328
        %v1383 = vadd.s32 %v1359, %v1378
        %vm1384 = vc.u32 %v1359, %v1378
        %v1385 = vadd.s32 %v1381, 1
        %v1386 = vsel %vm1384, %v1385, %v1381
        %v1387 = vadd.s32 %v1382, %v1386
        %v1388 = vadd.s32 %v1387, 536870912
        %v1389 = vshrl.u32 %v1388, 30
        %v1390 = vshll.u32 %v1389, 30
        %v1391 = vsub.s32 %v1387, %v1390
        %vm1392 = vcmp.lt.s32.totalorder %v1391, 0
        %v1393 = vsub.s32 0, %v1391
        %v1394 = vsel %vm1392, %v1393, %v1391
        %v1395 = vclz %v1394
        %v1396 = vsub.s32 %v1395, 2
        %vm1397 = vcmp.gt.s32.totalorder 0, %v1396
        %v1398 = vsel %vm1397, 0, %v1396
        %v1399 = vsub.s32 32, %v1398
        %v1400 = vshll.u32 %v1391, %v1398
        %v1401 = vshrl.u32 %v1383, %v1399
        %v1402 = vor.u32 %v1400, %v1401
        %v1403 = vsub.s32 4294967266, %v1398
        %v1404 = vadd.s32 %v1403, 127
        %v1405 = vshll.u32 %v1404, 23
        %v1406 = vor.u32 4788187, %v1405
        %v1407 = vand.u32 2147483647, %v1406
        %v1409 = vcvt.s32.f32 %v1402
        %v1410 = vmul.f32 %v1409, %v1407
        %v1411 = vxor.u32 %v1410, 2147483648
        %v1412 = vsel %vm1291, %v1411, %v1410
        %v1413 = vsub.s32 4, %v1389
        %v1414 = vsel %vm1291, %v1413, %v1389
        %v1415 = vsel %vm1290, %v1288, %v1412
        %v1416 = vsel %vm1290, 0, %v1414
        %v1417 = vmul.f32 %v1415, %v1415
        %v1418 = vmul.f32 %v1417, -0.001358992
        %v1419 = vadd.f32 %v1418, 0.041655596
        %v1420 = vmul.f32 %v1417, %v1419
        %v1421 = vadd.f32 %v1420, -0.4999988
        %v1422 = vmul.f32 %v1417, %v1421
        %v1423 = vadd.f32 1.0, %v1422
        %v1424 = vmul.f32 %v1415, %v1415
        %v1425 = vmul.f32 %v1424, -0.00019511016
        %v1426 = vadd.f32 %v1425, 0.008332121
        %v1427 = vmul.f32 %v1424, %v1426
        %v1428 = vadd.f32 %v1427, -0.16666654
        %v1429 = vmul.f32 %v1424, %v1428
        %v1430 = vadd.f32 %v1429, 1.0
        %v1431 = vmul.f32 %v1430, %v1415
        %vm1432 = vweird.f32 %v1288
        %v1433 = vadd.s32 %v1416, 3
        %v1434 = vand.u32 %v1433, 3
        %vm1435 = vcmp.lt.s32.totalorder %v1434, 2
        %vm1436 = vcmp.eq.s32.totalorder %v1434, 0
        %v1437 = vxor.u32 %v1431, 2147483648
        %v1438 = vsel %vm1436, %v1423, %v1437
        %vm1439 = vcmp.eq.s32.totalorder %v1434, 2
        %v1440 = vxor.u32 %v1423, 2147483648
        %v1441 = vsel %vm1439, %v1440, %v1431
        %v1442 = vsel %vm1435, %v1438, %v1441
        %v1443 = vsel %vm1432, nan, %v1442
        %v1444 = vmul.f32 %v1443, %v1287
        %v1445 = vand.u32 2147483647, %v1288
        %vm1446 = vcmp.le.f32.partialorder %v1445, 0.7853982
        %vm1447 = vcmp.lt.s32.totalorder %v1288, 0
        %v1448 = vand.u32 %v1288, 2139095040
        %v1449 = vshrl.u32 %v1448, 23
        %v1450 = vsub.s32 %v1449, 127
        %v1451 = vand.u32 2147483647, %v1288
        %v1452 = vand.u32 %v1451, 8388607
        %v1453 = vor.u32 %v1452, 8388608
        %v1454 = vsub.s32 0, %v1453
        %v1455 = vadd.s32 %v1450, 1
        %vm1456 = vcmp.gt.s32.totalorder %v1455, 0
        %v1457 = vsel %vm1456, %v1455, 0
        %v1458 = vshrl.u32 %v1457, 5
        %v1459 = vand.u32 %v1457, 31
        %v1460 = vsub.s32 32, %v1459
        %v1461 = vshrl.u32 683565275, %v1460
        %v1462 = vshll.u32 683565275, %v1459
        %v1463 = vshrl.u32 2475754826, %v1460
        %v1464 = vor.u32 %v1462, %v1463
        %v1465 = vshll.u32 2475754826, %v1459
        %v1466 = vshrl.u32 2131351028, %v1460
        %v1467 = vor.u32 %v1465, %v1466
        %v1468 = vshll.u32 2131351028, %v1459
        %v1469 = vshrl.u32 2102212464, %v1460
        %v1470 = vor.u32 %v1468, %v1469
        %v1471 = vshll.u32 2102212464, %v1459
        %v1472 = vshrl.u32 920167782, %v1460
        %v1473 = vor.u32 %v1471, %v1472
        %v1474 = vshll.u32 920167782, %v1459
        %v1475 = vshrl.u32 1326507024, %v1460
        %v1476 = vor.u32 %v1474, %v1475
        %vm1477 = vcmp.lt.s32.totalorder %v1458, 1
        %vm1478 = vcmp.lt.s32.totalorder %v1458, 2
        %vm1479 = vcmp.lt.s32.totalorder %v1458, 3
        %vm1480 = vcmp.lt.s32.totalorder %v1458, 4
        %v1481 = vsel %vm1477, %v1461, %v1464
        %v1482 = vsel %vm1480, %v1470, 2102212464
        %v1483 = vsel %vm1479, %v1467, %v1482
        %v1484 = vsel %vm1478, %v1481, %v1483
        %v1485 = vsel %vm1477, %v1464, %v1467
        %v1486 = vsel %vm1480, %v1473, 920167782
        %v1487 = vsel %vm1479, %v1470, %v1486
        %v1488 = vsel %vm1478, %v1485, %v1487
        %v1489 = vsel %vm1477, %v1467, %v1470
        %v1490 = vsel %vm1480, %v1476, 1326507024
        %v1491 = vsel %vm1479, %v1473, %v1490
        %v1492 = vsel %vm1478, %v1489, %v1491
        %v1493 = vshll.u32 %v1453, 8
        %v1494 = vand.u32 %v1493, 65535
        %v1495 = vshrl.u32 %v1493, 16
        %v1496 = vand.u32 %v1492, 65535
        %v1497 = vshrl.u32 %v1492, 16
        %v1498 = vmul.u32 %v1494, %v1496
        %v1499 = vmul.u32 %v1494, %v1497
        %v1500 = vmul.u32 %v1495, %v1496
        %v1501 = vmul.u32 %v1495, %v1497
        %v1502 = vshll.u32 %v1499, 16
        %v1503 = vshrl.u32 %v1499, 16
        %v1504 = vshll.u32 %v1500, 16
        %v1505 = vshrl.u32 %v1500, 16
        %vm1506 = vc.u32 %v1498, %v1502
        %v1507 = vsel %vm1506, 1, 0
        %v1508 = vadd.s32 %v1498, %v1502
        %v1509 = vadd.s32 %v1501, %v1507
        %vm1510 = vc.u32 %v1508, %v1504
        %v1511 = vsel %vm1510, 1, 0
        %v1512 = vadd.s32 %v1508, %v1504
        %v1513 = vadd.s32 %v1509, %v1511
        %v1514 = vadd.s32 %v1513, %v1503
        %v1515 = vadd.s32 %v1514, %v1505
        %v1516 = vand.u32 %v1493, 65535
        %v1517 = vshrl.u32 %v1493, 16
        %v1518 = vand.u32 %v1488, 65535
        %v1519 = vshrl.u32 %v1488, 16
        %v1520 = vmul.u32 %v1516, %v1518
        %v1521 = vmul.u32 %v1516, %v1519
        %v1522 = vmul.u32 %v1517, %v1518
        %v1523 = vmul.u32 %v1517, %v1519
        %v1524 = vshll.u32 %v1521, 16
        %v1525 = vshrl.u32 %v1521, 16
        %v1526 = vshll.u32 %v1522, 16
        %v1527 = vshrl.u32 %v1522, 16
        %vm1528 = vc.u32 %v1520, %v1524
        %v1529 = vsel %vm1528, 1, 0
        %v1530 = vadd.s32 %v1520, %v1524
        %v1531 = vadd.s32 %v1523, %v1529
        %vm1532 = vc.u32 %v1530, %v1526
        %v1533 = vsel %vm1532, 1, 0
        %v1534 = vadd.s32 %v1530, %v1526
        %v1535 = vadd.s32 %v1531, %v1533
        %v1536 = vadd.s32 %v1535, %v1525
        %v1537 = vadd.s32 %v1536, %v1527
        %v1538 = vmul.u32 %v1493, %v1484
        %v1539 = vadd.s32 %v1515, %v1534
        %vm1540 = vc.u32 %v1515, %v1534
        %v1541 = vadd.s32 %v1537, 1
        %v1542 = vsel %vm1540, %v1541, %v1537
        %v1543 = vadd.s32 %v1538, %v1542
        %v1544 = vadd.s32 %v1543, 536870912
        %v1545 = vshrl.u32 %v1544, 30
        %v1546 = vshll.u32 %v1545, 30
        %v1547 = vsub.s32 %v1543, %v1546
        %vm1548 = vcmp.lt.s32.totalorder %v1547, 0
        %v1549 = vsub.s32 0, %v1547
        %v1550 = vsel %vm1548, %v1549, %v1547
        %v1551 = vclz %v1550
        %v1552 = vsub.s32 %v1551, 2
        %vm1553 = vcmp.gt.s32.totalorder 0, %v1552
        %v1554 = vsel %vm1553, 0, %v1552
        %v1555 = vsub.s32 32, %v1554
        %v1556 = vshll.u32 %v1547, %v1554
        %v1557 = vshrl.u32 %v1539, %v1555
        %v1558 = vor.u32 %v1556, %v1557
        %v1559 = vsub.s32 4294967266, %v1554
        %v1560 = vadd.s32 %v1559, 127
        %v1561 = vshll.u32 %v1560, 23
        %v1562 = vor.u32 4788187, %v1561
        %v1563 = vand.u32 2147483647, %v1562
        %v1565 = vcvt.s32.f32 %v1558
        %v1566 = vmul.f32 %v1565, %v1563
        %v1567 = vxor.u32 %v1566, 2147483648
        %v1568 = vsel %vm1447, %v1567, %v1566
        %v1569 = vsub.s32 4, %v1545
        %v1570 = vsel %vm1447, %v1569, %v1545
        %v1571 = vsel %vm1446, %v1288, %v1568
        %v1572 = vsel %vm1446, 0, %v1570
        %v1573 = vmul.f32 %v1571, %v1571
        %v1574 = vmul.f32 %v1573, -0.001358992
        %v1575 = vadd.f32 %v1574, 0.041655596
        %v1576 = vmul.f32 %v1573, %v1575
        %v1577 = vadd.f32 %v1576, -0.4999988
        %v1578 = vmul.f32 %v1573, %v1577
        %v1579 = vadd.f32 1.0, %v1578
        %v1580 = vmul.f32 %v1571, %v1571
        %v1581 = vmul.f32 %v1580, -0.00019511016
        %v1582 = vadd.f32 %v1581, 0.008332121
        %v1583 = vmul.f32 %v1580, %v1582
        %v1584 = vadd.f32 %v1583, -0.16666654
        %v1585 = vmul.f32 %v1580, %v1584
        %v1586 = vadd.f32 %v1585, 1.0
        %v1587 = vmul.f32 %v1586, %v1571
        %vm1588 = vweird.f32 %v1288
        %v1589 = vand.u32 %v1572, 3
        %vm1590 = vcmp.lt.s32.totalorder %v1589, 2
        %vm1591 = vcmp.eq.s32.totalorder %v1589, 0
        %v1592 = vxor.u32 %v1587, 2147483648
        %v1593 = vsel %vm1591, %v1579, %v1592
        %vm1594 = vcmp.eq.s32.totalorder %v1589, 2
        %v1595 = vxor.u32 %v1579, 2147483648
        %v1596 = vsel %vm1594, %v1595, %v1587
        %v1597 = vsel %vm1590, %v1593, %v1596
        %v1598 = vsel %vm1588, nan, %v1597
        %v1599 = vsub.f32 %v1444, %v1598
        %v1600 = vmul.f32 %v1599, %v1287
        %v1601 = vmul.f32 %v1600, 6.510104
        %v1602 = vmul.f32 %v156, 0.12944561
        %v1603 = vmul.f32 %v141, 7.7252517
        %v1604 = vand.u32 2147483647, %v1603
        %vm1605 = vcmp.le.f32.partialorder %v1604, 0.7853982
        %vm1606 = vcmp.lt.s32.totalorder %v1603, 0
        %v1607 = vand.u32 %v1603, 2139095040
        %v1608 = vshrl.u32 %v1607, 23
        %v1609 = vsub.s32 %v1608, 127
        %v1610 = vand.u32 2147483647, %v1603
        %v1611 = vand.u32 %v1610, 8388607
        %v1612 = vor.u32 %v1611, 8388608
        %v1613 = vsub.s32 0, %v1612
        %v1614 = vadd.s32 %v1609, 1
        %vm1615 = vcmp.gt.s32.totalorder %v1614, 0
        %v1616 = vsel %vm1615, %v1614, 0
        %v1617 = vshrl.u32 %v1616, 5
        %v1618 = vand.u32 %v1616, 31
        %v1619 = vsub.s32 32, %v1618
        %v1620 = vshrl.u32 683565275, %v1619
        %v1621 = vshll.u32 683565275, %v1618
        %v1622 = vshrl.u32 2475754826, %v1619
        %v1623 = vor.u32 %v1621, %v1622
        %v1624 = vshll.u32 2475754826, %v1618
        %v1625 = vshrl.u32 2131351028, %v1619
        %v1626 = vor.u32 %v1624, %v1625
        %v1627 = vshll.u32 2131351028, %v1618
        %v1628 = vshrl.u32 2102212464, %v1619
        %v1629 = vor.u32 %v1627, %v1628
        %v1630 = vshll.u32 2102212464, %v1618
        %v1631 = vshrl.u32 920167782, %v1619
        %v1632 = vor.u32 %v1630, %v1631
        %v1633 = vshll.u32 920167782, %v1618
        %v1634 = vshrl.u32 1326507024, %v1619
        %v1635 = vor.u32 %v1633, %v1634
        %vm1636 = vcmp.lt.s32.totalorder %v1617, 1
        %vm1637 = vcmp.lt.s32.totalorder %v1617, 2
        %vm1638 = vcmp.lt.s32.totalorder %v1617, 3
        %vm1639 = vcmp.lt.s32.totalorder %v1617, 4
        %v1640 = vsel %vm1636, %v1620, %v1623
        %v1641 = vsel %vm1639, %v1629, 2102212464
        %v1642 = vsel %vm1638, %v1626, %v1641
        %v1643 = vsel %vm1637, %v1640, %v1642
        %v1644 = vsel %vm1636, %v1623, %v1626
        %v1645 = vsel %vm1639, %v1632, 920167782
        %v1646 = vsel %vm1638, %v1629, %v1645
        %v1647 = vsel %vm1637, %v1644, %v1646
        %v1648 = vsel %vm1636, %v1626, %v1629
        %v1649 = vsel %vm1639, %v1635, 1326507024
        %v1650 = vsel %vm1638, %v1632, %v1649
        %v1651 = vsel %vm1637, %v1648, %v1650
        %v1652 = vshll.u32 %v1612, 8
        %v1653 = vand.u32 %v1652, 65535
        %v1654 = vshrl.u32 %v1652, 16
        %v1655 = vand.u32 %v1651, 65535
        %v1656 = vshrl.u32 %v1651, 16
        %v1657 = vmul.u32 %v1653, %v1655
        %v1658 = vmul.u32 %v1653, %v1656
        %v1659 = vmul.u32 %v1654, %v1655
        %v1660 = vmul.u32 %v1654, %v1656
        %v1661 = vshll.u32 %v1658, 16
        %v1662 = vshrl.u32 %v1658, 16
        %v1663 = vshll.u32 %v1659, 16
        %v1664 = vshrl.u32 %v1659, 16
        %vm1665 = vc.u32 %v1657, %v1661
        %v1666 = vsel %vm1665, 1, 0
        %v1667 = vadd.s32 %v1657, %v1661
        %v1668 = vadd.s32 %v1660, %v1666
        %vm1669 = vc.u32 %v1667, %v1663
        %v1670 = vsel %vm1669, 1, 0
        %v1671 = vadd.s32 %v1667, %v1663
        %v1672 = vadd.s32 %v1668, %v1670
        %v1673 = vadd.s32 %v1672, %v1662
        %v1674 = vadd.s32 %v1673, %v1664
        %v1675 = vand.u32 %v1652, 65535
        %v1676 = vshrl.u32 %v1652, 16
        %v1677 = vand.u32 %v1647, 65535
        %v1678 = vshrl.u32 %v1647, 16
        %v1679 = vmul.u32 %v1675, %v1677
        %v1680 = vmul.u32 %v1675, %v1678
        %v1681 = vmul.u32 %v1676, %v1677
        %v1682 = vmul.u32 %v1676, %v1678
        %v1683 = vshll.u32 %v1680, 16
        %v1684 = vshrl.u32 %v1680, 16
        %v1685 = vshll.u32 %v1681, 16
        %v1686 = vshrl.u32 %v1681, 16
        %vm1687 = vc.u32 %v1679, %v1683
        %v1688 = vsel %vm1687, 1, 0
        %v1689 = vadd.s32 %v1679, %v1683
        %v1690 = vadd.s32 %v1682, %v1688
        %vm1691 = vc.u32 %v1689, %v1685
        %v1692 = vsel %vm1691, 1, 0
        %v1693 = vadd.s32 %v1689, %v1685
        %v1694 = vadd.s32 %v1690, %v1692
        %v1695 = vadd.s32 %v1694, %v1684
        %v1696 = vadd.s32 %v1695, %v1686
        %v1697 = vmul.u32 %v1652, %v1643
        %v1698 = vadd.s32 %v1674, %v1693
        %vm1699 = vc.u32 %v1674, %v1693
        %v1700 = vadd.s32 %v1696, 1
        %v1701 = vsel %vm1699, %v1700, %v1696
        %v1702 = vadd.s32 %v1697, %v1701
        %v1703 = vadd.s32 %v1702, 536870912
        %v1704 = vshrl.u32 %v1703, 30
        %v1705 = vshll.u32 %v1704, 30
        %v1706 = vsub.s32 %v1702, %v1705
        %vm1707 = vcmp.lt.s32.totalorder %v1706, 0
        %v1708 = vsub.s32 0, %v1706
        %v1709 = vsel %vm1707, %v1708, %v1706
        %v1710 = vclz %v1709
        %v1711 = vsub.s32 %v1710, 2
        %vm1712 = vcmp.gt.s32.totalorder 0, %v1711
        %v1713 = vsel %vm1712, 0, %v1711
        %v1714 = vsub.s32 32, %v1713
        %v1715 = vshll.u32 %v1706, %v1713
        %v1716 = vshrl.u32 %v1698, %v1714
        %v1717 = vor.u32 %v1715, %v1716
        %v1718 = vsub.s32 4294967266, %v1713
        %v1719 = vadd.s32 %v1718, 127
        %v1720 = vshll.u32 %v1719, 23
        %v1721 = vor.u32 4788187, %v1720
        %v1722 = vand.u32 2147483647, %v1721
        %v1724 = vcvt.s32.f32 %v1717
        %v1725 = vmul.f32 %v1724, %v1722
        %v1726 = vxor.u32 %v1725, 2147483648
        %v1727 = vsel %vm1606, %v1726, %v1725
        %v1728 = vsub.s32 4, %v1704
        %v1729 = vsel %vm1606, %v1728, %v1704
        %v1730 = vsel %vm1605, %v1603, %v1727
        %v1731 = vsel %vm1605, 0, %v1729
        %v1732 = vmul.f32 %v1730, %v1730
        %v1733 = vmul.f32 %v1732, -0.001358992
        %v1734 = vadd.f32 %v1733, 0.041655596
        %v1735 = vmul.f32 %v1732, %v1734
        %v1736 = vadd.f32 %v1735, -0.4999988
        %v1737 = vmul.f32 %v1732, %v1736
        %v1738 = vadd.f32 1.0, %v1737
        %v1739 = vmul.f32 %v1730, %v1730
        %v1740 = vmul.f32 %v1739, -0.00019511016
        %v1741 = vadd.f32 %v1740, 0.008332121
        %v1742 = vmul.f32 %v1739, %v1741
        %v1743 = vadd.f32 %v1742, -0.16666654
        %v1744 = vmul.f32 %v1739, %v1743
        %v1745 = vadd.f32 %v1744, 1.0
        %v1746 = vmul.f32 %v1745, %v1730
        %vm1747 = vweird.f32 %v1603
        %v1748 = vadd.s32 %v1731, 3
        %v1749 = vand.u32 %v1748, 3
        %vm1750 = vcmp.lt.s32.totalorder %v1749, 2
        %vm1751 = vcmp.eq.s32.totalorder %v1749, 0
        %v1752 = vxor.u32 %v1746, 2147483648
        %v1753 = vsel %vm1751, %v1738, %v1752
        %vm1754 = vcmp.eq.s32.totalorder %v1749, 2
        %v1755 = vxor.u32 %v1738, 2147483648
        %v1756 = vsel %vm1754, %v1755, %v1746
        %v1757 = vsel %vm1750, %v1753, %v1756
        %v1758 = vsel %vm1747, nan, %v1757
        %v1759 = vmul.f32 %v1758, %v1602
        %v1760 = vand.u32 2147483647, %v1603
        %vm1761 = vcmp.le.f32.partialorder %v1760, 0.7853982
        %vm1762 = vcmp.lt.s32.totalorder %v1603, 0
        %v1763 = vand.u32 %v1603, 2139095040
        %v1764 = vshrl.u32 %v1763, 23
        %v1765 = vsub.s32 %v1764, 127
        %v1766 = vand.u32 2147483647, %v1603
        %v1767 = vand.u32 %v1766, 8388607
        %v1768 = vor.u32 %v1767, 8388608
        %v1769 = vsub.s32 0, %v1768
        %v1770 = vadd.s32 %v1765, 1
        %vm1771 = vcmp.gt.s32.totalorder %v1770, 0
        %v1772 = vsel %vm1771, %v1770, 0
        %v1773 = vshrl.u32 %v1772, 5
        %v1774 = vand.u32 %v1772, 31
        %v1775 = vsub.s32 32, %v1774
        %v1776 = vshrl.u32 683565275, %v1775
        %v1777 = vshll.u32 683565275, %v1774
        %v1778 = vshrl.u32 2475754826, %v1775
        %v1779 = vor.u32 %v1777, %v1778
        %v1780 = vshll.u32 2475754826, %v1774
        %v1781 = vshrl.u32 2131351028, %v1775
        %v1782 = vor.u32 %v1780, %v1781
        %v1783 = vshll.u32 2131351028, %v1774
        %v1784 = vshrl.u32 2102212464, %v1775
        %v1785 = vor.u32 %v1783, %v1784
        %v1786 = vshll.u32 2102212464, %v1774
        %v1787 = vshrl.u32 920167782, %v1775
        %v1788 = vor.u32 %v1786, %v1787
        %v1789 = vshll.u32 920167782, %v1774
        %v1790 = vshrl.u32 1326507024, %v1775
        %v1791 = vor.u32 %v1789, %v1790
        %vm1792 = vcmp.lt.s32.totalorder %v1773, 1
        %vm1793 = vcmp.lt.s32.totalorder %v1773, 2
        %vm1794 = vcmp.lt.s32.totalorder %v1773, 3
        %vm1795 = vcmp.lt.s32.totalorder %v1773, 4
        %v1796 = vsel %vm1792, %v1776, %v1779
        %v1797 = vsel %vm1795, %v1785, 2102212464
        %v1798 = vsel %vm1794, %v1782, %v1797
        %v1799 = vsel %vm1793, %v1796, %v1798
        %v1800 = vsel %vm1792, %v1779, %v1782
        %v1801 = vsel %vm1795, %v1788, 920167782
        %v1802 = vsel %vm1794, %v1785, %v1801
        %v1803 = vsel %vm1793, %v1800, %v1802
        %v1804 = vsel %vm1792, %v1782, %v1785
        %v1805 = vsel %vm1795, %v1791, 1326507024
        %v1806 = vsel %vm1794, %v1788, %v1805
        %v1807 = vsel %vm1793, %v1804, %v1806
        %v1808 = vshll.u32 %v1768, 8
        %v1809 = vand.u32 %v1808, 65535
        %v1810 = vshrl.u32 %v1808, 16
        %v1811 = vand.u32 %v1807, 65535
        %v1812 = vshrl.u32 %v1807, 16
        %v1813 = vmul.u32 %v1809, %v1811
        %v1814 = vmul.u32 %v1809, %v1812
        %v1815 = vmul.u32 %v1810, %v1811
        %v1816 = vmul.u32 %v1810, %v1812
        %v1817 = vshll.u32 %v1814, 16
        %v1818 = vshrl.u32 %v1814, 16
        %v1819 = vshll.u32 %v1815, 16
        %v1820 = vshrl.u32 %v1815, 16
        %vm1821 = vc.u32 %v1813, %v1817
        %v1822 = vsel %vm1821, 1, 0
        %v1823 = vadd.s32 %v1813, %v1817
        %v1824 = vadd.s32 %v1816, %v1822
        %vm1825 = vc.u32 %v1823, %v1819
        %v1826 = vsel %vm1825, 1, 0
        %v1827 = vadd.s32 %v1823, %v1819
        %v1828 = vadd.s32 %v1824, %v1826
        %v1829 = vadd.s32 %v1828, %v1818
        %v1830 = vadd.s32 %v1829, %v1820
        %v1831 = vand.u32 %v1808, 65535
        %v1832 = vshrl.u32 %v1808, 16
        %v1833 = vand.u32 %v1803, 65535
        %v1834 = vshrl.u32 %v1803, 16
        %v1835 = vmul.u32 %v1831, %v1833
        %v1836 = vmul.u32 %v1831, %v1834
        %v1837 = vmul.u32 %v1832, %v1833
        %v1838 = vmul.u32 %v1832, %v1834
        %v1839 = vshll.u32 %v1836, 16
        %v1840 = vshrl.u32 %v1836, 16
        %v1841 = vshll.u32 %v1837, 16
        %v1842 = vshrl.u32 %v1837, 16
        %vm1843 = vc.u32 %v1835, %v1839
        %v1844 = vsel %vm1843, 1, 0
        %v1845 = vadd.s32 %v1835, %v1839
        %v1846 = vadd.s32 %v1838, %v1844
        %vm1847 = vc.u32 %v1845, %v1841
        %v1848 = vsel %vm1847, 1, 0
        %v1849 = vadd.s32 %v1845, %v1841
        %v1850 = vadd.s32 %v1846, %v1848
        %v1851 = vadd.s32 %v1850, %v1840
        %v1852 = vadd.s32 %v1851, %v1842
        %v1853 = vmul.u32 %v1808, %v1799
        %v1854 = vadd.s32 %v1830, %v1849
        %vm1855 = vc.u32 %v1830, %v1849
        %v1856 = vadd.s32 %v1852, 1
        %v1857 = vsel %vm1855, %v1856, %v1852
        %v1858 = vadd.s32 %v1853, %v1857
        %v1859 = vadd.s32 %v1858, 536870912
        %v1860 = vshrl.u32 %v1859, 30
        %v1861 = vshll.u32 %v1860, 30
        %v1862 = vsub.s32 %v1858, %v1861
        %vm1863 = vcmp.lt.s32.totalorder %v1862, 0
        %v1864 = vsub.s32 0, %v1862
        %v1865 = vsel %vm1863, %v1864, %v1862
        %v1866 = vclz %v1865
        %v1867 = vsub.s32 %v1866, 2
        %vm1868 = vcmp.gt.s32.totalorder 0, %v1867
        %v1869 = vsel %vm1868, 0, %v1867
        %v1870 = vsub.s32 32, %v1869
        %v1871 = vshll.u32 %v1862, %v1869
        %v1872 = vshrl.u32 %v1854, %v1870
        %v1873 = vor.u32 %v1871, %v1872
        %v1874 = vsub.s32 4294967266, %v1869
        %v1875 = vadd.s32 %v1874, 127
        %v1876 = vshll.u32 %v1875, 23
        %v1877 = vor.u32 4788187, %v1876
        %v1878 = vand.u32 2147483647, %v1877
        %v1880 = vcvt.s32.f32 %v1873
        %v1881 = vmul.f32 %v1880, %v1878
        %v1882 = vxor.u32 %v1881, 2147483648
        %v1883 = vsel %vm1762, %v1882, %v1881
        %v1884 = vsub.s32 4, %v1860
        %v1885 = vsel %vm1762, %v1884, %v1860
        %v1886 = vsel %vm1761, %v1603, %v1883
        %v1887 = vsel %vm1761, 0, %v1885
        %v1888 = vmul.f32 %v1886, %v1886
        %v1889 = vmul.f32 %v1888, -0.001358992
        %v1890 = vadd.f32 %v1889, 0.041655596
        %v1891 = vmul.f32 %v1888, %v1890
        %v1892 = vadd.f32 %v1891, -0.4999988
        %v1893 = vmul.f32 %v1888, %v1892
        %v1894 = vadd.f32 1.0, %v1893
        %v1895 = vmul.f32 %v1886, %v1886
        %v1896 = vmul.f32 %v1895, -0.00019511016
        %v1897 = vadd.f32 %v1896, 0.008332121
        %v1898 = vmul.f32 %v1895, %v1897
        %v1899 = vadd.f32 %v1898, -0.16666654
        %v1900 = vmul.f32 %v1895, %v1899
        %v1901 = vadd.f32 %v1900, 1.0
        %v1902 = vmul.f32 %v1901, %v1886
        %vm1903 = vweird.f32 %v1603
        %v1904 = vand.u32 %v1887, 3
        %vm1905 = vcmp.lt.s32.totalorder %v1904, 2
        %vm1906 = vcmp.eq.s32.totalorder %v1904, 0
        %v1907 = vxor.u32 %v1902, 2147483648
        %v1908 = vsel %vm1906, %v1894, %v1907
        %vm1909 = vcmp.eq.s32.totalorder %v1904, 2
        %v1910 = vxor.u32 %v1894, 2147483648
        %v1911 = vsel %vm1909, %v1910, %v1902
        %v1912 = vsel %vm1905, %v1908, %v1911
        %v1913 = vsel %vm1903, nan, %v1912
        %v1914 = vsub.f32 %v1759, %v1913
        %v1915 = vmul.f32 %v1914, %v1602
        %v1916 = vmul.f32 %v1915, 11.016308
        %v1917 = vmul.f32 %v156, 0.091708444
        %v1918 = vmul.f32 %v141, 10.904121
        %v1919 = vand.u32 2147483647, %v1918
        %vm1920 = vcmp.le.f32.partialorder %v1919, 0.7853982
        %vm1921 = vcmp.lt.s32.totalorder %v1918, 0
        %v1922 = vand.u32 %v1918, 2139095040
        %v1923 = vshrl.u32 %v1922, 23
        %v1924 = vsub.s32 %v1923, 127
        %v1925 = vand.u32 2147483647, %v1918
        %v1926 = vand.u32 %v1925, 8388607
        %v1927 = vor.u32 %v1926, 8388608
        %v1928 = vsub.s32 0, %v1927
        %v1929 = vadd.s32 %v1924, 1
        %vm1930 = vcmp.gt.s32.totalorder %v1929, 0
        %v1931 = vsel %vm1930, %v1929, 0
        %v1932 = vshrl.u32 %v1931, 5
        %v1933 = vand.u32 %v1931, 31
        %v1934 = vsub.s32 32, %v1933
        %v1935 = vshrl.u32 683565275, %v1934
        %v1936 = vshll.u32 683565275, %v1933
        %v1937 = vshrl.u32 2475754826, %v1934
        %v1938 = vor.u32 %v1936, %v1937
        %v1939 = vshll.u32 2475754826, %v1933
        %v1940 = vshrl.u32 2131351028, %v1934
        %v1941 = vor.u32 %v1939, %v1940
        %v1942 = vshll.u32 2131351028, %v1933
        %v1943 = vshrl.u32 2102212464, %v1934
        %v1944 = vor.u32 %v1942, %v1943
        %v1945 = vshll.u32 2102212464, %v1933
        %v1946 = vshrl.u32 920167782, %v1934
        %v1947 = vor.u32 %v1945, %v1946
        %v1948 = vshll.u32 920167782, %v1933
        %v1949 = vshrl.u32 1326507024, %v1934
        %v1950 = vor.u32 %v1948, %v1949
        %vm1951 = vcmp.lt.s32.totalorder %v1932, 1
        %vm1952 = vcmp.lt.s32.totalorder %v1932, 2
        %vm1953 = vcmp.lt.s32.totalorder %v1932, 3
        %vm1954 = vcmp.lt.s32.totalorder %v1932, 4
        %v1955 = vsel %vm1951, %v1935, %v1938
        %v1956 = vsel %vm1954, %v1944, 2102212464
        %v1957 = vsel %vm1953, %v1941, %v1956
        %v1958 = vsel %vm1952, %v1955, %v1957
        %v1959 = vsel %vm1951, %v1938, %v1941
        %v1960 = vsel %vm1954, %v1947, 920167782
        %v1961 = vsel %vm1953, %v1944, %v1960
        %v1962 = vsel %vm1952, %v1959, %v1961
        %v1963 = vsel %vm1951, %v1941, %v1944
        %v1964 = vsel %vm1954, %v1950, 1326507024
        %v1965 = vsel %vm1953, %v1947, %v1964
        %v1966 = vsel %vm1952, %v1963, %v1965
        %v1967 = vshll.u32 %v1927, 8
        %v1968 = vand.u32 %v1967, 65535
        %v1969 = vshrl.u32 %v1967, 16
        %v1970 = vand.u32 %v1966, 65535
        %v1971 = vshrl.u32 %v1966, 16
        %v1972 = vmul.u32 %v1968, %v1970
        %v1973 = vmul.u32 %v1968, %v1971
        %v1974 = vmul.u32 %v1969, %v1970
        %v1975 = vmul.u32 %v1969, %v1971
        %v1976 = vshll.u32 %v1973, 16
        %v1977 = vshrl.u32 %v1973, 16
        %v1978 = vshll.u32 %v1974, 16
        %v1979 = vshrl.u32 %v1974, 16
        %vm1980 = vc.u32 %v1972, %v1976
        %v1981 = vsel %vm1980, 1, 0
        %v1982 = vadd.s32 %v1972, %v1976
        %v1983 = vadd.s32 %v1975, %v1981
        %vm1984 = vc.u32 %v1982, %v1978
        %v1985 = vsel %vm1984, 1, 0
        %v1986 = vadd.s32 %v1982, %v1978
        %v1987 = vadd.s32 %v1983, %v1985
        %v1988 = vadd.s32 %v1987, %v1977
        %v1989 = vadd.s32 %v1988, %v1979
        %v1990 = vand.u32 %v1967, 65535
        %v1991 = vshrl.u32 %v1967, 16
        %v1992 = vand.u32 %v1962, 65535
        %v1993 = vshrl.u32 %v1962, 16
        %v1994 = vmul.u32 %v1990, %v1992
        %v1995 = vmul.u32 %v1990, %v1993
        %v1996 = vmul.u32 %v1991, %v1992
        %v1997 = vmul.u32 %v1991, %v1993
        %v1998 = vshll.u32 %v1995, 16
        %v1999 = vshrl.u32 %v1995, 16
        %v2000 = vshll.u32 %v1996, 16
        %v2001 = vshrl.u32 %v1996, 16
        %vm2002 = vc.u32 %v1994, %v1998
        %v2003 = vsel %vm2002, 1, 0
        %v2004 = vadd.s32 %v1994, %v1998
        %v2005 = vadd.s32 %v1997, %v2003
        %vm2006 = vc.u32 %v2004, %v2000
        %v2007 = vsel %vm2006, 1, 0
        %v2008 = vadd.s32 %v2004, %v2000
        %v2009 = vadd.s32 %v2005, %v2007
        %v2010 = vadd.s32 %v2009, %v1999
        %v2011 = vadd.s32 %v2010, %v2001
        %v2012 = vmul.u32 %v1967, %v1958
        %v2013 = vadd.s32 %v1989, %v2008
        %vm2014 = vc.u32 %v1989, %v2008
        %v2015 = vadd.s32 %v2011, 1
        %v2016 = vsel %vm2014, %v2015, %v2011
        %v2017 = vadd.s32 %v2012, %v2016
        %v2018 = vadd.s32 %v2017, 536870912
        %v2019 = vshrl.u32 %v2018, 30
        %v2020 = vshll.u32 %v2019, 30
        %v2021 = vsub.s32 %v2017, %v2020
        %vm2022 = vcmp.lt.s32.totalorder %v2021, 0
        %v2023 = vsub.s32 0, %v2021
        %v2024 = vsel %vm2022, %v2023, %v2021
        %v2025 = vclz %v2024
        %v2026 = vsub.s32 %v2025, 2
        %vm2027 = vcmp.gt.s32.totalorder 0, %v2026
        %v2028 = vsel %vm2027, 0, %v2026
        %v2029 = vsub.s32 32, %v2028
        %v2030 = vshll.u32 %v2021, %v2028
        %v2031 = vshrl.u32 %v2013, %v2029
        %v2032 = vor.u32 %v2030, %v2031
        %v2033 = vsub.s32 4294967266, %v2028
        %v2034 = vadd.s32 %v2033, 127
        %v2035 = vshll.u32 %v2034, 23
        %v2036 = vor.u32 4788187, %v2035
        %v2037 = vand.u32 2147483647, %v2036
        %v2039 = vcvt.s32.f32 %v2032
        %v2040 = vmul.f32 %v2039, %v2037
        %v2041 = vxor.u32 %v2040, 2147483648
        %v2042 = vsel %vm1921, %v2041, %v2040
        %v2043 = vsub.s32 4, %v2019
        %v2044 = vsel %vm1921, %v2043, %v2019
        %v2045 = vsel %vm1920, %v1918, %v2042
        %v2046 = vsel %vm1920, 0, %v2044
        %v2047 = vmul.f32 %v2045, %v2045
        %v2048 = vmul.f32 %v2047, -0.001358992
        %v2049 = vadd.f32 %v2048, 0.041655596
        %v2050 = vmul.f32 %v2047, %v2049
        %v2051 = vadd.f32 %v2050, -0.4999988
        %v2052 = vmul.f32 %v2047, %v2051
        %v2053 = vadd.f32 1.0, %v2052
        %v2054 = vmul.f32 %v2045, %v2045
        %v2055 = vmul.f32 %v2054, -0.00019511016
        %v2056 = vadd.f32 %v2055, 0.008332121
        %v2057 = vmul.f32 %v2054, %v2056
        %v2058 = vadd.f32 %v2057, -0.16666654
        %v2059 = vmul.f32 %v2054, %v2058
        %v2060 = vadd.f32 %v2059, 1.0
        %v2061 = vmul.f32 %v2060, %v2045
        %vm2062 = vweird.f32 %v1918
        %v2063 = vadd.s32 %v2046, 3
        %v2064 = vand.u32 %v2063, 3
        %vm2065 = vcmp.lt.s32.totalorder %v2064, 2
        %vm2066 = vcmp.eq.s32.totalorder %v2064, 0
        %v2067 = vxor.u32 %v2061, 2147483648
        %v2068 = vsel %vm2066, %v2053, %v2067
        %vm2069 = vcmp.eq.s32.totalorder %v2064, 2
        %v2070 = vxor.u32 %v2053, 2147483648
        %v2071 = vsel %vm2069, %v2070, %v2061
        %v2072 = vsel %vm2065, %v2068, %v2071
        %v2073 = vsel %vm2062, nan, %v2072
        %v2074 = vmul.f32 %v2073, %v1917
        %v2075 = vand.u32 2147483647, %v1918
        %vm2076 = vcmp.le.f32.partialorder %v2075, 0.7853982
        %vm2077 = vcmp.lt.s32.totalorder %v1918, 0
        %v2078 = vand.u32 %v1918, 2139095040
        %v2079 = vshrl.u32 %v2078, 23
        %v2080 = vsub.s32 %v2079, 127
        %v2081 = vand.u32 2147483647, %v1918
        %v2082 = vand.u32 %v2081, 8388607
        %v2083 = vor.u32 %v2082, 8388608
        %v2084 = vsub.s32 0, %v2083
        %v2085 = vadd.s32 %v2080, 1
        %vm2086 = vcmp.gt.s32.totalorder %v2085, 0
        %v2087 = vsel %vm2086, %v2085, 0
        %v2088 = vshrl.u32 %v2087, 5
        %v2089 = vand.u32 %v2087, 31
        %v2090 = vsub.s32 32, %v2089
        %v2091 = vshrl.u32 683565275, %v2090
        %v2092 = vshll.u32 683565275, %v2089
        %v2093 = vshrl.u32 2475754826, %v2090
        %v2094 = vor.u32 %v2092, %v2093
        %v2095 = vshll.u32 2475754826, %v2089
        %v2096 = vshrl.u32 2131351028, %v2090
        %v2097 = vor.u32 %v2095, %v2096
        %v2098 = vshll.u32 2131351028, %v2089
        %v2099 = vshrl.u32 2102212464, %v2090
        %v2100 = vor.u32 %v2098, %v2099
        %v2101 = vshll.u32 2102212464, %v2089
        %v2102 = vshrl.u32 920167782, %v2090
        %v2103 = vor.u32 %v2101, %v2102
        %v2104 = vshll.u32 920167782, %v2089
        %v2105 = vshrl.u32 1326507024, %v2090
        %v2106 = vor.u32 %v2104, %v2105
        %vm2107 = vcmp.lt.s32.totalorder %v2088, 1
        %vm2108 = vcmp.lt.s32.totalorder %v2088, 2
        %vm2109 = vcmp.lt.s32.totalorder %v2088, 3
        %vm2110 = vcmp.lt.s32.totalorder %v2088, 4
        %v2111 = vsel %vm2107, %v2091, %v2094
        %v2112 = vsel %vm2110, %v2100, 2102212464
        %v2113 = vsel %vm2109, %v2097, %v2112
        %v2114 = vsel %vm2108, %v2111, %v2113
        %v2115 = vsel %vm2107, %v2094, %v2097
        %v2116 = vsel %vm2110, %v2103, 920167782
        %v2117 = vsel %vm2109, %v2100, %v2116
        %v2118 = vsel %vm2108, %v2115, %v2117
        %v2119 = vsel %vm2107, %v2097, %v2100
        %v2120 = vsel %vm2110, %v2106, 1326507024
        %v2121 = vsel %vm2109, %v2103, %v2120
        %v2122 = vsel %vm2108, %v2119, %v2121
        %v2123 = vshll.u32 %v2083, 8
        %v2124 = vand.u32 %v2123, 65535
        %v2125 = vshrl.u32 %v2123, 16
        %v2126 = vand.u32 %v2122, 65535
        %v2127 = vshrl.u32 %v2122, 16
        %v2128 = vmul.u32 %v2124, %v2126
        %v2129 = vmul.u32 %v2124, %v2127
        %v2130 = vmul.u32 %v2125, %v2126
        %v2131 = vmul.u32 %v2125, %v2127
        %v2132 = vshll.u32 %v2129, 16
        %v2133 = vshrl.u32 %v2129, 16
        %v2134 = vshll.u32 %v2130, 16
        %v2135 = vshrl.u32 %v2130, 16
        %vm2136 = vc.u32 %v2128, %v2132
        %v2137 = vsel %vm2136, 1, 0
        %v2138 = vadd.s32 %v2128, %v2132
        %v2139 = vadd.s32 %v2131, %v2137
        %vm2140 = vc.u32 %v2138, %v2134
        %v2141 = vsel %vm2140, 1, 0
        %v2142 = vadd.s32 %v2138, %v2134
        %v2143 = vadd.s32 %v2139, %v2141
        %v2144 = vadd.s32 %v2143, %v2133
        %v2145 = vadd.s32 %v2144, %v2135
        %v2146 = vand.u32 %v2123, 65535
        %v2147 = vshrl.u32 %v2123, 16
        %v2148 = vand.u32 %v2118, 65535
        %v2149 = vshrl.u32 %v2118, 16
        %v2150 = vmul.u32 %v2146, %v2148
        %v2151 = vmul.u32 %v2146, %v2149
        %v2152 = vmul.u32 %v2147, %v2148
        %v2153 = vmul.u32 %v2147, %v2149
        %v2154 = vshll.u32 %v2151, 16
        %v2155 = vshrl.u32 %v2151, 16
        %v2156 = vshll.u32 %v2152, 16
        %v2157 = vshrl.u32 %v2152, 16
        %vm2158 = vc.u32 %v2150, %v2154
        %v2159 = vsel %vm2158, 1, 0
        %v2160 = vadd.s32 %v2150, %v2154
        %v2161 = vadd.s32 %v2153, %v2159
        %vm2162 = vc.u32 %v2160, %v2156
        %v2163 = vsel %vm2162, 1, 0
        %v2164 = vadd.s32 %v2160, %v2156
        %v2165 = vadd.s32 %v2161, %v2163
        %v2166 = vadd.s32 %v2165, %v2155
        %v2167 = vadd.s32 %v2166, %v2157
        %v2168 = vmul.u32 %v2123, %v2114
        %v2169 = vadd.s32 %v2145, %v2164
        %vm2170 = vc.u32 %v2145, %v2164
        %v2171 = vadd.s32 %v2167, 1
        %v2172 = vsel %vm2170, %v2171, %v2167
        %v2173 = vadd.s32 %v2168, %v2172
        %v2174 = vadd.s32 %v2173, 536870912
        %v2175 = vshrl.u32 %v2174, 30
        %v2176 = vshll.u32 %v2175, 30
        %v2177 = vsub.s32 %v2173, %v2176
        %vm2178 = vcmp.lt.s32.totalorder %v2177, 0
        %v2179 = vsub.s32 0, %v2177
        %v2180 = vsel %vm2178, %v2179, %v2177
        %v2181 = vclz %v2180
        %v2182 = vsub.s32 %v2181, 2
        %vm2183 = vcmp.gt.s32.totalorder 0, %v2182
        %v2184 = vsel %vm2183, 0, %v2182
        %v2185 = vsub.s32 32, %v2184
        %v2186 = vshll.u32 %v2177, %v2184
        %v2187 = vshrl.u32 %v2169, %v2185
        %v2188 = vor.u32 %v2186, %v2187
        %v2189 = vsub.s32 4294967266, %v2184
        %v2190 = vadd.s32 %v2189, 127
        %v2191 = vshll.u32 %v2190, 23
        %v2192 = vor.u32 4788187, %v2191
        %v2193 = vand.u32 2147483647, %v2192
        %v2195 = vcvt.s32.f32 %v2188
        %v2196 = vmul.f32 %v2195, %v2193
        %v2197 = vxor.u32 %v2196, 2147483648
        %v2198 = vsel %vm2077, %v2197, %v2196
        %v2199 = vsub.s32 4, %v2175
        %v2200 = vsel %vm2077, %v2199, %v2175
        %v2201 = vsel %vm2076, %v1918, %v2198
        %v2202 = vsel %vm2076, 0, %v2200
        %v2203 = vmul.f32 %v2201, %v2201
        %v2204 = vmul.f32 %v2203, -0.001358992
        %v2205 = vadd.f32 %v2204, 0.041655596
        %v2206 = vmul.f32 %v2203, %v2205
        %v2207 = vadd.f32 %v2206, -0.4999988
        %v2208 = vmul.f32 %v2203, %v2207
        %v2209 = vadd.f32 1.0, %v2208
        %v2210 = vmul.f32 %v2201, %v2201
        %v2211 = vmul.f32 %v2210, -0.00019511016
        %v2212 = vadd.f32 %v2211, 0.008332121
        %v2213 = vmul.f32 %v2210, %v2212
        %v2214 = vadd.f32 %v2213, -0.16666654
        %v2215 = vmul.f32 %v2210, %v2214
        %v2216 = vadd.f32 %v2215, 1.0
        %v2217 = vmul.f32 %v2216, %v2201
        %vm2218 = vweird.f32 %v1918
        %v2219 = vand.u32 %v2202, 3
        %vm2220 = vcmp.lt.s32.totalorder %v2219, 2
        %vm2221 = vcmp.eq.s32.totalorder %v2219, 0
        %v2222 = vxor.u32 %v2217, 2147483648
        %v2223 = vsel %vm2221, %v2209, %v2222
        %vm2224 = vcmp.eq.s32.totalorder %v2219, 2
        %v2225 = vxor.u32 %v2209, 2147483648
        %v2226 = vsel %vm2224, %v2225, %v2217
        %v2227 = vsel %vm2220, %v2223, %v2226
        %v2228 = vsel %vm2218, nan, %v2227
        %v2229 = vsub.f32 %v2074, %v2228
        %v2230 = vmul.f32 %v2229, %v1917
        %v2231 = vmul.f32 %v2230, 15.485469
        %v2232 = vmul.f32 %v156, 0.071092434
        %v2233 = vmul.f32 %v141, 14.066194
        %v2234 = vand.u32 2147483647, %v2233
        %vm2235 = vcmp.le.f32.partialorder %v2234, 0.7853982
        %vm2236 = vcmp.lt.s32.totalorder %v2233, 0
        %v2237 = vand.u32 %v2233, 2139095040
        %v2238 = vshrl.u32 %v2237, 23
        %v2239 = vsub.s32 %v2238, 127
        %v2240 = vand.u32 2147483647, %v2233
        %v2241 = vand.u32 %v2240, 8388607
        %v2242 = vor.u32 %v2241, 8388608
        %v2243 = vsub.s32 0, %v2242
        %v2244 = vadd.s32 %v2239, 1
        %vm2245 = vcmp.gt.s32.totalorder %v2244, 0
        %v2246 = vsel %vm2245, %v2244, 0
        %v2247 = vshrl.u32 %v2246, 5
        %v2248 = vand.u32 %v2246, 31
        %v2249 = vsub.s32 32, %v2248
        %v2250 = vshrl.u32 683565275, %v2249
        %v2251 = vshll.u32 683565275, %v2248
        %v2252 = vshrl.u32 2475754826, %v2249
        %v2253 = vor.u32 %v2251, %v2252
        %v2254 = vshll.u32 2475754826, %v2248
        %v2255 = vshrl.u32 2131351028, %v2249
        %v2256 = vor.u32 %v2254, %v2255
        %v2257 = vshll.u32 2131351028, %v2248
        %v2258 = vshrl.u32 2102212464, %v2249
        %v2259 = vor.u32 %v2257, %v2258
        %v2260 = vshll.u32 2102212464, %v2248
        %v2261 = vshrl.u32 920167782, %v2249
        %v2262 = vor.u32 %v2260, %v2261
        %v2263 = vshll.u32 920167782, %v2248
        %v2264 = vshrl.u32 1326507024, %v2249
        %v2265 = vor.u32 %v2263, %v2264
        %vm2266 = vcmp.lt.s32.totalorder %v2247, 1
        %vm2267 = vcmp.lt.s32.totalorder %v2247, 2
        %vm2268 = vcmp.lt.s32.totalorder %v2247, 3
        %vm2269 = vcmp.lt.s32.totalorder %v2247, 4
        %v2270 = vsel %vm2266, %v2250, %v2253
        %v2271 = vsel %vm2269, %v2259, 2102212464
        %v2272 = vsel %vm2268, %v2256, %v2271
        %v2273 = vsel %vm2267, %v2270, %v2272
        %v2274 = vsel %vm2266, %v2253, %v2256
        %v2275 = vsel %vm2269, %v2262, 920167782
        %v2276 = vsel %vm2268, %v2259, %v2275
        %v2277 = vsel %vm2267, %v2274, %v2276
        %v2278 = vsel %vm2266, %v2256, %v2259
        %v2279 = vsel %vm2269, %v2265, 1326507024
        %v2280 = vsel %vm2268, %v2262, %v2279
        %v2281 = vsel %vm2267, %v2278, %v2280
        %v2282 = vshll.u32 %v2242, 8
        %v2283 = vand.u32 %v2282, 65535
        %v2284 = vshrl.u32 %v2282, 16
        %v2285 = vand.u32 %v2281, 65535
        %v2286 = vshrl.u32 %v2281, 16
        %v2287 = vmul.u32 %v2283, %v2285
        %v2288 = vmul.u32 %v2283, %v2286
        %v2289 = vmul.u32 %v2284, %v2285
        %v2290 = vmul.u32 %v2284, %v2286
        %v2291 = vshll.u32 %v2288, 16
        %v2292 = vshrl.u32 %v2288, 16
        %v2293 = vshll.u32 %v2289, 16
        %v2294 = vshrl.u32 %v2289, 16
        %vm2295 = vc.u32 %v2287, %v2291
        %v2296 = vsel %vm2295, 1, 0
        %v2297 = vadd.s32 %v2287, %v2291
        %v2298 = vadd.s32 %v2290, %v2296
        %vm2299 = vc.u32 %v2297, %v2293
        %v2300 = vsel %vm2299, 1, 0
        %v2301 = vadd.s32 %v2297, %v2293
        %v2302 = vadd.s32 %v2298, %v2300
        %v2303 = vadd.s32 %v2302, %v2292
        %v2304 = vadd.s32 %v2303, %v2294
        %v2305 = vand.u32 %v2282, 65535
        %v2306 = vshrl.u32 %v2282, 16
        %v2307 = vand.u32 %v2277, 65535
        %v2308 = vshrl.u32 %v2277, 16
        %v2309 = vmul.u32 %v2305, %v2307
        %v2310 = vmul.u32 %v2305, %v2308
        %v2311 = vmul.u32 %v2306, %v2307
        %v2312 = vmul.u32 %v2306, %v2308
        %v2313 = vshll.u32 %v2310, 16
        %v2314 = vshrl.u32 %v2310, 16
        %v2315 = vshll.u32 %v2311, 16
        %v2316 = vshrl.u32 %v2311, 16
        %vm2317 = vc.u32 %v2309, %v2313
        %v2318 = vsel %vm2317, 1, 0
        %v2319 = vadd.s32 %v2309, %v2313
        %v2320 = vadd.s32 %v2312, %v2318
        %vm2321 = vc.u32 %v2319, %v2315
        %v2322 = vsel %vm2321, 1, 0
        %v2323 = vadd.s32 %v2319, %v2315
        %v2324 = vadd.s32 %v2320, %v2322
        %v2325 = vadd.s32 %v2324, %v2314
        %v2326 = vadd.s32 %v2325, %v2316
        %v2327 = vmul.u32 %v2282, %v2273
        %v2328 = vadd.s32 %v2304, %v2323
        %vm2329 = vc.u32 %v2304, %v2323
        %v2330 = vadd.s32 %v2326, 1
        %v2331 = vsel %vm2329, %v2330, %v2326
        %v2332 = vadd.s32 %v2327, %v2331
        %v2333 = vadd.s32 %v2332, 536870912
        %v2334 = vshrl.u32 %v2333, 30
        %v2335 = vshll.u32 %v2334, 30
        %v2336 = vsub.s32 %v2332, %v2335
        %vm2337 = vcmp.lt.s32.totalorder %v2336, 0
        %v2338 = vsub.s32 0, %v2336
        %v2339 = vsel %vm2337, %v2338, %v2336
        %v2340 = vclz %v2339
        %v2341 = vsub.s32 %v2340, 2
        %vm2342 = vcmp.gt.s32.totalorder 0, %v2341
        %v2343 = vsel %vm2342, 0, %v2341
        %v2344 = vsub.s32 32, %v2343
        %v2345 = vshll.u32 %v2336, %v2343
        %v2346 = vshrl.u32 %v2328, %v2344
        %v2347 = vor.u32 %v2345, %v2346
        %v2348 = vsub.s32 4294967266, %v2343
        %v2349 = vadd.s32 %v2348, 127
        %v2350 = vshll.u32 %v2349, 23
        %v2351 = vor.u32 4788187, %v2350
        %v2352 = vand.u32 2147483647, %v2351
        %v2354 = vcvt.s32.f32 %v2347
        %v2355 = vmul.f32 %v2354, %v2352
        %v2356 = vxor.u32 %v2355, 2147483648
        %v2357 = vsel %vm2236, %v2356, %v2355
        %v2358 = vsub.s32 4, %v2334
        %v2359 = vsel %vm2236, %v2358, %v2334
        %v2360 = vsel %vm2235, %v2233, %v2357
        %v2361 = vsel %vm2235, 0, %v2359
        %v2362 = vmul.f32 %v2360, %v2360
        %v2363 = vmul.f32 %v2362, -0.001358992
        %v2364 = vadd.f32 %v2363, 0.041655596
        %v2365 = vmul.f32 %v2362, %v2364
        %v2366 = vadd.f32 %v2365, -0.4999988
        %v2367 = vmul.f32 %v2362, %v2366
        %v2368 = vadd.f32 1.0, %v2367
        %v2369 = vmul.f32 %v2360, %v2360
        %v2370 = vmul.f32 %v2369, -0.00019511016
        %v2371 = vadd.f32 %v2370, 0.008332121
        %v2372 = vmul.f32 %v2369, %v2371
        %v2373 = vadd.f32 %v2372, -0.16666654
        %v2374 = vmul.f32 %v2369, %v2373
        %v2375 = vadd.f32 %v2374, 1.0
        %v2376 = vmul.f32 %v2375, %v2360
        %vm2377 = vweird.f32 %v2233
        %v2378 = vadd.s32 %v2361, 3
        %v2379 = vand.u32 %v2378, 3
        %vm2380 = vcmp.lt.s32.totalorder %v2379, 2
        %vm2381 = vcmp.eq.s32.totalorder %v2379, 0
        %v2382 = vxor.u32 %v2376, 2147483648
        %v2383 = vsel %vm2381, %v2368, %v2382
        %vm2384 = vcmp.eq.s32.totalorder %v2379, 2
        %v2385 = vxor.u32 %v2368, 2147483648
        %v2386 = vsel %vm2384, %v2385, %v2376
        %v2387 = vsel %vm2380, %v2383, %v2386
        %v2388 = vsel %vm2377, nan, %v2387
        %v2389 = vmul.f32 %v2388, %v2232
        %v2390 = vand.u32 2147483647, %v2233
        %vm2391 = vcmp.le.f32.partialorder %v2390, 0.7853982
        %vm2392 = vcmp.lt.s32.totalorder %v2233, 0
        %v2393 = vand.u32 %v2233, 2139095040
        %v2394 = vshrl.u32 %v2393, 23
        %v2395 = vsub.s32 %v2394, 127
        %v2396 = vand.u32 2147483647, %v2233
        %v2397 = vand.u32 %v2396, 8388607
        %v2398 = vor.u32 %v2397, 8388608
        %v2399 = vsub.s32 0, %v2398
        %v2400 = vadd.s32 %v2395, 1
        %vm2401 = vcmp.gt.s32.totalorder %v2400, 0
        %v2402 = vsel %vm2401, %v2400, 0
        %v2403 = vshrl.u32 %v2402, 5
        %v2404 = vand.u32 %v2402, 31
        %v2405 = vsub.s32 32, %v2404
        %v2406 = vshrl.u32 683565275, %v2405
        %v2407 = vshll.u32 683565275, %v2404
        %v2408 = vshrl.u32 2475754826, %v2405
        %v2409 = vor.u32 %v2407, %v2408
        %v2410 = vshll.u32 2475754826, %v2404
        %v2411 = vshrl.u32 2131351028, %v2405
        %v2412 = vor.u32 %v2410, %v2411
        %v2413 = vshll.u32 2131351028, %v2404
        %v2414 = vshrl.u32 2102212464, %v2405
        %v2415 = vor.u32 %v2413, %v2414
        %v2416 = vshll.u32 2102212464, %v2404
        %v2417 = vshrl.u32 920167782, %v2405
        %v2418 = vor.u32 %v2416, %v2417
        %v2419 = vshll.u32 920167782, %v2404
        %v2420 = vshrl.u32 1326507024, %v2405
        %v2421 = vor.u32 %v2419, %v2420
        %vm2422 = vcmp.lt.s32.totalorder %v2403, 1
        %vm2423 = vcmp.lt.s32.totalorder %v2403, 2
        %vm2424 = vcmp.lt.s32.totalorder %v2403, 3
        %vm2425 = vcmp.lt.s32.totalorder %v2403, 4
        %v2426 = vsel %vm2422, %v2406, %v2409
        %v2427 = vsel %vm2425, %v2415, 2102212464
        %v2428 = vsel %vm2424, %v2412, %v2427
        %v2429 = vsel %vm2423, %v2426, %v2428
        %v2430 = vsel %vm2422, %v2409, %v2412
        %v2431 = vsel %vm2425, %v2418, 920167782
        %v2432 = vsel %vm2424, %v2415, %v2431
        %v2433 = vsel %vm2423, %v2430, %v2432
        %v2434 = vsel %vm2422, %v2412, %v2415
        %v2435 = vsel %vm2425, %v2421, 1326507024
        %v2436 = vsel %vm2424, %v2418, %v2435
        %v2437 = vsel %vm2423, %v2434, %v2436
        %v2438 = vshll.u32 %v2398, 8
        %v2439 = vand.u32 %v2438, 65535
        %v2440 = vshrl.u32 %v2438, 16
        %v2441 = vand.u32 %v2437, 65535
        %v2442 = vshrl.u32 %v2437, 16
        %v2443 = vmul.u32 %v2439, %v2441
        %v2444 = vmul.u32 %v2439, %v2442
        %v2445 = vmul.u32 %v2440, %v2441
        %v2446 = vmul.u32 %v2440, %v2442
        %v2447 = vshll.u32 %v2444, 16
        %v2448 = vshrl.u32 %v2444, 16
        %v2449 = vshll.u32 %v2445, 16
        %v2450 = vshrl.u32 %v2445, 16
        %vm2451 = vc.u32 %v2443, %v2447
        %v2452 = vsel %vm2451, 1, 0
        %v2453 = vadd.s32 %v2443, %v2447
        %v2454 = vadd.s32 %v2446, %v2452
        %vm2455 = vc.u32 %v2453, %v2449
        %v2456 = vsel %vm2455, 1, 0
        %v2457 = vadd.s32 %v2453, %v2449
        %v2458 = vadd.s32 %v2454, %v2456
        %v2459 = vadd.s32 %v2458, %v2448
        %v2460 = vadd.s32 %v2459, %v2450
        %v2461 = vand.u32 %v2438, 65535
        %v2462 = vshrl.u32 %v2438, 16
        %v2463 = vand.u32 %v2433, 65535
        %v2464 = vshrl.u32 %v2433, 16
        %v2465 = vmul.u32 %v2461, %v2463
        %v2466 = vmul.u32 %v2461, %v2464
        %v2467 = vmul.u32 %v2462, %v2463
        %v2468 = vmul.u32 %v2462, %v2464
        %v2469 = vshll.u32 %v2466, 16
        %v2470 = vshrl.u32 %v2466, 16
        %v2471 = vshll.u32 %v2467, 16
        %v2472 = vshrl.u32 %v2467, 16
        %vm2473 = vc.u32 %v2465, %v2469
        %v2474 = vsel %vm2473, 1, 0
        %v2475 = vadd.s32 %v2465, %v2469
        %v2476 = vadd.s32 %v2468, %v2474
        %vm2477 = vc.u32 %v2475, %v2471
        %v2478 = vsel %vm2477, 1, 0
        %v2479 = vadd.s32 %v2475, %v2471
        %v2480 = vadd.s32 %v2476, %v2478
        %v2481 = vadd.s32 %v2480, %v2470
        %v2482 = vadd.s32 %v2481, %v2472
        %v2483 = vmul.u32 %v2438, %v2429
        %v2484 = vadd.s32 %v2460, %v2479
        %vm2485 = vc.u32 %v2460, %v2479
        %v2486 = vadd.s32 %v2482, 1
        %v2487 = vsel %vm2485, %v2486, %v2482
        %v2488 = vadd.s32 %v2483, %v2487
        %v2489 = vadd.s32 %v2488, 536870912
        %v2490 = vshrl.u32 %v2489, 30
        %v2491 = vshll.u32 %v2490, 30
        %v2492 = vsub.s32 %v2488, %v2491
        %vm2493 = vcmp.lt.s32.totalorder %v2492, 0
        %v2494 = vsub.s32 0, %v2492
        %v2495 = vsel %vm2493, %v2494, %v2492
        %v2496 = vclz %v2495
        %v2497 = vsub.s32 %v2496, 2
        %vm2498 = vcmp.gt.s32.totalorder 0, %v2497
        %v2499 = vsel %vm2498, 0, %v2497
        %v2500 = vsub.s32 32, %v2499
        %v2501 = vshll.u32 %v2492, %v2499
        %v2502 = vshrl.u32 %v2484, %v2500
        %v2503 = vor.u32 %v2501, %v2502
        %v2504 = vsub.s32 4294967266, %v2499
        %v2505 = vadd.s32 %v2504, 127
        %v2506 = vshll.u32 %v2505, 23
        %v2507 = vor.u32 4788187, %v2506
        %v2508 = vand.u32 2147483647, %v2507
        %v2510 = vcvt.s32.f32 %v2503
        %v2511 = vmul.f32 %v2510, %v2508
        %v2512 = vxor.u32 %v2511, 2147483648
        %v2513 = vsel %vm2392, %v2512, %v2511
        %v2514 = vsub.s32 4, %v2490
        %v2515 = vsel %vm2392, %v2514, %v2490
        %v2516 = vsel %vm2391, %v2233, %v2513
        %v2517 = vsel %vm2391, 0, %v2515
        %v2518 = vmul.f32 %v2516, %v2516
        %v2519 = vmul.f32 %v2518, -0.001358992
        %v2520 = vadd.f32 %v2519, 0.041655596
        %v2521 = vmul.f32 %v2518, %v2520
        %v2522 = vadd.f32 %v2521, -0.4999988
        %v2523 = vmul.f32 %v2518, %v2522
        %v2524 = vadd.f32 1.0, %v2523
        %v2525 = vmul.f32 %v2516, %v2516
        %v2526 = vmul.f32 %v2525, -0.00019511016
        %v2527 = vadd.f32 %v2526, 0.008332121
        %v2528 = vmul.f32 %v2525, %v2527
        %v2529 = vadd.f32 %v2528, -0.16666654
        %v2530 = vmul.f32 %v2525, %v2529
        %v2531 = vadd.f32 %v2530, 1.0
        %v2532 = vmul.f32 %v2531, %v2516
        %vm2533 = vweird.f32 %v2233
        %v2534 = vand.u32 %v2517, 3
        %vm2535 = vcmp.lt.s32.totalorder %v2534, 2
        %vm2536 = vcmp.eq.s32.totalorder %v2534, 0
        %v2537 = vxor.u32 %v2532, 2147483648
        %v2538 = vsel %vm2536, %v2524, %v2537
        %vm2539 = vcmp.eq.s32.totalorder %v2534, 2
        %v2540 = vxor.u32 %v2524, 2147483648
        %v2541 = vsel %vm2539, %v2540, %v2532
        %v2542 = vsel %vm2535, %v2538, %v2541
        %v2543 = vsel %vm2533, nan, %v2542
        %v2544 = vsub.f32 %v2389, %v2543
        %v2545 = vmul.f32 %v2544, %v2232
        %v2546 = vmul.f32 %v2545, 19.942808
        %v2547 = vmul.f32 %v310, 0.48860252
        %v2548 = vmul.f32 %v639, -0.48860252
        %v2549 = vmul.f32 %v2548, %v479
        %v2550 = vmul.f32 %v2548, %v634
        %v2551 = vmul.f32 %v2547, %v1601
        %v2552 = vmul.f32 %v2547, %v1916
        %v2553 = vmul.f32 %v2547, %v2231
        %v2554 = vmul.f32 %v2547, %v2546
        %v2555 = vmul.f32 %v2549, %v1601
        %v2556 = vmul.f32 %v2549, %v1916
        %v2557 = vmul.f32 %v2549, %v2231
        %v2558 = vmul.f32 %v2549, %v2546
        %v2559 = vmul.f32 %v2550, %v1601
        %v2560 = vmul.f32 %v2550, %v1916
        %v2561 = vmul.f32 %v2550, %v2231
        %v2562 = vmul.f32 %v2550, %v2546
        %v2563 = vmul.f32 %v156, 0.17350692
        %v2564 = vmul.f32 %v141, 5.763459
        %v2565 = vand.u32 2147483647, %v2564
        %vm2566 = vcmp.le.f32.partialorder %v2565, 0.7853982
        %vm2567 = vcmp.lt.s32.totalorder %v2564, 0
        %v2568 = vand.u32 %v2564, 2139095040
        %v2569 = vshrl.u32 %v2568, 23
        %v2570 = vsub.s32 %v2569, 127
        %v2571 = vand.u32 2147483647, %v2564
        %v2572 = vand.u32 %v2571, 8388607
        %v2573 = vor.u32 %v2572, 8388608
        %v2574 = vsub.s32 0, %v2573
        %v2575 = vadd.s32 %v2570, 1
        %vm2576 = vcmp.gt.s32.totalorder %v2575, 0
        %v2577 = vsel %vm2576, %v2575, 0
        %v2578 = vshrl.u32 %v2577, 5
        %v2579 = vand.u32 %v2577, 31
        %v2580 = vsub.s32 32, %v2579
        %v2581 = vshrl.u32 683565275, %v2580
        %v2582 = vshll.u32 683565275, %v2579
        %v2583 = vshrl.u32 2475754826, %v2580
        %v2584 = vor.u32 %v2582, %v2583
        %v2585 = vshll.u32 2475754826, %v2579
        %v2586 = vshrl.u32 2131351028, %v2580
        %v2587 = vor.u32 %v2585, %v2586
        %v2588 = vshll.u32 2131351028, %v2579
        %v2589 = vshrl.u32 2102212464, %v2580
        %v2590 = vor.u32 %v2588, %v2589
        %v2591 = vshll.u32 2102212464, %v2579
        %v2592 = vshrl.u32 920167782, %v2580
        %v2593 = vor.u32 %v2591, %v2592
        %v2594 = vshll.u32 920167782, %v2579
        %v2595 = vshrl.u32 1326507024, %v2580
        %v2596 = vor.u32 %v2594, %v2595
        %vm2597 = vcmp.lt.s32.totalorder %v2578, 1
        %vm2598 = vcmp.lt.s32.totalorder %v2578, 2
        %vm2599 = vcmp.lt.s32.totalorder %v2578, 3
        %vm2600 = vcmp.lt.s32.totalorder %v2578, 4
        %v2601 = vsel %vm2597, %v2581, %v2584
        %v2602 = vsel %vm2600, %v2590, 2102212464
        %v2603 = vsel %vm2599, %v2587, %v2602
        %v2604 = vsel %vm2598, %v2601, %v2603
        %v2605 = vsel %vm2597, %v2584, %v2587
        %v2606 = vsel %vm2600, %v2593, 920167782
        %v2607 = vsel %vm2599, %v2590, %v2606
        %v2608 = vsel %vm2598, %v2605, %v2607
        %v2609 = vsel %vm2597, %v2587, %v2590
        %v2610 = vsel %vm2600, %v2596, 1326507024
        %v2611 = vsel %vm2599, %v2593, %v2610
        %v2612 = vsel %vm2598, %v2609, %v2611
        %v2613 = vshll.u32 %v2573, 8
        %v2614 = vand.u32 %v2613, 65535
        %v2615 = vshrl.u32 %v2613, 16
        %v2616 = vand.u32 %v2612, 65535
        %v2617 = vshrl.u32 %v2612, 16
        %v2618 = vmul.u32 %v2614, %v2616
        %v2619 = vmul.u32 %v2614, %v2617
        %v2620 = vmul.u32 %v2615, %v2616
        %v2621 = vmul.u32 %v2615, %v2617
        %v2622 = vshll.u32 %v2619, 16
        %v2623 = vshrl.u32 %v2619, 16
        %v2624 = vshll.u32 %v2620, 16
        %v2625 = vshrl.u32 %v2620, 16
        %vm2626 = vc.u32 %v2618, %v2622
        %v2627 = vsel %vm2626, 1, 0
        %v2628 = vadd.s32 %v2618, %v2622
        %v2629 = vadd.s32 %v2621, %v2627
        %vm2630 = vc.u32 %v2628, %v2624
        %v2631 = vsel %vm2630, 1, 0
        %v2632 = vadd.s32 %v2628, %v2624
        %v2633 = vadd.s32 %v2629, %v2631
        %v2634 = vadd.s32 %v2633, %v2623
        %v2635 = vadd.s32 %v2634, %v2625
        %v2636 = vand.u32 %v2613, 65535
        %v2637 = vshrl.u32 %v2613, 16
        %v2638 = vand.u32 %v2608, 65535
        %v2639 = vshrl.u32 %v2608, 16
        %v2640 = vmul.u32 %v2636, %v2638
        %v2641 = vmul.u32 %v2636, %v2639
        %v2642 = vmul.u32 %v2637, %v2638
        %v2643 = vmul.u32 %v2637, %v2639
        %v2644 = vshll.u32 %v2641, 16
        %v2645 = vshrl.u32 %v2641, 16
        %v2646 = vshll.u32 %v2642, 16
        %v2647 = vshrl.u32 %v2642, 16
        %vm2648 = vc.u32 %v2640, %v2644
        %v2649 = vsel %vm2648, 1, 0
        %v2650 = vadd.s32 %v2640, %v2644
        %v2651 = vadd.s32 %v2643, %v2649
        %vm2652 = vc.u32 %v2650, %v2646
        %v2653 = vsel %vm2652, 1, 0
        %v2654 = vadd.s32 %v2650, %v2646
        %v2655 = vadd.s32 %v2651, %v2653
        %v2656 = vadd.s32 %v2655, %v2645
        %v2657 = vadd.s32 %v2656, %v2647
        %v2658 = vmul.u32 %v2613, %v2604
        %v2659 = vadd.s32 %v2635, %v2654
        %vm2660 = vc.u32 %v2635, %v2654
        %v2661 = vadd.s32 %v2657, 1
        %v2662 = vsel %vm2660, %v2661, %v2657
        %v2663 = vadd.s32 %v2658, %v2662
        %v2664 = vadd.s32 %v2663, 536870912
        %v2665 = vshrl.u32 %v2664, 30
        %v2666 = vshll.u32 %v2665, 30
        %v2667 = vsub.s32 %v2663, %v2666
        %vm2668 = vcmp.lt.s32.totalorder %v2667, 0
        %v2669 = vsub.s32 0, %v2667
        %v2670 = vsel %vm2668, %v2669, %v2667
        %v2671 = vclz %v2670
        %v2672 = vsub.s32 %v2671, 2
        %vm2673 = vcmp.gt.s32.totalorder 0, %v2672
        %v2674 = vsel %vm2673, 0, %v2672
        %v2675 = vsub.s32 32, %v2674
        %v2676 = vshll.u32 %v2667, %v2674
        %v2677 = vshrl.u32 %v2659, %v2675
        %v2678 = vor.u32 %v2676, %v2677
        %v2679 = vsub.s32 4294967266, %v2674
        %v2680 = vadd.s32 %v2679, 127
        %v2681 = vshll.u32 %v2680, 23
        %v2682 = vor.u32 4788187, %v2681
        %v2683 = vand.u32 2147483647, %v2682
        %v2685 = vcvt.s32.f32 %v2678
        %v2686 = vmul.f32 %v2685, %v2683
        %v2687 = vxor.u32 %v2686, 2147483648
        %v2688 = vsel %vm2567, %v2687, %v2686
        %v2689 = vsub.s32 4, %v2665
        %v2690 = vsel %vm2567, %v2689, %v2665
        %v2691 = vsel %vm2566, %v2564, %v2688
        %v2692 = vsel %vm2566, 0, %v2690
        %v2693 = vmul.f32 %v2691, %v2691
        %v2694 = vmul.f32 %v2693, -0.001358992
        %v2695 = vadd.f32 %v2694, 0.041655596
        %v2696 = vmul.f32 %v2693, %v2695
        %v2697 = vadd.f32 %v2696, -0.4999988
        %v2698 = vmul.f32 %v2693, %v2697
        %v2699 = vadd.f32 1.0, %v2698
        %v2700 = vmul.f32 %v2691, %v2691
        %v2701 = vmul.f32 %v2700, -0.00019511016
        %v2702 = vadd.f32 %v2701, 0.008332121
        %v2703 = vmul.f32 %v2700, %v2702
        %v2704 = vadd.f32 %v2703, -0.16666654
        %v2705 = vmul.f32 %v2700, %v2704
        %v2706 = vadd.f32 %v2705, 1.0
        %v2707 = vmul.f32 %v2706, %v2691
        %vm2708 = vweird.f32 %v2564
        %v2709 = vadd.s32 %v2692, 3
        %v2710 = vand.u32 %v2709, 3
        %vm2711 = vcmp.lt.s32.totalorder %v2710, 2
        %vm2712 = vcmp.eq.s32.totalorder %v2710, 0
        %v2713 = vxor.u32 %v2707, 2147483648
        %v2714 = vsel %vm2712, %v2699, %v2713
        %vm2715 = vcmp.eq.s32.totalorder %v2710, 2
        %v2716 = vxor.u32 %v2699, 2147483648
        %v2717 = vsel %vm2715, %v2716, %v2707
        %v2718 = vsel %vm2711, %v2714, %v2717
        %v2719 = vsel %vm2708, nan, %v2718
        %v2720 = vmul.f32 %v2719, %v2563
        %v2721 = vand.u32 2147483647, %v2564
        %vm2722 = vcmp.le.f32.partialorder %v2721, 0.7853982
        %vm2723 = vcmp.lt.s32.totalorder %v2564, 0
        %v2724 = vand.u32 %v2564, 2139095040
        %v2725 = vshrl.u32 %v2724, 23
        %v2726 = vsub.s32 %v2725, 127
        %v2727 = vand.u32 2147483647, %v2564
        %v2728 = vand.u32 %v2727, 8388607
        %v2729 = vor.u32 %v2728, 8388608
        %v2730 = vsub.s32 0, %v2729
        %v2731 = vadd.s32 %v2726, 1
        %vm2732 = vcmp.gt.s32.totalorder %v2731, 0
        %v2733 = vsel %vm2732, %v2731, 0
        %v2734 = vshrl.u32 %v2733, 5
        %v2735 = vand.u32 %v2733, 31
        %v2736 = vsub.s32 32, %v2735
        %v2737 = vshrl.u32 683565275, %v2736
        %v2738 = vshll.u32 683565275, %v2735
        %v2739 = vshrl.u32 2475754826, %v2736
        %v2740 = vor.u32 %v2738, %v2739
        %v2741 = vshll.u32 2475754826, %v2735
        %v2742 = vshrl.u32 2131351028, %v2736
        %v2743 = vor.u32 %v2741, %v2742
        %v2744 = vshll.u32 2131351028, %v2735
        %v2745 = vshrl.u32 2102212464, %v2736
        %v2746 = vor.u32 %v2744, %v2745
        %v2747 = vshll.u32 2102212464, %v2735
        %v2748 = vshrl.u32 920167782, %v2736
        %v2749 = vor.u32 %v2747, %v2748
        %v2750 = vshll.u32 920167782, %v2735
        %v2751 = vshrl.u32 1326507024, %v2736
        %v2752 = vor.u32 %v2750, %v2751
        %vm2753 = vcmp.lt.s32.totalorder %v2734, 1
        %vm2754 = vcmp.lt.s32.totalorder %v2734, 2
        %vm2755 = vcmp.lt.s32.totalorder %v2734, 3
        %vm2756 = vcmp.lt.s32.totalorder %v2734, 4
        %v2757 = vsel %vm2753, %v2737, %v2740
        %v2758 = vsel %vm2756, %v2746, 2102212464
        %v2759 = vsel %vm2755, %v2743, %v2758
        %v2760 = vsel %vm2754, %v2757, %v2759
        %v2761 = vsel %vm2753, %v2740, %v2743
        %v2762 = vsel %vm2756, %v2749, 920167782
        %v2763 = vsel %vm2755, %v2746, %v2762
        %v2764 = vsel %vm2754, %v2761, %v2763
        %v2765 = vsel %vm2753, %v2743, %v2746
        %v2766 = vsel %vm2756, %v2752, 1326507024
        %v2767 = vsel %vm2755, %v2749, %v2766
        %v2768 = vsel %vm2754, %v2765, %v2767
        %v2769 = vshll.u32 %v2729, 8
        %v2770 = vand.u32 %v2769, 65535
        %v2771 = vshrl.u32 %v2769, 16
        %v2772 = vand.u32 %v2768, 65535
        %v2773 = vshrl.u32 %v2768, 16
        %v2774 = vmul.u32 %v2770, %v2772
        %v2775 = vmul.u32 %v2770, %v2773
        %v2776 = vmul.u32 %v2771, %v2772
        %v2777 = vmul.u32 %v2771, %v2773
        %v2778 = vshll.u32 %v2775, 16
        %v2779 = vshrl.u32 %v2775, 16
        %v2780 = vshll.u32 %v2776, 16
        %v2781 = vshrl.u32 %v2776, 16
        %vm2782 = vc.u32 %v2774, %v2778
        %v2783 = vsel %vm2782, 1, 0
        %v2784 = vadd.s32 %v2774, %v2778
        %v2785 = vadd.s32 %v2777, %v2783
        %vm2786 = vc.u32 %v2784, %v2780
        %v2787 = vsel %vm2786, 1, 0
        %v2788 = vadd.s32 %v2784, %v2780
        %v2789 = vadd.s32 %v2785, %v2787
        %v2790 = vadd.s32 %v2789, %v2779
        %v2791 = vadd.s32 %v2790, %v2781
        %v2792 = vand.u32 %v2769, 65535
        %v2793 = vshrl.u32 %v2769, 16
        %v2794 = vand.u32 %v2764, 65535
        %v2795 = vshrl.u32 %v2764, 16
        %v2796 = vmul.u32 %v2792, %v2794
        %v2797 = vmul.u32 %v2792, %v2795
        %v2798 = vmul.u32 %v2793, %v2794
        %v2799 = vmul.u32 %v2793, %v2795
        %v2800 = vshll.u32 %v2797, 16
        %v2801 = vshrl.u32 %v2797, 16
        %v2802 = vshll.u32 %v2798, 16
        %v2803 = vshrl.u32 %v2798, 16
        %vm2804 = vc.u32 %v2796, %v2800
        %v2805 = vsel %vm2804, 1, 0
        %v2806 = vadd.s32 %v2796, %v2800
        %v2807 = vadd.s32 %v2799, %v2805
        %vm2808 = vc.u32 %v2806, %v2802
        %v2809 = vsel %vm2808, 1, 0
        %v2810 = vadd.s32 %v2806, %v2802
        %v2811 = vadd.s32 %v2807, %v2809
        %v2812 = vadd.s32 %v2811, %v2801
        %v2813 = vadd.s32 %v2812, %v2803
        %v2814 = vmul.u32 %v2769, %v2760
        %v2815 = vadd.s32 %v2791, %v2810
        %vm2816 = vc.u32 %v2791, %v2810
        %v2817 = vadd.s32 %v2813, 1
        %v2818 = vsel %vm2816, %v2817, %v2813
        %v2819 = vadd.s32 %v2814, %v2818
        %v2820 = vadd.s32 %v2819, 536870912
        %v2821 = vshrl.u32 %v2820, 30
        %v2822 = vshll.u32 %v2821, 30
        %v2823 = vsub.s32 %v2819, %v2822
        %vm2824 = vcmp.lt.s32.totalorder %v2823, 0
        %v2825 = vsub.s32 0, %v2823
        %v2826 = vsel %vm2824, %v2825, %v2823
        %v2827 = vclz %v2826
        %v2828 = vsub.s32 %v2827, 2
        %vm2829 = vcmp.gt.s32.totalorder 0, %v2828
        %v2830 = vsel %vm2829, 0, %v2828
        %v2831 = vsub.s32 32, %v2830
        %v2832 = vshll.u32 %v2823, %v2830
        %v2833 = vshrl.u32 %v2815, %v2831
        %v2834 = vor.u32 %v2832, %v2833
        %v2835 = vsub.s32 4294967266, %v2830
        %v2836 = vadd.s32 %v2835, 127
        %v2837 = vshll.u32 %v2836, 23
        %v2838 = vor.u32 4788187, %v2837
        %v2839 = vand.u32 2147483647, %v2838
        %v2841 = vcvt.s32.f32 %v2834
        %v2842 = vmul.f32 %v2841, %v2839
        %v2843 = vxor.u32 %v2842, 2147483648
        %v2844 = vsel %vm2723, %v2843, %v2842
        %v2845 = vsub.s32 4, %v2821
        %v2846 = vsel %vm2723, %v2845, %v2821
        %v2847 = vsel %vm2722, %v2564, %v2844
        %v2848 = vsel %vm2722, 0, %v2846
        %v2849 = vmul.f32 %v2847, %v2847
        %v2850 = vmul.f32 %v2849, -0.001358992
        %v2851 = vadd.f32 %v2850, 0.041655596
        %v2852 = vmul.f32 %v2849, %v2851
        %v2853 = vadd.f32 %v2852, -0.4999988
        %v2854 = vmul.f32 %v2849, %v2853
        %v2855 = vadd.f32 1.0, %v2854
        %v2856 = vmul.f32 %v2847, %v2847
        %v2857 = vmul.f32 %v2856, -0.00019511016
        %v2858 = vadd.f32 %v2857, 0.008332121
        %v2859 = vmul.f32 %v2856, %v2858
        %v2860 = vadd.f32 %v2859, -0.16666654
        %v2861 = vmul.f32 %v2856, %v2860
        %v2862 = vadd.f32 %v2861, 1.0
        %v2863 = vmul.f32 %v2862, %v2847
        %vm2864 = vweird.f32 %v2564
        %v2865 = vand.u32 %v2848, 3
        %vm2866 = vcmp.lt.s32.totalorder %v2865, 2
        %vm2867 = vcmp.eq.s32.totalorder %v2865, 0
        %v2868 = vxor.u32 %v2863, 2147483648
        %v2869 = vsel %vm2867, %v2855, %v2868
        %vm2870 = vcmp.eq.s32.totalorder %v2865, 2
        %v2871 = vxor.u32 %v2855, 2147483648
        %v2872 = vsel %vm2870, %v2871, %v2863
        %v2873 = vsel %vm2866, %v2869, %v2872
        %v2874 = vsel %vm2864, nan, %v2873
        %v2875 = vsub.f32 %v2720, %v2874
        %v2876 = vmul.f32 %v2875, %v2563
        %v2877 = vmul.f32 %v2563, 3.0
        %v2878 = vmul.f32 %v2877, %v2876
        %v2879 = vsub.f32 %v2878, %v2720
        %v2880 = vmul.f32 %v2879, 8.542646
        %v2881 = vmul.f32 %v156, 0.109950386
        %v2882 = vmul.f32 %v141, 9.095012
        %v2883 = vand.u32 2147483647, %v2882
        %vm2884 = vcmp.le.f32.partialorder %v2883, 0.7853982
        %vm2885 = vcmp.lt.s32.totalorder %v2882, 0
        %v2886 = vand.u32 %v2882, 2139095040
        %v2887 = vshrl.u32 %v2886, 23
        %v2888 = vsub.s32 %v2887, 127
        %v2889 = vand.u32 2147483647, %v2882
        %v2890 = vand.u32 %v2889, 8388607
        %v2891 = vor.u32 %v2890, 8388608
        %v2892 = vsub.s32 0, %v2891
        %v2893 = vadd.s32 %v2888, 1
        %vm2894 = vcmp.gt.s32.totalorder %v2893, 0
        %v2895 = vsel %vm2894, %v2893, 0
        %v2896 = vshrl.u32 %v2895, 5
        %v2897 = vand.u32 %v2895, 31
        %v2898 = vsub.s32 32, %v2897
        %v2899 = vshrl.u32 683565275, %v2898
        %v2900 = vshll.u32 683565275, %v2897
        %v2901 = vshrl.u32 2475754826, %v2898
        %v2902 = vor.u32 %v2900, %v2901
        %v2903 = vshll.u32 2475754826, %v2897
        %v2904 = vshrl.u32 2131351028, %v2898
        %v2905 = vor.u32 %v2903, %v2904
        %v2906 = vshll.u32 2131351028, %v2897
        %v2907 = vshrl.u32 2102212464, %v2898
        %v2908 = vor.u32 %v2906, %v2907
        %v2909 = vshll.u32 2102212464, %v2897
        %v2910 = vshrl.u32 920167782, %v2898
        %v2911 = vor.u32 %v2909, %v2910
        %v2912 = vshll.u32 920167782, %v2897
        %v2913 = vshrl.u32 1326507024, %v2898
        %v2914 = vor.u32 %v2912, %v2913
        %vm2915 = vcmp.lt.s32.totalorder %v2896, 1
        %vm2916 = vcmp.lt.s32.totalorder %v2896, 2
        %vm2917 = vcmp.lt.s32.totalorder %v2896, 3
        %vm2918 = vcmp.lt.s32.totalorder %v2896, 4
        %v2919 = vsel %vm2915, %v2899, %v2902
        %v2920 = vsel %vm2918, %v2908, 2102212464
        %v2921 = vsel %vm2917, %v2905, %v2920
        %v2922 = vsel %vm2916, %v2919, %v2921
        %v2923 = vsel %vm2915, %v2902, %v2905
        %v2924 = vsel %vm2918, %v2911, 920167782
        %v2925 = vsel %vm2917, %v2908, %v2924
        %v2926 = vsel %vm2916, %v2923, %v2925
        %v2927 = vsel %vm2915, %v2905, %v2908
        %v2928 = vsel %vm2918, %v2914, 1326507024
        %v2929 = vsel %vm2917, %v2911, %v2928
        %v2930 = vsel %vm2916, %v2927, %v2929
        %v2931 = vshll.u32 %v2891, 8
        %v2932 = vand.u32 %v2931, 65535
        %v2933 = vshrl.u32 %v2931, 16
        %v2934 = vand.u32 %v2930, 65535
        %v2935 = vshrl.u32 %v2930, 16
        %v2936 = vmul.u32 %v2932, %v2934
        %v2937 = vmul.u32 %v2932, %v2935
        %v2938 = vmul.u32 %v2933, %v2934
        %v2939 = vmul.u32 %v2933, %v2935
        %v2940 = vshll.u32 %v2937, 16
        %v2941 = vshrl.u32 %v2937, 16
        %v2942 = vshll.u32 %v2938, 16
        %v2943 = vshrl.u32 %v2938, 16
        %vm2944 = vc.u32 %v2936, %v2940
        %v2945 = vsel %vm2944, 1, 0
        %v2946 = vadd.s32 %v2936, %v2940
        %v2947 = vadd.s32 %v2939, %v2945
        %vm2948 = vc.u32 %v2946, %v2942
        %v2949 = vsel %vm2948, 1, 0
        %v2950 = vadd.s32 %v2946, %v2942
        %v2951 = vadd.s32 %v2947, %v2949
        %v2952 = vadd.s32 %v2951, %v2941
        %v2953 = vadd.s32 %v2952, %v2943
        %v2954 = vand.u32 %v2931, 65535
        %v2955 = vshrl.u32 %v2931, 16
        %v2956 = vand.u32 %v2926, 65535
        %v2957 = vshrl.u32 %v2926, 16
        %v2958 = vmul.u32 %v2954, %v2956
        %v2959 = vmul.u32 %v2954, %v2957
        %v2960 = vmul.u32 %v2955, %v2956
        %v2961 = vmul.u32 %v2955, %v2957
        %v2962 = vshll.u32 %v2959, 16
        %v2963 = vshrl.u32 %v2959, 16
        %v2964 = vshll.u32 %v2960, 16
        %v2965 = vshrl.u32 %v2960, 16
        %vm2966 = vc.u32 %v2958, %v2962
        %v2967 = vsel %vm2966, 1, 0
        %v2968 = vadd.s32 %v2958, %v2962
        %v2969 = vadd.s32 %v2961, %v2967
        %vm2970 = vc.u32 %v2968, %v2964
        %v2971 = vsel %vm2970, 1, 0
        %v2972 = vadd.s32 %v2968, %v2964
        %v2973 = vadd.s32 %v2969, %v2971
        %v2974 = vadd.s32 %v2973, %v2963
        %v2975 = vadd.s32 %v2974, %v2965
        %v2976 = vmul.u32 %v2931, %v2922
        %v2977 = vadd.s32 %v2953, %v2972
        %vm2978 = vc.u32 %v2953, %v2972
        %v2979 = vadd.s32 %v2975, 1
        %v2980 = vsel %vm2978, %v2979, %v2975
        %v2981 = vadd.s32 %v2976, %v2980
        %v2982 = vadd.s32 %v2981, 536870912
        %v2983 = vshrl.u32 %v2982, 30
        %v2984 = vshll.u32 %v2983, 30
        %v2985 = vsub.s32 %v2981, %v2984
        %vm2986 = vcmp.lt.s32.totalorder %v2985, 0
        %v2987 = vsub.s32 0, %v2985
        %v2988 = vsel %vm2986, %v2987, %v2985
        %v2989 = vclz %v2988
        %v2990 = vsub.s32 %v2989, 2
        %vm2991 = vcmp.gt.s32.totalorder 0, %v2990
        %v2992 = vsel %vm2991, 0, %v2990
        %v2993 = vsub.s32 32, %v2992
        %v2994 = vshll.u32 %v2985, %v2992
        %v2995 = vshrl.u32 %v2977, %v2993
        %v2996 = vor.u32 %v2994, %v2995
        %v2997 = vsub.s32 4294967266, %v2992
        %v2998 = vadd.s32 %v2997, 127
        %v2999 = vshll.u32 %v2998, 23
        %v3000 = vor.u32 4788187, %v2999
        %v3001 = vand.u32 2147483647, %v3000
        %v3003 = vcvt.s32.f32 %v2996
        %v3004 = vmul.f32 %v3003, %v3001
        %v3005 = vxor.u32 %v3004, 2147483648
        %v3006 = vsel %vm2885, %v3005, %v3004
        %v3007 = vsub.s32 4, %v2983
        %v3008 = vsel %vm2885, %v3007, %v2983
        %v3009 = vsel %vm2884, %v2882, %v3006
        %v3010 = vsel %vm2884, 0, %v3008
        %v3011 = vmul.f32 %v3009, %v3009
        %v3012 = vmul.f32 %v3011, -0.001358992
        %v3013 = vadd.f32 %v3012, 0.041655596
        %v3014 = vmul.f32 %v3011, %v3013
        %v3015 = vadd.f32 %v3014, -0.4999988
        %v3016 = vmul.f32 %v3011, %v3015
        %v3017 = vadd.f32 1.0, %v3016
        %v3018 = vmul.f32 %v3009, %v3009
        %v3019 = vmul.f32 %v3018, -0.00019511016
        %v3020 = vadd.f32 %v3019, 0.008332121
        %v3021 = vmul.f32 %v3018, %v3020
        %v3022 = vadd.f32 %v3021, -0.16666654
        %v3023 = vmul.f32 %v3018, %v3022
        %v3024 = vadd.f32 %v3023, 1.0
        %v3025 = vmul.f32 %v3024, %v3009
        %vm3026 = vweird.f32 %v2882
        %v3027 = vadd.s32 %v3010, 3
        %v3028 = vand.u32 %v3027, 3
        %vm3029 = vcmp.lt.s32.totalorder %v3028, 2
        %vm3030 = vcmp.eq.s32.totalorder %v3028, 0
        %v3031 = vxor.u32 %v3025, 2147483648
        %v3032 = vsel %vm3030, %v3017, %v3031
        %vm3033 = vcmp.eq.s32.totalorder %v3028, 2
        %v3034 = vxor.u32 %v3017, 2147483648
        %v3035 = vsel %vm3033, %v3034, %v3025
        %v3036 = vsel %vm3029, %v3032, %v3035
        %v3037 = vsel %vm3026, nan, %v3036
        %v3038 = vmul.f32 %v3037, %v2881
        %v3039 = vand.u32 2147483647, %v2882
        %vm3040 = vcmp.le.f32.partialorder %v3039, 0.7853982
        %vm3041 = vcmp.lt.s32.totalorder %v2882, 0
        %v3042 = vand.u32 %v2882, 2139095040
        %v3043 = vshrl.u32 %v3042, 23
        %v3044 = vsub.s32 %v3043, 127
        %v3045 = vand.u32 2147483647, %v2882
        %v3046 = vand.u32 %v3045, 8388607
        %v3047 = vor.u32 %v3046, 8388608
        %v3048 = vsub.s32 0, %v3047
        %v3049 = vadd.s32 %v3044, 1
        %vm3050 = vcmp.gt.s32.totalorder %v3049, 0
        %v3051 = vsel %vm3050, %v3049, 0
        %v3052 = vshrl.u32 %v3051, 5
        %v3053 = vand.u32 %v3051, 31
        %v3054 = vsub.s32 32, %v3053
        %v3055 = vshrl.u32 683565275, %v3054
        %v3056 = vshll.u32 683565275, %v3053
        %v3057 = vshrl.u32 2475754826, %v3054
        %v3058 = vor.u32 %v3056, %v3057
        %v3059 = vshll.u32 2475754826, %v3053
        %v3060 = vshrl.u32 2131351028, %v3054
        %v3061 = vor.u32 %v3059, %v3060
        %v3062 = vshll.u32 2131351028, %v3053
        %v3063 = vshrl.u32 2102212464, %v3054
        %v3064 = vor.u32 %v3062, %v3063
        %v3065 = vshll.u32 2102212464, %v3053
        %v3066 = vshrl.u32 920167782, %v3054
        %v3067 = vor.u32 %v3065, %v3066
        %v3068 = vshll.u32 920167782, %v3053
        %v3069 = vshrl.u32 1326507024, %v3054
        %v3070 = vor.u32 %v3068, %v3069
        %vm3071 = vcmp.lt.s32.totalorder %v3052, 1
        %vm3072 = vcmp.lt.s32.totalorder %v3052, 2
        %vm3073 = vcmp.lt.s32.totalorder %v3052, 3
        %vm3074 = vcmp.lt.s32.totalorder %v3052, 4
        %v3075 = vsel %vm3071, %v3055, %v3058
        %v3076 = vsel %vm3074, %v3064, 2102212464
        %v3077 = vsel %vm3073, %v3061, %v3076
        %v3078 = vsel %vm3072, %v3075, %v3077
        %v3079 = vsel %vm3071, %v3058, %v3061
        %v3080 = vsel %vm3074, %v3067, 920167782
        %v3081 = vsel %vm3073, %v3064, %v3080
        %v3082 = vsel %vm3072, %v3079, %v3081
        %v3083 = vsel %vm3071, %v3061, %v3064
        %v3084 = vsel %vm3074, %v3070, 1326507024
        %v3085 = vsel %vm3073, %v3067, %v3084
        %v3086 = vsel %vm3072, %v3083, %v3085
        %v3087 = vshll.u32 %v3047, 8
        %v3088 = vand.u32 %v3087, 65535
        %v3089 = vshrl.u32 %v3087, 16
        %v3090 = vand.u32 %v3086, 65535
        %v3091 = vshrl.u32 %v3086, 16
        %v3092 = vmul.u32 %v3088, %v3090
        %v3093 = vmul.u32 %v3088, %v3091
        %v3094 = vmul.u32 %v3089, %v3090
        %v3095 = vmul.u32 %v3089, %v3091
        %v3096 = vshll.u32 %v3093, 16
        %v3097 = vshrl.u32 %v3093, 16
        %v3098 = vshll.u32 %v3094, 16
        %v3099 = vshrl.u32 %v3094, 16
        %vm3100 = vc.u32 %v3092, %v3096
        %v3101 = vsel %vm3100, 1, 0
        %v3102 = vadd.s32 %v3092, %v3096
        %v3103 = vadd.s32 %v3095, %v3101
        %vm3104 = vc.u32 %v3102, %v3098
        %v3105 = vsel %vm3104, 1, 0
        %v3106 = vadd.s32 %v3102, %v3098
        %v3107 = vadd.s32 %v3103, %v3105
        %v3108 = vadd.s32 %v3107, %v3097
        %v3109 = vadd.s32 %v3108, %v3099
        %v3110 = vand.u32 %v3087, 65535
        %v3111 = vshrl.u32 %v3087, 16
        %v3112 = vand.u32 %v3082, 65535
        %v3113 = vshrl.u32 %v3082, 16
        %v3114 = vmul.u32 %v3110, %v3112
        %v3115 = vmul.u32 %v3110, %v3113
        %v3116 = vmul.u32 %v3111, %v3112
        %v3117 = vmul.u32 %v3111, %v3113
        %v3118 = vshll.u32 %v3115, 16
        %v3119 = vshrl.u32 %v3115, 16
        %v3120 = vshll.u32 %v3116, 16
        %v3121 = vshrl.u32 %v3116, 16
        %vm3122 = vc.u32 %v3114, %v3118
        %v3123 = vsel %vm3122, 1, 0
        %v3124 = vadd.s32 %v3114, %v3118
        %v3125 = vadd.s32 %v3117, %v3123
        %vm3126 = vc.u32 %v3124, %v3120
        %v3127 = vsel %vm3126, 1, 0
        %v3128 = vadd.s32 %v3124, %v3120
        %v3129 = vadd.s32 %v3125, %v3127
        %v3130 = vadd.s32 %v3129, %v3119
        %v3131 = vadd.s32 %v3130, %v3121
        %v3132 = vmul.u32 %v3087, %v3078
        %v3133 = vadd.s32 %v3109, %v3128
        %vm3134 = vc.u32 %v3109, %v3128
        %v3135 = vadd.s32 %v3131, 1
        %v3136 = vsel %vm3134, %v3135, %v3131
        %v3137 = vadd.s32 %v3132, %v3136
        %v3138 = vadd.s32 %v3137, 536870912
        %v3139 = vshrl.u32 %v3138, 30
        %v3140 = vshll.u32 %v3139, 30
        %v3141 = vsub.s32 %v3137, %v3140
        %vm3142 = vcmp.lt.s32.totalorder %v3141, 0
        %v3143 = vsub.s32 0, %v3141
        %v3144 = vsel %vm3142, %v3143, %v3141
        %v3145 = vclz %v3144
        %v3146 = vsub.s32 %v3145, 2
        %vm3147 = vcmp.gt.s32.totalorder 0, %v3146
        %v3148 = vsel %vm3147, 0, %v3146
        %v3149 = vsub.s32 32, %v3148
        %v3150 = vshll.u32 %v3141, %v3148
        %v3151 = vshrl.u32 %v3133, %v3149
        %v3152 = vor.u32 %v3150, %v3151
        %v3153 = vsub.s32 4294967266, %v3148
        %v3154 = vadd.s32 %v3153, 127
        %v3155 = vshll.u32 %v3154, 23
        %v3156 = vor.u32 4788187, %v3155
        %v3157 = vand.u32 2147483647, %v3156
        %v3159 = vcvt.s32.f32 %v3152
        %v3160 = vmul.f32 %v3159, %v3157
        %v3161 = vxor.u32 %v3160, 2147483648
        %v3162 = vsel %vm3041, %v3161, %v3160
        %v3163 = vsub.s32 4, %v3139
        %v3164 = vsel %vm3041, %v3163, %v3139
        %v3165 = vsel %vm3040, %v2882, %v3162
        %v3166 = vsel %vm3040, 0, %v3164
        %v3167 = vmul.f32 %v3165, %v3165
        %v3168 = vmul.f32 %v3167, -0.001358992
        %v3169 = vadd.f32 %v3168, 0.041655596
        %v3170 = vmul.f32 %v3167, %v3169
        %v3171 = vadd.f32 %v3170, -0.4999988
        %v3172 = vmul.f32 %v3167, %v3171
        %v3173 = vadd.f32 1.0, %v3172
        %v3174 = vmul.f32 %v3165, %v3165
        %v3175 = vmul.f32 %v3174, -0.00019511016
        %v3176 = vadd.f32 %v3175, 0.008332121
        %v3177 = vmul.f32 %v3174, %v3176
        %v3178 = vadd.f32 %v3177, -0.16666654
        %v3179 = vmul.f32 %v3174, %v3178
        %v3180 = vadd.f32 %v3179, 1.0
        %v3181 = vmul.f32 %v3180, %v3165
        %vm3182 = vweird.f32 %v2882
        %v3183 = vand.u32 %v3166, 3
        %vm3184 = vcmp.lt.s32.totalorder %v3183, 2
        %vm3185 = vcmp.eq.s32.totalorder %v3183, 0
        %v3186 = vxor.u32 %v3181, 2147483648
        %v3187 = vsel %vm3185, %v3173, %v3186
        %vm3188 = vcmp.eq.s32.totalorder %v3183, 2
        %v3189 = vxor.u32 %v3173, 2147483648
        %v3190 = vsel %vm3188, %v3189, %v3181
        %v3191 = vsel %vm3184, %v3187, %v3190
        %v3192 = vsel %vm3182, nan, %v3191
        %v3193 = vsub.f32 %v3038, %v3192
        %v3194 = vmul.f32 %v3193, %v2881
        %v3195 = vmul.f32 %v2881, 3.0
        %v3196 = vmul.f32 %v3195, %v3194
        %v3197 = vsub.f32 %v3196, %v3038
        %v3198 = vmul.f32 %v3197, 13.101758
        %v3199 = vmul.f32 %v156, 0.08114946
        %v3200 = vmul.f32 %v141, 12.322941
        %v3201 = vand.u32 2147483647, %v3200
        %vm3202 = vcmp.le.f32.partialorder %v3201, 0.7853982
        %vm3203 = vcmp.lt.s32.totalorder %v3200, 0
        %v3204 = vand.u32 %v3200, 2139095040
        %v3205 = vshrl.u32 %v3204, 23
        %v3206 = vsub.s32 %v3205, 127
        %v3207 = vand.u32 2147483647, %v3200
        %v3208 = vand.u32 %v3207, 8388607
        %v3209 = vor.u32 %v3208, 8388608
        %v3210 = vsub.s32 0, %v3209
        %v3211 = vadd.s32 %v3206, 1
        %vm3212 = vcmp.gt.s32.totalorder %v3211, 0
        %v3213 = vsel %vm3212, %v3211, 0
        %v3214 = vshrl.u32 %v3213, 5
        %v3215 = vand.u32 %v3213, 31
        %v3216 = vsub.s32 32, %v3215
        %v3217 = vshrl.u32 683565275, %v3216
        %v3218 = vshll.u32 683565275, %v3215
        %v3219 = vshrl.u32 2475754826, %v3216
        %v3220 = vor.u32 %v3218, %v3219
        %v3221 = vshll.u32 2475754826, %v3215
        %v3222 = vshrl.u32 2131351028, %v3216
        %v3223 = vor.u32 %v3221, %v3222
        %v3224 = vshll.u32 2131351028, %v3215
        %v3225 = vshrl.u32 2102212464, %v3216
        %v3226 = vor.u32 %v3224, %v3225
        %v3227 = vshll.u32 2102212464, %v3215
        %v3228 = vshrl.u32 920167782, %v3216
        %v3229 = vor.u32 %v3227, %v3228
        %v3230 = vshll.u32 920167782, %v3215
        %v3231 = vshrl.u32 1326507024, %v3216
        %v3232 = vor.u32 %v3230, %v3231
        %vm3233 = vcmp.lt.s32.totalorder %v3214, 1
        %vm3234 = vcmp.lt.s32.totalorder %v3214, 2
        %vm3235 = vcmp.lt.s32.totalorder %v3214, 3
        %vm3236 = vcmp.lt.s32.totalorder %v3214, 4
        %v3237 = vsel %vm3233, %v3217, %v3220
        %v3238 = vsel %vm3236, %v3226, 2102212464
        %v3239 = vsel %vm3235, %v3223, %v3238
        %v3240 = vsel %vm3234, %v3237, %v3239
        %v3241 = vsel %vm3233, %v3220, %v3223
        %v3242 = vsel %vm3236, %v3229, 920167782
        %v3243 = vsel %vm3235, %v3226, %v3242
        %v3244 = vsel %vm3234, %v3241, %v3243
        %v3245 = vsel %vm3233, %v3223, %v3226
        %v3246 = vsel %vm3236, %v3232, 1326507024
        %v3247 = vsel %vm3235, %v3229, %v3246
        %v3248 = vsel %vm3234, %v3245, %v3247
        %v3249 = vshll.u32 %v3209, 8
        %v3250 = vand.u32 %v3249, 65535
        %v3251 = vshrl.u32 %v3249, 16
        %v3252 = vand.u32 %v3248, 65535
        %v3253 = vshrl.u32 %v3248, 16
        %v3254 = vmul.u32 %v3250, %v3252
        %v3255 = vmul.u32 %v3250, %v3253
        %v3256 = vmul.u32 %v3251, %v3252
        %v3257 = vmul.u32 %v3251, %v3253
        %v3258 = vshll.u32 %v3255, 16
        %v3259 = vshrl.u32 %v3255, 16
        %v3260 = vshll.u32 %v3256, 16
        %v3261 = vshrl.u32 %v3256, 16
        %vm3262 = vc.u32 %v3254, %v3258
        %v3263 = vsel %vm3262, 1, 0
        %v3264 = vadd.s32 %v3254, %v3258
        %v3265 = vadd.s32 %v3257, %v3263
        %vm3266 = vc.u32 %v3264, %v3260
        %v3267 = vsel %vm3266, 1, 0
        %v3268 = vadd.s32 %v3264, %v3260
        %v3269 = vadd.s32 %v3265, %v3267
        %v3270 = vadd.s32 %v3269, %v3259
        %v3271 = vadd.s32 %v3270, %v3261
        %v3272 = vand.u32 %v3249, 65535
        %v3273 = vshrl.u32 %v3249, 16
        %v3274 = vand.u32 %v3244, 65535
        %v3275 = vshrl.u32 %v3244, 16
        %v3276 = vmul.u32 %v3272, %v3274
        %v3277 = vmul.u32 %v3272, %v3275
        %v3278 = vmul.u32 %v3273, %v3274
        %v3279 = vmul.u32 %v3273, %v3275
        %v3280 = vshll.u32 %v3277, 16
        %v3281 = vshrl.u32 %v3277, 16
        %v3282 = vshll.u32 %v3278, 16
        %v3283 = vshrl.u32 %v3278, 16
        %vm3284 = vc.u32 %v3276, %v3280
        %v3285 = vsel %vm3284, 1, 0
        %v3286 = vadd.s32 %v3276, %v3280
        %v3287 = vadd.s32 %v3279, %v3285
        %vm3288 = vc.u32 %v3286, %v3282
        %v3289 = vsel %vm3288, 1, 0
        %v3290 = vadd.s32 %v3286, %v3282
        %v3291 = vadd.s32 %v3287, %v3289
        %v3292 = vadd.s32 %v3291, %v3281
        %v3293 = vadd.s32 %v3292, %v3283
        %v3294 = vmul.u32 %v3249, %v3240
        %v3295 = vadd.s32 %v3271, %v3290
        %vm3296 = vc.u32 %v3271, %v3290
        %v3297 = vadd.s32 %v3293, 1
        %v3298 = vsel %vm3296, %v3297, %v3293
        %v3299 = vadd.s32 %v3294, %v3298
        %v3300 = vadd.s32 %v3299, 536870912
        %v3301 = vshrl.u32 %v3300, 30
        %v3302 = vshll.u32 %v3301, 30
        %v3303 = vsub.s32 %v3299, %v3302
        %vm3304 = vcmp.lt.s32.totalorder %v3303, 0
        %v3305 = vsub.s32 0, %v3303
        %v3306 = vsel %vm3304, %v3305, %v3303
        %v3307 = vclz %v3306
        %v3308 = vsub.s32 %v3307, 2
        %vm3309 = vcmp.gt.s32.totalorder 0, %v3308
        %v3310 = vsel %vm3309, 0, %v3308
        %v3311 = vsub.s32 32, %v3310
        %v3312 = vshll.u32 %v3303, %v3310
        %v3313 = vshrl.u32 %v3295, %v3311
        %v3314 = vor.u32 %v3312, %v3313
        %v3315 = vsub.s32 4294967266, %v3310
        %v3316 = vadd.s32 %v3315, 127
        %v3317 = vshll.u32 %v3316, 23
        %v3318 = vor.u32 4788187, %v3317
        %v3319 = vand.u32 2147483647, %v3318
        %v3321 = vcvt.s32.f32 %v3314
        %v3322 = vmul.f32 %v3321, %v3319
        %v3323 = vxor.u32 %v3322, 2147483648
        %v3324 = vsel %vm3203, %v3323, %v3322
        %v3325 = vsub.s32 4, %v3301
        %v3326 = vsel %vm3203, %v3325, %v3301
        %v3327 = vsel %vm3202, %v3200, %v3324
        %v3328 = vsel %vm3202, 0, %v3326
        %v3329 = vmul.f32 %v3327, %v3327
        %v3330 = vmul.f32 %v3329, -0.001358992
        %v3331 = vadd.f32 %v3330, 0.041655596
        %v3332 = vmul.f32 %v3329, %v3331
        %v3333 = vadd.f32 %v3332, -0.4999988
        %v3334 = vmul.f32 %v3329, %v3333
        %v3335 = vadd.f32 1.0, %v3334
        %v3336 = vmul.f32 %v3327, %v3327
        %v3337 = vmul.f32 %v3336, -0.00019511016
        %v3338 = vadd.f32 %v3337, 0.008332121
        %v3339 = vmul.f32 %v3336, %v3338
        %v3340 = vadd.f32 %v3339, -0.16666654
        %v3341 = vmul.f32 %v3336, %v3340
        %v3342 = vadd.f32 %v3341, 1.0
        %v3343 = vmul.f32 %v3342, %v3327
        %vm3344 = vweird.f32 %v3200
        %v3345 = vadd.s32 %v3328, 3
        %v3346 = vand.u32 %v3345, 3
        %vm3347 = vcmp.lt.s32.totalorder %v3346, 2
        %vm3348 = vcmp.eq.s32.totalorder %v3346, 0
        %v3349 = vxor.u32 %v3343, 2147483648
        %v3350 = vsel %vm3348, %v3335, %v3349
        %vm3351 = vcmp.eq.s32.totalorder %v3346, 2
        %v3352 = vxor.u32 %v3335, 2147483648
        %v3353 = vsel %vm3351, %v3352, %v3343
        %v3354 = vsel %vm3347, %v3350, %v3353
        %v3355 = vsel %vm3344, nan, %v3354
        %v3356 = vmul.f32 %v3355, %v3199
        %v3357 = vand.u32 2147483647, %v3200
        %vm3358 = vcmp.le.f32.partialorder %v3357, 0.7853982
        %vm3359 = vcmp.lt.s32.totalorder %v3200, 0
        %v3360 = vand.u32 %v3200, 2139095040
        %v3361 = vshrl.u32 %v3360, 23
        %v3362 = vsub.s32 %v3361, 127
        %v3363 = vand.u32 2147483647, %v3200
        %v3364 = vand.u32 %v3363, 8388607
        %v3365 = vor.u32 %v3364, 8388608
        %v3366 = vsub.s32 0, %v3365
        %v3367 = vadd.s32 %v3362, 1
        %vm3368 = vcmp.gt.s32.totalorder %v3367, 0
        %v3369 = vsel %vm3368, %v3367, 0
        %v3370 = vshrl.u32 %v3369, 5
        %v3371 = vand.u32 %v3369, 31
        %v3372 = vsub.s32 32, %v3371
        %v3373 = vshrl.u32 683565275, %v3372
        %v3374 = vshll.u32 683565275, %v3371
        %v3375 = vshrl.u32 2475754826, %v3372
        %v3376 = vor.u32 %v3374, %v3375
        %v3377 = vshll.u32 2475754826, %v3371
        %v3378 = vshrl.u32 2131351028, %v3372
        %v3379 = vor.u32 %v3377, %v3378
        %v3380 = vshll.u32 2131351028, %v3371
        %v3381 = vshrl.u32 2102212464, %v3372
        %v3382 = vor.u32 %v3380, %v3381
        %v3383 = vshll.u32 2102212464, %v3371
        %v3384 = vshrl.u32 920167782, %v3372
        %v3385 = vor.u32 %v3383, %v3384
        %v3386 = vshll.u32 920167782, %v3371
        %v3387 = vshrl.u32 1326507024, %v3372
        %v3388 = vor.u32 %v3386, %v3387
        %vm3389 = vcmp.lt.s32.totalorder %v3370, 1
        %vm3390 = vcmp.lt.s32.totalorder %v3370, 2
        %vm3391 = vcmp.lt.s32.totalorder %v3370, 3
        %vm3392 = vcmp.lt.s32.totalorder %v3370, 4
        %v3393 = vsel %vm3389, %v3373, %v3376
        %v3394 = vsel %vm3392, %v3382, 2102212464
        %v3395 = vsel %vm3391, %v3379, %v3394
        %v3396 = vsel %vm3390, %v3393, %v3395
        %v3397 = vsel %vm3389, %v3376, %v3379
        %v3398 = vsel %vm3392, %v3385, 920167782
        %v3399 = vsel %vm3391, %v3382, %v3398
        %v3400 = vsel %vm3390, %v3397, %v3399
        %v3401 = vsel %vm3389, %v3379, %v3382
        %v3402 = vsel %vm3392, %v3388, 1326507024
        %v3403 = vsel %vm3391, %v3385, %v3402
        %v3404 = vsel %vm3390, %v3401, %v3403
        %v3405 = vshll.u32 %v3365, 8
        %v3406 = vand.u32 %v3405, 65535
        %v3407 = vshrl.u32 %v3405, 16
        %v3408 = vand.u32 %v3404, 65535
        %v3409 = vshrl.u32 %v3404, 16
        %v3410 = vmul.u32 %v3406, %v3408
        %v3411 = vmul.u32 %v3406, %v3409
        %v3412 = vmul.u32 %v3407, %v3408
        %v3413 = vmul.u32 %v3407, %v3409
        %v3414 = vshll.u32 %v3411, 16
        %v3415 = vshrl.u32 %v3411, 16
        %v3416 = vshll.u32 %v3412, 16
        %v3417 = vshrl.u32 %v3412, 16
        %vm3418 = vc.u32 %v3410, %v3414
        %v3419 = vsel %vm3418, 1, 0
        %v3420 = vadd.s32 %v3410, %v3414
        %v3421 = vadd.s32 %v3413, %v3419
        %vm3422 = vc.u32 %v3420, %v3416
        %v3423 = vsel %vm3422, 1, 0
        %v3424 = vadd.s32 %v3420, %v3416
        %v3425 = vadd.s32 %v3421, %v3423
        %v3426 = vadd.s32 %v3425, %v3415
        %v3427 = vadd.s32 %v3426, %v3417
        %v3428 = vand.u32 %v3405, 65535
        %v3429 = vshrl.u32 %v3405, 16
        %v3430 = vand.u32 %v3400, 65535
        %v3431 = vshrl.u32 %v3400, 16
        %v3432 = vmul.u32 %v3428, %v3430
        %v3433 = vmul.u32 %v3428, %v3431
        %v3434 = vmul.u32 %v3429, %v3430
        %v3435 = vmul.u32 %v3429, %v3431
        %v3436 = vshll.u32 %v3433, 16
        %v3437 = vshrl.u32 %v3433, 16
        %v3438 = vshll.u32 %v3434, 16
        %v3439 = vshrl.u32 %v3434, 16
        %vm3440 = vc.u32 %v3432, %v3436
        %v3441 = vsel %vm3440, 1, 0
        %v3442 = vadd.s32 %v3432, %v3436
        %v3443 = vadd.s32 %v3435, %v3441
        %vm3444 = vc.u32 %v3442, %v3438
        %v3445 = vsel %vm3444, 1, 0
        %v3446 = vadd.s32 %v3442, %v3438
        %v3447 = vadd.s32 %v3443, %v3445
        %v3448 = vadd.s32 %v3447, %v3437
        %v3449 = vadd.s32 %v3448, %v3439
        %v3450 = vmul.u32 %v3405, %v3396
        %v3451 = vadd.s32 %v3427, %v3446
        %vm3452 = vc.u32 %v3427, %v3446
        %v3453 = vadd.s32 %v3449, 1
        %v3454 = vsel %vm3452, %v3453, %v3449
        %v3455 = vadd.s32 %v3450, %v3454
        %v3456 = vadd.s32 %v3455, 536870912
        %v3457 = vshrl.u32 %v3456, 30
        %v3458 = vshll.u32 %v3457, 30
        %v3459 = vsub.s32 %v3455, %v3458
        %vm3460 = vcmp.lt.s32.totalorder %v3459, 0
        %v3461 = vsub.s32 0, %v3459
        %v3462 = vsel %vm3460, %v3461, %v3459
        %v3463 = vclz %v3462
        %v3464 = vsub.s32 %v3463, 2
        %vm3465 = vcmp.gt.s32.totalorder 0, %v3464
        %v3466 = vsel %vm3465, 0, %v3464
        %v3467 = vsub.s32 32, %v3466
        %v3468 = vshll.u32 %v3459, %v3466
        %v3469 = vshrl.u32 %v3451, %v3467
        %v3470 = vor.u32 %v3468, %v3469
        %v3471 = vsub.s32 4294967266, %v3466
        %v3472 = vadd.s32 %v3471, 127
        %v3473 = vshll.u32 %v3472, 23
        %v3474 = vor.u32 4788187, %v3473
        %v3475 = vand.u32 2147483647, %v3474
        %v3477 = vcvt.s32.f32 %v3470
        %v3478 = vmul.f32 %v3477, %v3475
        %v3479 = vxor.u32 %v3478, 2147483648
        %v3480 = vsel %vm3359, %v3479, %v3478
        %v3481 = vsub.s32 4, %v3457
        %v3482 = vsel %vm3359, %v3481, %v3457
        %v3483 = vsel %vm3358, %v3200, %v3480
        %v3484 = vsel %vm3358, 0, %v3482
        %v3485 = vmul.f32 %v3483, %v3483
        %v3486 = vmul.f32 %v3485, -0.001358992
        %v3487 = vadd.f32 %v3486, 0.041655596
        %v3488 = vmul.f32 %v3485, %v3487
        %v3489 = vadd.f32 %v3488, -0.4999988
        %v3490 = vmul.f32 %v3485, %v3489
        %v3491 = vadd.f32 1.0, %v3490
        %v3492 = vmul.f32 %v3483, %v3483
        %v3493 = vmul.f32 %v3492, -0.00019511016
        %v3494 = vadd.f32 %v3493, 0.008332121
        %v3495 = vmul.f32 %v3492, %v3494
        %v3496 = vadd.f32 %v3495, -0.16666654
        %v3497 = vmul.f32 %v3492, %v3496
        %v3498 = vadd.f32 %v3497, 1.0
        %v3499 = vmul.f32 %v3498, %v3483
        %vm3500 = vweird.f32 %v3200
        %v3501 = vand.u32 %v3484, 3
        %vm3502 = vcmp.lt.s32.totalorder %v3501, 2
        %vm3503 = vcmp.eq.s32.totalorder %v3501, 0
        %v3504 = vxor.u32 %v3499, 2147483648
        %v3505 = vsel %vm3503, %v3491, %v3504
        %vm3506 = vcmp.eq.s32.totalorder %v3501, 2
        %v3507 = vxor.u32 %v3491, 2147483648
        %v3508 = vsel %vm3506, %v3507, %v3499
        %v3509 = vsel %vm3502, %v3505, %v3508
        %v3510 = vsel %vm3500, nan, %v3509
        %v3511 = vsub.f32 %v3356, %v3510
        %v3512 = vmul.f32 %v3511, %v3199
        %v3513 = vmul.f32 %v3199, 3.0
        %v3514 = vmul.f32 %v3513, %v3512
        %v3515 = vsub.f32 %v3514, %v3356
        %v3516 = vmul.f32 %v3515, 17.60194
        %v3517 = vmul.f32 %v156, 0.064455405
        %v3518 = vmul.f32 %v141, 15.514603
        %v3519 = vand.u32 2147483647, %v3518
        %vm3520 = vcmp.le.f32.partialorder %v3519, 0.7853982
        %vm3521 = vcmp.lt.s32.totalorder %v3518, 0
        %v3522 = vand.u32 %v3518, 2139095040
        %v3523 = vshrl.u32 %v3522, 23
        %v3524 = vsub.s32 %v3523, 127
        %v3525 = vand.u32 2147483647, %v3518
        %v3526 = vand.u32 %v3525, 8388607
        %v3527 = vor.u32 %v3526, 8388608
        %v3528 = vsub.s32 0, %v3527
        %v3529 = vadd.s32 %v3524, 1
        %vm3530 = vcmp.gt.s32.totalorder %v3529, 0
        %v3531 = vsel %vm3530, %v3529, 0
        %v3532 = vshrl.u32 %v3531, 5
        %v3533 = vand.u32 %v3531, 31
        %v3534 = vsub.s32 32, %v3533
        %v3535 = vshrl.u32 683565275, %v3534
        %v3536 = vshll.u32 683565275, %v3533
        %v3537 = vshrl.u32 2475754826, %v3534
        %v3538 = vor.u32 %v3536, %v3537
        %v3539 = vshll.u32 2475754826, %v3533
        %v3540 = vshrl.u32 2131351028, %v3534
        %v3541 = vor.u32 %v3539, %v3540
        %v3542 = vshll.u32 2131351028, %v3533
        %v3543 = vshrl.u32 2102212464, %v3534
        %v3544 = vor.u32 %v3542, %v3543
        %v3545 = vshll.u32 2102212464, %v3533
        %v3546 = vshrl.u32 920167782, %v3534
        %v3547 = vor.u32 %v3545, %v3546
        %v3548 = vshll.u32 920167782, %v3533
        %v3549 = vshrl.u32 1326507024, %v3534
        %v3550 = vor.u32 %v3548, %v3549
        %vm3551 = vcmp.lt.s32.totalorder %v3532, 1
        %vm3552 = vcmp.lt.s32.totalorder %v3532, 2
        %vm3553 = vcmp.lt.s32.totalorder %v3532, 3
        %vm3554 = vcmp.lt.s32.totalorder %v3532, 4
        %v3555 = vsel %vm3551, %v3535, %v3538
        %v3556 = vsel %vm3554, %v3544, 2102212464
        %v3557 = vsel %vm3553, %v3541, %v3556
        %v3558 = vsel %vm3552, %v3555, %v3557
        %v3559 = vsel %vm3551, %v3538, %v3541
        %v3560 = vsel %vm3554, %v3547, 920167782
        %v3561 = vsel %vm3553, %v3544, %v3560
        %v3562 = vsel %vm3552, %v3559, %v3561
        %v3563 = vsel %vm3551, %v3541, %v3544
        %v3564 = vsel %vm3554, %v3550, 1326507024
        %v3565 = vsel %vm3553, %v3547, %v3564
        %v3566 = vsel %vm3552, %v3563, %v3565
        %v3567 = vshll.u32 %v3527, 8
        %v3568 = vand.u32 %v3567, 65535
        %v3569 = vshrl.u32 %v3567, 16
        %v3570 = vand.u32 %v3566, 65535
        %v3571 = vshrl.u32 %v3566, 16
        %v3572 = vmul.u32 %v3568, %v3570
        %v3573 = vmul.u32 %v3568, %v3571
        %v3574 = vmul.u32 %v3569, %v3570
        %v3575 = vmul.u32 %v3569, %v3571
        %v3576 = vshll.u32 %v3573, 16
        %v3577 = vshrl.u32 %v3573, 16
        %v3578 = vshll.u32 %v3574, 16
        %v3579 = vshrl.u32 %v3574, 16
        %vm3580 = vc.u32 %v3572, %v3576
        %v3581 = vsel %vm3580, 1, 0
        %v3582 = vadd.s32 %v3572, %v3576
        %v3583 = vadd.s32 %v3575, %v3581
        %vm3584 = vc.u32 %v3582, %v3578
        %v3585 = vsel %vm3584, 1, 0
        %v3586 = vadd.s32 %v3582, %v3578
        %v3587 = vadd.s32 %v3583, %v3585
        %v3588 = vadd.s32 %v3587, %v3577
        %v3589 = vadd.s32 %v3588, %v3579
        %v3590 = vand.u32 %v3567, 65535
        %v3591 = vshrl.u32 %v3567, 16
        %v3592 = vand.u32 %v3562, 65535
        %v3593 = vshrl.u32 %v3562, 16
        %v3594 = vmul.u32 %v3590, %v3592
        %v3595 = vmul.u32 %v3590, %v3593
        %v3596 = vmul.u32 %v3591, %v3592
        %v3597 = vmul.u32 %v3591, %v3593
        %v3598 = vshll.u32 %v3595, 16
        %v3599 = vshrl.u32 %v3595, 16
        %v3600 = vshll.u32 %v3596, 16
        %v3601 = vshrl.u32 %v3596, 16
        %vm3602 = vc.u32 %v3594, %v3598
        %v3603 = vsel %vm3602, 1, 0
        %v3604 = vadd.s32 %v3594, %v3598
        %v3605 = vadd.s32 %v3597, %v3603
        %vm3606 = vc.u32 %v3604, %v3600
        %v3607 = vsel %vm3606, 1, 0
        %v3608 = vadd.s32 %v3604, %v3600
        %v3609 = vadd.s32 %v3605, %v3607
        %v3610 = vadd.s32 %v3609, %v3599
        %v3611 = vadd.s32 %v3610, %v3601
        %v3612 = vmul.u32 %v3567, %v3558
        %v3613 = vadd.s32 %v3589, %v3608
        %vm3614 = vc.u32 %v3589, %v3608
        %v3615 = vadd.s32 %v3611, 1
        %v3616 = vsel %vm3614, %v3615, %v3611
        %v3617 = vadd.s32 %v3612, %v3616
        %v3618 = vadd.s32 %v3617, 536870912
        %v3619 = vshrl.u32 %v3618, 30
        %v3620 = vshll.u32 %v3619, 30
        %v3621 = vsub.s32 %v3617, %v3620
        %vm3622 = vcmp.lt.s32.totalorder %v3621, 0
        %v3623 = vsub.s32 0, %v3621
        %v3624 = vsel %vm3622, %v3623, %v3621
        %v3625 = vclz %v3624
        %v3626 = vsub.s32 %v3625, 2
        %vm3627 = vcmp.gt.s32.totalorder 0, %v3626
        %v3628 = vsel %vm3627, 0, %v3626
        %v3629 = vsub.s32 32, %v3628
        %v3630 = vshll.u32 %v3621, %v3628
        %v3631 = vshrl.u32 %v3613, %v3629
        %v3632 = vor.u32 %v3630, %v3631
        %v3633 = vsub.s32 4294967266, %v3628
        %v3634 = vadd.s32 %v3633, 127
        %v3635 = vshll.u32 %v3634, 23
        %v3636 = vor.u32 4788187, %v3635
        %v3637 = vand.u32 2147483647, %v3636
        %v3639 = vcvt.s32.f32 %v3632
        %v3640 = vmul.f32 %v3639, %v3637
        %v3641 = vxor.u32 %v3640, 2147483648
        %v3642 = vsel %vm3521, %v3641, %v3640
        %v3643 = vsub.s32 4, %v3619
        %v3644 = vsel %vm3521, %v3643, %v3619
        %v3645 = vsel %vm3520, %v3518, %v3642
        %v3646 = vsel %vm3520, 0, %v3644
        %v3647 = vmul.f32 %v3645, %v3645
        %v3648 = vmul.f32 %v3647, -0.001358992
        %v3649 = vadd.f32 %v3648, 0.041655596
        %v3650 = vmul.f32 %v3647, %v3649
        %v3651 = vadd.f32 %v3650, -0.4999988
        %v3652 = vmul.f32 %v3647, %v3651
        %v3653 = vadd.f32 1.0, %v3652
        %v3654 = vmul.f32 %v3645, %v3645
        %v3655 = vmul.f32 %v3654, -0.00019511016
        %v3656 = vadd.f32 %v3655, 0.008332121
        %v3657 = vmul.f32 %v3654, %v3656
        %v3658 = vadd.f32 %v3657, -0.16666654
        %v3659 = vmul.f32 %v3654, %v3658
        %v3660 = vadd.f32 %v3659, 1.0
        %v3661 = vmul.f32 %v3660, %v3645
        %vm3662 = vweird.f32 %v3518
        %v3663 = vadd.s32 %v3646, 3
        %v3664 = vand.u32 %v3663, 3
        %vm3665 = vcmp.lt.s32.totalorder %v3664, 2
        %vm3666 = vcmp.eq.s32.totalorder %v3664, 0
        %v3667 = vxor.u32 %v3661, 2147483648
        %v3668 = vsel %vm3666, %v3653, %v3667
        %vm3669 = vcmp.eq.s32.totalorder %v3664, 2
        %v3670 = vxor.u32 %v3653, 2147483648
        %v3671 = vsel %vm3669, %v3670, %v3661
        %v3672 = vsel %vm3665, %v3668, %v3671
        %v3673 = vsel %vm3662, nan, %v3672
        %v3674 = vmul.f32 %v3673, %v3517
        %v3675 = vand.u32 2147483647, %v3518
        %vm3676 = vcmp.le.f32.partialorder %v3675, 0.7853982
        %vm3677 = vcmp.lt.s32.totalorder %v3518, 0
        %v3678 = vand.u32 %v3518, 2139095040
        %v3679 = vshrl.u32 %v3678, 23
        %v3680 = vsub.s32 %v3679, 127
        %v3681 = vand.u32 2147483647, %v3518
        %v3682 = vand.u32 %v3681, 8388607
        %v3683 = vor.u32 %v3682, 8388608
        %v3684 = vsub.s32 0, %v3683
        %v3685 = vadd.s32 %v3680, 1
        %vm3686 = vcmp.gt.s32.totalorder %v3685, 0
        %v3687 = vsel %vm3686, %v3685, 0
        %v3688 = vshrl.u32 %v3687, 5
        %v3689 = vand.u32 %v3687, 31
        %v3690 = vsub.s32 32, %v3689
        %v3691 = vshrl.u32 683565275, %v3690
        %v3692 = vshll.u32 683565275, %v3689
        %v3693 = vshrl.u32 2475754826, %v3690
        %v3694 = vor.u32 %v3692, %v3693
        %v3695 = vshll.u32 2475754826, %v3689
        %v3696 = vshrl.u32 2131351028, %v3690
        %v3697 = vor.u32 %v3695, %v3696
        %v3698 = vshll.u32 2131351028, %v3689
        %v3699 = vshrl.u32 2102212464, %v3690
        %v3700 = vor.u32 %v3698, %v3699
        %v3701 = vshll.u32 2102212464, %v3689
        %v3702 = vshrl.u32 920167782, %v3690
        %v3703 = vor.u32 %v3701, %v3702
        %v3704 = vshll.u32 920167782, %v3689
        %v3705 = vshrl.u32 1326507024, %v3690
        %v3706 = vor.u32 %v3704, %v3705
        %vm3707 = vcmp.lt.s32.totalorder %v3688, 1
        %vm3708 = vcmp.lt.s32.totalorder %v3688, 2
        %vm3709 = vcmp.lt.s32.totalorder %v3688, 3
        %vm3710 = vcmp.lt.s32.totalorder %v3688, 4
        %v3711 = vsel %vm3707, %v3691, %v3694
        %v3712 = vsel %vm3710, %v3700, 2102212464
        %v3713 = vsel %vm3709, %v3697, %v3712
        %v3714 = vsel %vm3708, %v3711, %v3713
        %v3715 = vsel %vm3707, %v3694, %v3697
        %v3716 = vsel %vm3710, %v3703, 920167782
        %v3717 = vsel %vm3709, %v3700, %v3716
        %v3718 = vsel %vm3708, %v3715, %v3717
        %v3719 = vsel %vm3707, %v3697, %v3700
        %v3720 = vsel %vm3710, %v3706, 1326507024
        %v3721 = vsel %vm3709, %v3703, %v3720
        %v3722 = vsel %vm3708, %v3719, %v3721
        %v3723 = vshll.u32 %v3683, 8
        %v3724 = vand.u32 %v3723, 65535
        %v3725 = vshrl.u32 %v3723, 16
        %v3726 = vand.u32 %v3722, 65535
        %v3727 = vshrl.u32 %v3722, 16
        %v3728 = vmul.u32 %v3724, %v3726
        %v3729 = vmul.u32 %v3724, %v3727
        %v3730 = vmul.u32 %v3725, %v3726
        %v3731 = vmul.u32 %v3725, %v3727
        %v3732 = vshll.u32 %v3729, 16
        %v3733 = vshrl.u32 %v3729, 16
        %v3734 = vshll.u32 %v3730, 16
        %v3735 = vshrl.u32 %v3730, 16
        %vm3736 = vc.u32 %v3728, %v3732
        %v3737 = vsel %vm3736, 1, 0
        %v3738 = vadd.s32 %v3728, %v3732
        %v3739 = vadd.s32 %v3731, %v3737
        %vm3740 = vc.u32 %v3738, %v3734
        %v3741 = vsel %vm3740, 1, 0
        %v3742 = vadd.s32 %v3738, %v3734
        %v3743 = vadd.s32 %v3739, %v3741
        %v3744 = vadd.s32 %v3743, %v3733
        %v3745 = vadd.s32 %v3744, %v3735
        %v3746 = vand.u32 %v3723, 65535
        %v3747 = vshrl.u32 %v3723, 16
        %v3748 = vand.u32 %v3718, 65535
        %v3749 = vshrl.u32 %v3718, 16
        %v3750 = vmul.u32 %v3746, %v3748
        %v3751 = vmul.u32 %v3746, %v3749
        %v3752 = vmul.u32 %v3747, %v3748
        %v3753 = vmul.u32 %v3747, %v3749
        %v3754 = vshll.u32 %v3751, 16
        %v3755 = vshrl.u32 %v3751, 16
        %v3756 = vshll.u32 %v3752, 16
        %v3757 = vshrl.u32 %v3752, 16
        %vm3758 = vc.u32 %v3750, %v3754
        %v3759 = vsel %vm3758, 1, 0
        %v3760 = vadd.s32 %v3750, %v3754
        %v3761 = vadd.s32 %v3753, %v3759
        %vm3762 = vc.u32 %v3760, %v3756
        %v3763 = vsel %vm3762, 1, 0
        %v3764 = vadd.s32 %v3760, %v3756
        %v3765 = vadd.s32 %v3761, %v3763
        %v3766 = vadd.s32 %v3765, %v3755
        %v3767 = vadd.s32 %v3766, %v3757
        %v3768 = vmul.u32 %v3723, %v3714
        %v3769 = vadd.s32 %v3745, %v3764
        %vm3770 = vc.u32 %v3745, %v3764
        %v3771 = vadd.s32 %v3767, 1
        %v3772 = vsel %vm3770, %v3771, %v3767
        %v3773 = vadd.s32 %v3768, %v3772
        %v3774 = vadd.s32 %v3773, 536870912
        %v3775 = vshrl.u32 %v3774, 30
        %v3776 = vshll.u32 %v3775, 30
        %v3777 = vsub.s32 %v3773, %v3776
        %vm3778 = vcmp.lt.s32.totalorder %v3777, 0
        %v3779 = vsub.s32 0, %v3777
        %v3780 = vsel %vm3778, %v3779, %v3777
        %v3781 = vclz %v3780
        %v3782 = vsub.s32 %v3781, 2
        %vm3783 = vcmp.gt.s32.totalorder 0, %v3782
        %v3784 = vsel %vm3783, 0, %v3782
        %v3785 = vsub.s32 32, %v3784
        %v3786 = vshll.u32 %v3777, %v3784
        %v3787 = vshrl.u32 %v3769, %v3785
        %v3788 = vor.u32 %v3786, %v3787
        %v3789 = vsub.s32 4294967266, %v3784
        %v3790 = vadd.s32 %v3789, 127
        %v3791 = vshll.u32 %v3790, 23
        %v3792 = vor.u32 4788187, %v3791
        %v3793 = vand.u32 2147483647, %v3792
        %v3795 = vcvt.s32.f32 %v3788
        %v3796 = vmul.f32 %v3795, %v3793
        %v3797 = vxor.u32 %v3796, 2147483648
        %v3798 = vsel %vm3677, %v3797, %v3796
        %v3799 = vsub.s32 4, %v3775
        %v3800 = vsel %vm3677, %v3799, %v3775
        %v3801 = vsel %vm3676, %v3518, %v3798
        %v3802 = vsel %vm3676, 0, %v3800
        %v3803 = vmul.f32 %v3801, %v3801
        %v3804 = vmul.f32 %v3803, -0.001358992
        %v3805 = vadd.f32 %v3804, 0.041655596
        %v3806 = vmul.f32 %v3803, %v3805
        %v3807 = vadd.f32 %v3806, -0.4999988
        %v3808 = vmul.f32 %v3803, %v3807
        %v3809 = vadd.f32 1.0, %v3808
        %v3810 = vmul.f32 %v3801, %v3801
        %v3811 = vmul.f32 %v3810, -0.00019511016
        %v3812 = vadd.f32 %v3811, 0.008332121
        %v3813 = vmul.f32 %v3810, %v3812
        %v3814 = vadd.f32 %v3813, -0.16666654
        %v3815 = vmul.f32 %v3810, %v3814
        %v3816 = vadd.f32 %v3815, 1.0
        %v3817 = vmul.f32 %v3816, %v3801
        %vm3818 = vweird.f32 %v3518
        %v3819 = vand.u32 %v3802, 3
        %vm3820 = vcmp.lt.s32.totalorder %v3819, 2
        %vm3821 = vcmp.eq.s32.totalorder %v3819, 0
        %v3822 = vxor.u32 %v3817, 2147483648
        %v3823 = vsel %vm3821, %v3809, %v3822
        %vm3824 = vcmp.eq.s32.totalorder %v3819, 2
        %v3825 = vxor.u32 %v3809, 2147483648
        %v3826 = vsel %vm3824, %v3825, %v3817
        %v3827 = vsel %vm3820, %v3823, %v3826
        %v3828 = vsel %vm3818, nan, %v3827
        %v3829 = vsub.f32 %v3674, %v3828
        %v3830 = vmul.f32 %v3829, %v3517
        %v3831 = vmul.f32 %v3517, 3.0
        %v3832 = vmul.f32 %v3831, %v3830
        %v3833 = vsub.f32 %v3832, %v3674
        %v3834 = vmul.f32 %v3833, 22.078962
        %v3835 = vmul.f32 %v646, 0.63078314
        %v3836 = vmul.f32 %v643, -0.3641828
        %v3837 = vmul.f32 %v3836, %v479
        %v3838 = vmul.f32 %v641, 0.1820914
        %v3839 = vmul.f32 %v3838, %v637
        %v3840 = vmul.f32 %v3838, %v638
        %v3841 = vmul.f32 %v3836, %v634
        %v3842 = vmul.f32 %v3835, %v2880
        %v3843 = vmul.f32 %v3835, %v3198
        %v3844 = vmul.f32 %v3835, %v3516
        %v3845 = vmul.f32 %v3835, %v3834
        %v3846 = vmul.f32 %v3837, %v2880
        %v3847 = vmul.f32 %v3837, %v3198
        %v3848 = vmul.f32 %v3837, %v3516
        %v3849 = vmul.f32 %v3837, %v3834
        %v3850 = vmul.f32 %v3839, %v2880
        %v3851 = vmul.f32 %v3839, %v3198
        %v3852 = vmul.f32 %v3839, %v3516
        %v3853 = vmul.f32 %v3839, %v3834
        %v3854 = vmul.f32 %v3840, %v2880
        %v3855 = vmul.f32 %v3840, %v3198
        %v3856 = vmul.f32 %v3840, %v3516
        %v3857 = vmul.f32 %v3840, %v3834
        %v3858 = vmul.f32 %v3841, %v2880
        %v3859 = vmul.f32 %v3841, %v3198
        %v3860 = vmul.f32 %v3841, %v3516
        %v3861 = vmul.f32 %v3841, %v3834
        %3862 = vst [vmem:[%s135] sm:$0xff] %v1283
        %s3863 = scalar_lea.vmem %s135, 8 [#allocation5]
        %3864 = vst [vmem:[%s3863] sm:$0xff] %v1284
        %s3865 = scalar_lea.vmem %s135, 16 [#allocation5]
        %3866 = vst [vmem:[%s3865] sm:$0xff] %v1285
        %s3867 = scalar_lea.vmem %s135, 24 [#allocation5]
        %3868 = vst [vmem:[%s3867] sm:$0xff] %v1286
        %s3869 = scalar_lea.vmem %s135, 32 [#allocation5]
        %3870 = vst [vmem:[%s3869] sm:$0xff] %v2551
        %s3871 = scalar_lea.vmem %s135, 40 [#allocation5]
        %3872 = vst [vmem:[%s3871] sm:$0xff] %v2552
        %s3873 = scalar_lea.vmem %s135, 48 [#allocation5]
        %3874 = vst [vmem:[%s3873] sm:$0xff] %v2553
        %s3875 = scalar_lea.vmem %s135, 56 [#allocation5]
        %3876 = vst [vmem:[%s3875] sm:$0xff] %v2554
        %s3877 = scalar_lea.vmem %s135, 64 [#allocation5]
        %3878 = vst [vmem:[%s3877] sm:$0xff] %v2555
        %s3879 = scalar_lea.vmem %s135, 72 [#allocation5]
        %3880 = vst [vmem:[%s3879] sm:$0xff] %v2556
        %s3881 = scalar_lea.vmem %s135, 80 [#allocation5]
        %3882 = vst [vmem:[%s3881] sm:$0xff] %v2557
        %s3883 = scalar_lea.vmem %s135, 88 [#allocation5]
        %3884 = vst [vmem:[%s3883] sm:$0xff] %v2558
        %s3885 = scalar_lea.vmem %s135, 96 [#allocation5]
        %3886 = vst [vmem:[%s3885] sm:$0xff] %v2559
        %s3887 = scalar_lea.vmem %s135, 104 [#allocation5]
        %3888 = vst [vmem:[%s3887] sm:$0xff] %v2560
        %s3889 = scalar_lea.vmem %s135, 112 [#allocation5]
        %3890 = vst [vmem:[%s3889] sm:$0xff] %v2561
        %s3891 = scalar_lea.vmem %s135, 120 [#allocation5]
        %3892 = vst [vmem:[%s3891] sm:$0xff] %v2562
        %s3893 = scalar_lea.vmem %s135, 128 [#allocation5]
        %3894 = vst [vmem:[%s3893] sm:$0xff] %v3842
        %s3895 = scalar_lea.vmem %s135, 136 [#allocation5]
        %3896 = vst [vmem:[%s3895] sm:$0xff] %v3843
        %s3897 = scalar_lea.vmem %s135, 144 [#allocation5]
        %3898 = vst [vmem:[%s3897] sm:$0xff] %v3844
        %s3899 = scalar_lea.vmem %s135, 152 [#allocation5]
        %3900 = vst [vmem:[%s3899] sm:$0xff] %v3845
        %s3901 = scalar_lea.vmem %s135, 160 [#allocation5]
        %3902 = vst [vmem:[%s3901] sm:$0xff] %v3846
        %s3903 = scalar_lea.vmem %s135, 168 [#allocation5]
        %3904 = vst [vmem:[%s3903] sm:$0xff] %v3847
        %s3905 = scalar_lea.vmem %s135, 176 [#allocation5]
        %3906 = vst [vmem:[%s3905] sm:$0xff] %v3848
        %s3907 = scalar_lea.vmem %s135, 184 [#allocation5]
        %3908 = vst [vmem:[%s3907] sm:$0xff] %v3849
        %s3909 = scalar_lea.vmem %s135, 192 [#allocation5]
        %3910 = vst [vmem:[%s3909] sm:$0xff] %v3850
        %s3911 = scalar_lea.vmem %s135, 200 [#allocation5]
        %3912 = vst [vmem:[%s3911] sm:$0xff] %v3851
        %s3913 = scalar_lea.vmem %s135, 208 [#allocation5]
        %3914 = vst [vmem:[%s3913] sm:$0xff] %v3852
        %s3915 = scalar_lea.vmem %s135, 216 [#allocation5]
        %3916 = vst [vmem:[%s3915] sm:$0xff] %v3853
        %s3917 = scalar_lea.vmem %s135, 224 [#allocation5]
        %3918 = vst [vmem:[%s3917] sm:$0xff] %v3854
        %s3919 = scalar_lea.vmem %s135, 232 [#allocation5]
        %3920 = vst [vmem:[%s3919] sm:$0xff] %v3855
        %s3921 = scalar_lea.vmem %s135, 240 [#allocation5]
        %3922 = vst [vmem:[%s3921] sm:$0xff] %v3856
        %s3923 = scalar_lea.vmem %s135, 248 [#allocation5]
        %3924 = vst [vmem:[%s3923] sm:$0xff] %v3857
        %s3925 = scalar_lea.vmem %s135, 256 [#allocation5]
        %3926 = vst [vmem:[%s3925] sm:$0xff] %v3858
        %s3927 = scalar_lea.vmem %s135, 264 [#allocation5]
        %3928 = vst [vmem:[%s3927] sm:$0xff] %v3859
        %s3929 = scalar_lea.vmem %s135, 272 [#allocation5]
        %3930 = vst [vmem:[%s3929] sm:$0xff] %v3860
        %s3931 = scalar_lea.vmem %s135, 280 [#allocation5]
        %3932 = vst [vmem:[%s3931] sm:$0xff] %v3861
        %s3933 = sand.u32 %s52, 1
        %s3934 = scalar_lea.sflag [#allocation4], %s3933
        %s3935 = sand.u32 %s52, 1
        %s3936 = smul.addr %s3935, 288
        %s3937 = scalar_lea.vmem [#allocation5], %s3936
        // Predicated region
        $region29: #{tpu_custom_call.1} parent=23 // pred_check
          %p3938 = pneg %p62
        $region30: #{tpu_custom_call.1} parent=23 // pred_check_branch
          %3940 = sbr.rel (%p3938) target = $region32
        $region31: #{tpu_custom_call.1} parent=23 // pred_region
          %3942 = vsyncadd %s3934, 0
          %s3943 = smul.addr %s18, 8
          %s3944 = scalar_lea.hbm %s1, %s3943
          %s3945 = sshll.u32 %s3937, 4
          %s3946 = int_to_ptr.vmem [resolvable:$true] %s3945
          %s3947 = sshll.u32 %s3944, 4
          %s3948 = int_to_ptr.hbm [resolvable:$true] %s3947
          %3953 = dma.vmem_to_hbm [thread:$0]  %s3946, 4608, %s3948, %s3934, 128, 256, 8
        $region32: #{tpu_custom_call.1} parent=23 // pred_fallthru
          _
      $region24: #{tpu_custom_call.1} parent=5 // pred_fallthru
        _
      %p3954 = scmp.le.s32.totalorder 2, %s13
      // Predicated region
      $region33: #{tpu_custom_call.1} parent=5 // pred_check
        %p3955 = pneg %p3954
      $region34: #{tpu_custom_call.1} parent=5 // pred_check_branch
        %3957 = sbr.rel (%p3955) target = $region36
      $region35: #{tpu_custom_call.1} parent=5 // pred_region
        %s3958 = ssub.s32 %s13, 2
        // Predicated region
        $region37: #{tpu_custom_call.1} parent=35 // pred_check
          %p3959 = pneg %p68
        $region38: #{tpu_custom_call.1} parent=35 // pred_check_branch
          %3961 = sbr.rel (%p3959) target = $region40
        $region39: #{tpu_custom_call.1} parent=35 // pred_region
          %s3962 = sand.u32 %s53, 1
          %s3963 = scalar_lea.sflag [#allocation4], %s3962
          %s3964 = sand.u32 %s53, 1
          %s3965 = smul.addr %s3964, 288
          %s3966 = scalar_lea.vmem [#allocation5], %s3965
          %3968 = dma.done %s3963, 4608
        $region40: #{tpu_custom_call.1} parent=35 // pred_fallthru
          _
      $region36: #{tpu_custom_call.1} parent=5 // pred_fallthru
        _
    $region6: #{tpu_custom_call.1} parent=1 // loop_footer
      %s17 = sadd.s32 1, %s13
    $region7: #{tpu_custom_call.1} parent=1 // loop_footer_branch
      %12 = sbr.rel target = $region3
    $region8: #{tpu_custom_call.1} parent=1 // loop_exit
      _
    %3969 = vsyncpa [#allocation3], 1
    %s3970 = scalar_lea.sflag [#allocation3], 1
    %3971 = vsyncpa %s3970, 1
    %3972 = vsyncpa [#allocation4], 1
    %s3973 = scalar_lea.sflag [#allocation4], 1
    %3974 = vsyncpa %s3973, 1

</llo_original>
